<compile_context>
chip_gen: v7x
topology: tpu7x:2x2x1
jax: 0.10.0
libtpu: 0.0.40
codegen_flags: <defaults>
</compile_context>

<pallas_src>
import functools

import jax
import jax.numpy as jnp
from jax.experimental import pallas as pl
from jax.experimental.pallas import tpu as pltpu

BN_EPS = 1e-5
LANE = 128      # vreg lane width
SUBLANE = 8     # f32 sublane count
TN = 128        # output-feature tile width for the final layer


def _round_up(n, m):
    return ((n + m - 1) // m) * m


def generator_kernel(
    b_true,                                   # static: true (unpadded) batch size
    x_ref,                                    # (B_pad, IN_PAD)  bf16
    w1_ref, b1_ref,                           # (IN_PAD,128) bf16, (1,128) f32
    w2_ref, g2_ref, be2_ref,                  # (128,256)  bf16, (1,256)  f32 x2
    w3_ref, g3_ref, be3_ref,                  # (256,512)  bf16, (1,512)  f32 x2
    w4_ref, g4_ref, be4_ref,                  # (512,1024) bf16, (1,1024) f32 x2
    w5_ref, b5_ref,                           # (1024,TN)  bf16, (1,TN)   f32  [N tile]
    out_ref,                                  # (B_pad, TN) f32                [N tile]
    h_ref,                                    # VMEM scratch (B_pad, 1024) bf16
):
    # Hidden trunk (layers 1-4) is independent of the output-feature tile: compute it
    # once on the first grid step and keep it resident in VMEM scratch.
    @pl.when(pl.program_id(0) == 0)
    def _():
        x = x_ref[...]
        b_pad = x.shape[0]

        if b_true < b_pad:
            row_mask = (
                jax.lax.broadcasted_iota(jnp.int32, (b_pad, 1), 0) < b_true
            ).astype(jnp.float32)
        else:
            row_mask = None
        inv_b = 1.0 / float(b_true)

        def bn_relu(h, gamma, beta):
            # BatchNorm1d training mode: batch mean, biased variance, eps=1e-5 (f32).
            # Stats are masked to the true batch rows; padded rows carry garbage but
            # never contaminate the statistics and are sliced off in the wrapper.
            if row_mask is None:
                mean = jnp.mean(h, axis=0, keepdims=True)
                cen = h - mean
                var = jnp.mean(cen * cen, axis=0, keepdims=True)
            else:
                mean = jnp.sum(h * row_mask, axis=0, keepdims=True) * inv_b
                cen = h - mean
                var = jnp.sum(cen * cen * row_mask, axis=0, keepdims=True) * inv_b
            h = cen * jax.lax.rsqrt(var + BN_EPS) * gamma + beta
            return jnp.maximum(h, 0.0)

        def mm(a, w_ref):
            # bf16 operands on the MXU, f32 accumulation.
            return jnp.dot(a.astype(jnp.bfloat16), w_ref[...],
                           preferred_element_type=jnp.float32)

        # Layer 1: Linear + ReLU
        h = jnp.dot(x, w1_ref[...], preferred_element_type=jnp.float32) + b1_ref[...]
        h = jnp.maximum(h, 0.0)
        # Layers 2-4: Linear (bias dropped — cancelled by BN mean) + BN + ReLU
        h = bn_relu(mm(h, w2_ref), g2_ref[...], be2_ref[...])
        h = bn_relu(mm(h, w3_ref), g3_ref[...], be3_ref[...])
        h = bn_relu(mm(h, w4_ref), g4_ref[...], be4_ref[...])
        h_ref[...] = h.astype(jnp.bfloat16)

    # Layer 5 (per output-feature tile): Linear + Sigmoid, lane-dense store.
    logits = jnp.dot(h_ref[...], w5_ref[...],
                     preferred_element_type=jnp.float32) + b5_ref[...]
    out_ref[...] = pl.reciprocal(1.0 + jnp.exp(-logits), approx=True)


def _vmem_limit_bytes(b_pad, in_pad, tn):
    """Actual footprint (x2 for double-buffering) + headroom, capped at 32 MiB (v7x-safe)."""
    bf16, f32 = 2, 4
    weights = (in_pad * 128 + 128 * 256 + 256 * 512 + 512 * 1024) * bf16
    w5_tile = 1024 * tn * bf16
    params_1d = (128 + 2 * 256 + 2 * 512 + 2 * 1024 + tn) * f32 * SUBLANE
    x_bytes = b_pad * in_pad * bf16
    out_tile = b_pad * tn * f32
    scratch = b_pad * 1024 * bf16
    activations = b_pad * 1024 * f32 * 8          # generous headroom for f32 temporaries
    est = 2 * (weights + w5_tile + params_1d + x_bytes + out_tile) + scratch + activations
    return int(min(32 * 1024 * 1024, max(16 * 1024 * 1024, est + 4 * 1024 * 1024)))


def pack_params(params):
    """Kernel-ready parameters: lane-padded, bf16 matmul weights, pre-BN biases dropped."""
    in_dim = params["w1"].shape[0]
    n_px = params["w5"].shape[1]
    in_pad = _round_up(in_dim, LANE)
    p_pad = _round_up(n_px, TN)

    packed = {"emb": params["emb"]}
    packed["w1"] = jnp.pad(params["w1"].astype(jnp.bfloat16),
                           ((0, in_pad - in_dim), (0, 0)))
    packed["b1"] = params["b1"]
    for i in ("2", "3", "4"):
        packed["w" + i] = params["w" + i].astype(jnp.bfloat16)
        packed["g" + i] = params["g" + i]
        packed["be" + i] = params["be" + i]
        # b2/b3/b4 intentionally dropped: exactly cancelled by BN batch-mean subtraction.
    packed["w5"] = jnp.pad(params["w5"].astype(jnp.bfloat16),
                           ((0, 0), (0, p_pad - n_px)))
    packed["b5"] = jnp.pad(params["b5"], ((0, 0), (0, p_pad - n_px)))
    return packed


@functools.partial(jax.jit, static_argnames=("img_shape",))
def generator_forward(z, y, packed, img_shape):
    """Embedding gather + concat + padding/reshape are wrapper glue; the MLP is the kernel."""
    x = jnp.concatenate([z, packed["emb"][y]], axis=-1).astype(jnp.bfloat16)
    b_true, in_dim = x.shape
    in_pad = packed["w1"].shape[0]
    p_pad = packed["w5"].shape[1]
    n_px = int(img_shape[0] * img_shape[1] * img_shape[2])
    b_pad = _round_up(max(b_true, SUBLANE), SUBLANE)

    x = jnp.pad(x, ((0, b_pad - b_true), (0, in_pad - in_dim)))

    kernel_args = (
        x,
        packed["w1"], packed["b1"],
        packed["w2"], packed["g2"], packed["be2"],
        packed["w3"], packed["g3"], packed["be3"],
        packed["w4"], packed["g4"], packed["be4"],
        packed["w5"], packed["b5"],
    )

    # Whole-array blocks with a constant index map -> fetched once, stay resident.
    in_specs = [pl.BlockSpec(a.shape, lambda j: (0, 0)) for a in kernel_args[:-2]]
    in_specs.append(pl.BlockSpec((1024, TN), lambda j: (0, j)))   # w5: streamed N tiles
    in_specs.append(pl.BlockSpec((1, TN), lambda j: (0, j)))      # b5: streamed N tiles

    out_flat = pl.pallas_call(
        functools.partial(generator_kernel, b_true),
        out_shape=jax.ShapeDtypeStruct((b_pad, p_pad), jnp.float32),
        grid_spec=pltpu.PrefetchScalarGridSpec(
            num_scalar_prefetch=0,
            grid=(p_pad // TN,),
            in_specs=in_specs,
            out_specs=pl.BlockSpec((b_pad, TN), lambda j: (0, j)),
            scratch_shapes=[pltpu.VMEM((b_pad, 1024), jnp.bfloat16)],
        ),
        compiler_params=pltpu.CompilerParams(
            # "arbitrary": the hidden-trunk scratch written at program 0 is reused by
            # every later output tile, so this axis cannot be split across cores.
            dimension_semantics=("arbitrary",),
            vmem_limit_bytes=_vmem_limit_bytes(b_pad, in_pad, TN),
        ),
    )(*kernel_args)

    return out_flat[:b_true, :n_px].reshape((b_true,) + tuple(img_shape))


def init_params(key, z_dim, n_labels, img_shape):
    """Deterministic synthetic parameters matching the PyTorch module's shapes (f32)."""
    in_dim = z_dim + n_labels
    n_px = int(img_shape[0] * img_shape[1] * img_shape[2])
    dims = [in_dim, 128, 256, 512, 1024, n_px]

    keys = iter(jax.random.split(key, 16))

    def lin(k, d_in, d_out):
        kw, kb = jax.random.split(k)
        w = jax.random.normal(kw, (d_in, d_out), jnp.float32) * (1.0 / jnp.sqrt(d_in))
        b = 0.1 * jax.random.normal(kb, (1, d_out), jnp.float32)
        return w, b

    params = {"emb": jax.random.normal(next(keys), (n_labels, n_labels), jnp.float32)}
    for i in range(5):
        params[f"w{i + 1}"], params[f"b{i + 1}"] = lin(next(keys), dims[i], dims[i + 1])
    for name, d in (("2", 256), ("3", 512), ("4", 1024)):
        params["g" + name] = 1.0 + 0.01 * jax.random.normal(next(keys), (1, d), jnp.float32)
        params["be" + name] = 0.01 * jax.random.normal(next(keys), (1, d), jnp.float32)
    return params


def reference_forward(z, y, params, img_shape):
    """Pure-JAX reference of the PyTorch semantics (same bf16 matmul precision)."""
    def mm(a, w):
        return jnp.dot(a.astype(jnp.bfloat16), w.astype(jnp.bfloat16),
                       preferred_element_type=jnp.float32)

    x = jnp.concatenate([z, params["emb"][y]], axis=-1)
    h = jnp.maximum(mm(x, params["w1"]) + params["b1"], 0.0)

    def bn_relu(h, g, b):
        m = jnp.mean(h, axis=0, keepdims=True)
        v = jnp.mean((h - m) ** 2, axis=0, keepdims=True)
        return jnp.maximum((h - m) * jax.lax.rsqrt(v + BN_EPS) * g + b, 0.0)

    h = bn_relu(mm(h, params["w2"]) + params["b2"], params["g2"], params["be2"])
    h = bn_relu(mm(h, params["w3"]) + params["b3"], params["g3"], params["be3"])
    h = bn_relu(mm(h, params["w4"]) + params["b4"], params["g4"], params["be4"])
    h = jax.nn.sigmoid(mm(h, params["w5"]) + params["b5"])
    return h.reshape((z.shape[0],) + tuple(img_shape))


if __name__ == "__main__":
    # Small, module-consistent shapes: conditional generator with labels.
    # B=4 exercises the batch-padding + masked-BN path; P=196 -> padded 256 gives a
    # 2-step output-feature grid and exercises the output slicing path.
    B = 4
    z_dim = 32
    n_labels = 10
    img_shape = (1, 14, 14)   # prod = 196

    key = jax.random.PRNGKey(0)
    kz, ky, kp = jax.random.split(key, 3)

    z = jax.random.normal(kz, (B, z_dim), jnp.float32)
    y = jax.random.randint(ky, (B,), 0, n_labels, jnp.int32)
    params = init_params(kp, z_dim, n_labels, img_shape)
    packed = pack_params(params)

    img = generator_forward(z, y, packed, img_shape=img_shape)
    img = jax.block_until_ready(img)

    ref = reference_forward(z, y, params, img_shape)
    assert img.shape == (B,) + img_shape, img.shape
    err = float(jnp.max(jnp.abs(img - ref)))
    assert err < 5e-3, err

    print("KERNEL_OK")
</pallas_src>

<mosaic_0001>
module attributes {stable_mosaic.version = 11 : i64} {
  func.func @generator_kernel(%arg0: i32, %arg1: memref<8x128xbf16, #tpu.memory_space<vmem>>, %arg2: memref<128x128xbf16, #tpu.memory_space<vmem>>, %arg3: memref<1x128xf32, #tpu.memory_space<vmem>>, %arg4: memref<128x256xbf16, #tpu.memory_space<vmem>>, %arg5: memref<1x256xf32, #tpu.memory_space<vmem>>, %arg6: memref<1x256xf32, #tpu.memory_space<vmem>>, %arg7: memref<256x512xbf16, #tpu.memory_space<vmem>>, %arg8: memref<1x512xf32, #tpu.memory_space<vmem>>, %arg9: memref<1x512xf32, #tpu.memory_space<vmem>>, %arg10: memref<512x1024xbf16, #tpu.memory_space<vmem>>, %arg11: memref<1x1024xf32, #tpu.memory_space<vmem>>, %arg12: memref<1x1024xf32, #tpu.memory_space<vmem>>, %arg13: memref<1024x128xbf16, #tpu.memory_space<vmem>>, %arg14: memref<1x128xf32, #tpu.memory_space<vmem>>, %arg15: memref<8x128xf32, #tpu.memory_space<vmem>>, %arg16: memref<8x1024xbf16, #tpu.memory_space<vmem>>) attributes {dimension_semantics = [#tpu.dimension_semantics<arbitrary>], iteration_bounds = array<i64: 2>, scalar_prefetch = 0 : i64, scratch_operands = 1 : i64, tpu.core_type = #tpu.core_type<tc>, window_params = [{pipeline_mode = #tpu.pipeline_mode<synchronous>, transform_indices = @transform_0, window_bounds = array<i64: 8, 128>}, {pipeline_mode = #tpu.pipeline_mode<synchronous>, transform_indices = @transform_1, window_bounds = array<i64: 128, 128>}, {pipeline_mode = #tpu.pipeline_mode<synchronous>, transform_indices = @transform_2, window_bounds = array<i64: 1, 128>}, {pipeline_mode = #tpu.pipeline_mode<synchronous>, transform_indices = @transform_3, window_bounds = array<i64: 128, 256>}, {pipeline_mode = #tpu.pipeline_mode<synchronous>, transform_indices = @transform_4, window_bounds = array<i64: 1, 256>}, {pipeline_mode = #tpu.pipeline_mode<synchronous>, transform_indices = @transform_5, window_bounds = array<i64: 1, 256>}, {pipeline_mode = #tpu.pipeline_mode<synchronous>, transform_indices = @transform_6, window_bounds = array<i64: 256, 512>}, {pipeline_mode = #tpu.pipeline_mode<synchronous>, transform_indices = @transform_7, window_bounds = array<i64: 1, 512>}, {pipeline_mode = #tpu.pipeline_mode<synchronous>, transform_indices = @transform_8, window_bounds = array<i64: 1, 512>}, {pipeline_mode = #tpu.pipeline_mode<synchronous>, transform_indices = @transform_9, window_bounds = array<i64: 512, 1024>}, {pipeline_mode = #tpu.pipeline_mode<synchronous>, transform_indices = @transform_10, window_bounds = array<i64: 1, 1024>}, {pipeline_mode = #tpu.pipeline_mode<synchronous>, transform_indices = @transform_11, window_bounds = array<i64: 1, 1024>}, {transform_indices = @transform_12, window_bounds = array<i64: 1024, 128>}, {transform_indices = @transform_13, window_bounds = array<i64: 1, 128>}, {transform_indices = @transform_14, window_bounds = array<i64: 8, 128>}]} {
    %c0_i32 = arith.constant 0 : i32
    %0 = arith.cmpi eq, %arg0, %c0_i32 : i32
    %1 = arith.extui %0 : i1 to i32
    %c0_i32_0 = arith.constant 0 : i32
    %2 = arith.cmpi ne, %1, %c0_i32_0 : i32
    scf.if %2 {
      %c0_10 = arith.constant 0 : index
      %c0_11 = arith.constant 0 : index
      %16 = vector.load %arg1[%c0_10, %c0_11] : memref<8x128xbf16, #tpu.memory_space<vmem>>, vector<8x128xbf16>
      %17 = tpu.iota {dimensions = array<i32: 0>} : vector<8x1xi32>
      %c4_i32 = arith.constant 4 : i32
      %18 = vector.broadcast %c4_i32 : i32 to vector<8x1xi32>
      %19 = arith.cmpi slt, %17, %18 : vector<8x1xi32>
      %20 = arith.extui %19 : vector<8x1xi1> to vector<8x1xi32>
      %21 = arith.sitofp %20 : vector<8x1xi32> to vector<8x1xf32>
      %c0_12 = arith.constant 0 : index
      %c0_13 = arith.constant 0 : index
      %22 = vector.load %arg2[%c0_12, %c0_13] : memref<128x128xbf16, #tpu.memory_space<vmem>>, vector<128x128xbf16>
      %cst_14 = arith.constant dense<0.000000e+00> : vector<8x128xf32>
      %23 = tpu.matmul %16, %22, %cst_14 {dimension_numbers = #tpu.dot_dimension_numbers<[1], [0], [0], [1], [0, 0, 1, 1], [], []>} : vector<8x128xbf16>, vector<128x128xbf16>, vector<8x128xf32> -> vector<8x128xf32>
      %c0_15 = arith.constant 0 : index
      %c0_16 = arith.constant 0 : index
      %24 = vector.load %arg3[%c0_15, %c0_16] : memref<1x128xf32, #tpu.memory_space<vmem>>, vector<1x128xf32>
      %25 = vector.broadcast %24 : vector<1x128xf32> to vector<8x128xf32>
      %26 = arith.addf %23, %25 : vector<8x128xf32>
      %cst_17 = arith.constant 0.000000e+00 : f32
      %27 = vector.broadcast %cst_17 : f32 to vector<8x128xf32>
      %28 = arith.maximumf %26, %27 : vector<8x128xf32>
      %29 = arith.truncf %28 : vector<8x128xf32> to vector<8x128xbf16>
      %c0_18 = arith.constant 0 : index
      %c0_19 = arith.constant 0 : index
      %30 = vector.load %arg4[%c0_18, %c0_19] : memref<128x256xbf16, #tpu.memory_space<vmem>>, vector<128x256xbf16>
      %cst_20 = arith.constant dense<0.000000e+00> : vector<8x256xf32>
      %31 = tpu.matmul %29, %30, %cst_20 {dimension_numbers = #tpu.dot_dimension_numbers<[1], [0], [0], [1], [0, 0, 1, 1], [], []>} : vector<8x128xbf16>, vector<128x256xbf16>, vector<8x256xf32> -> vector<8x256xf32>
      %c0_21 = arith.constant 0 : index
      %c0_22 = arith.constant 0 : index
      %32 = vector.load %arg5[%c0_21, %c0_22] : memref<1x256xf32, #tpu.memory_space<vmem>>, vector<1x256xf32>
      %c0_23 = arith.constant 0 : index
      %c0_24 = arith.constant 0 : index
      %33 = vector.load %arg6[%c0_23, %c0_24] : memref<1x256xf32, #tpu.memory_space<vmem>>, vector<1x256xf32>
      %34 = vector.broadcast %21 : vector<8x1xf32> to vector<8x256xf32>
      %35 = arith.mulf %31, %34 : vector<8x256xf32>
      %cst_25 = arith.constant dense<0.000000e+00> : vector<256xf32>
      %36 = vector.multi_reduction <add>, %35, %cst_25 [0] : vector<8x256xf32> to vector<256xf32>
      %37 = vector.shape_cast %36 : vector<256xf32> to vector<1x256xf32>
      %cst_26 = arith.constant 2.500000e-01 : f32
      %38 = vector.broadcast %cst_26 : f32 to vector<1x256xf32>
      %39 = arith.mulf %37, %38 : vector<1x256xf32>
      %40 = vector.broadcast %39 : vector<1x256xf32> to vector<8x256xf32>
      %41 = arith.subf %31, %40 : vector<8x256xf32>
      %42 = arith.mulf %41, %41 : vector<8x256xf32>
      %43 = vector.broadcast %21 : vector<8x1xf32> to vector<8x256xf32>
      %44 = arith.mulf %42, %43 : vector<8x256xf32>
      %cst_27 = arith.constant dense<0.000000e+00> : vector<256xf32>
      %45 = vector.multi_reduction <add>, %44, %cst_27 [0] : vector<8x256xf32> to vector<256xf32>
      %46 = vector.shape_cast %45 : vector<256xf32> to vector<1x256xf32>
      %cst_28 = arith.constant 2.500000e-01 : f32
      %47 = vector.broadcast %cst_28 : f32 to vector<1x256xf32>
      %48 = arith.mulf %46, %47 : vector<1x256xf32>
      %cst_29 = arith.constant 9.99999974E-6 : f32
      %49 = vector.broadcast %cst_29 : f32 to vector<1x256xf32>
      %50 = arith.addf %48, %49 : vector<1x256xf32>
      %51 = math.rsqrt %50 : vector<1x256xf32>
      %52 = vector.broadcast %51 : vector<1x256xf32> to vector<8x256xf32>
      %53 = arith.mulf %41, %52 : vector<8x256xf32>
      %54 = vector.broadcast %32 : vector<1x256xf32> to vector<8x256xf32>
      %55 = arith.mulf %53, %54 : vector<8x256xf32>
      %56 = vector.broadcast %33 : vector<1x256xf32> to vector<8x256xf32>
      %57 = arith.addf %55, %56 : vector<8x256xf32>
      %cst_30 = arith.constant 0.000000e+00 : f32
      %58 = vector.broadcast %cst_30 : f32 to vector<8x256xf32>
      %59 = arith.maximumf %57, %58 : vector<8x256xf32>
      %60 = arith.truncf %59 : vector<8x256xf32> to vector<8x256xbf16>
      %c0_31 = arith.constant 0 : index
      %c0_32 = arith.constant 0 : index
      %61 = vector.load %arg7[%c0_31, %c0_32] : memref<256x512xbf16, #tpu.memory_space<vmem>>, vector<256x512xbf16>
      %cst_33 = arith.constant dense<0.000000e+00> : vector<8x512xf32>
      %62 = tpu.matmul %60, %61, %cst_33 {dimension_numbers = #tpu.dot_dimension_numbers<[1], [0], [0], [1], [0, 0, 1, 1], [], []>} : vector<8x256xbf16>, vector<256x512xbf16>, vector<8x512xf32> -> vector<8x512xf32>
      %c0_34 = arith.constant 0 : index
      %c0_35 = arith.constant 0 : index
      %63 = vector.load %arg8[%c0_34, %c0_35] : memref<1x512xf32, #tpu.memory_space<vmem>>, vector<1x512xf32>
      %c0_36 = arith.constant 0 : index
      %c0_37 = arith.constant 0 : index
      %64 = vector.load %arg9[%c0_36, %c0_37] : memref<1x512xf32, #tpu.memory_space<vmem>>, vector<1x512xf32>
      %65 = vector.broadcast %21 : vector<8x1xf32> to vector<8x512xf32>
      %66 = arith.mulf %62, %65 : vector<8x512xf32>
      %cst_38 = arith.constant dense<0.000000e+00> : vector<512xf32>
      %67 = vector.multi_reduction <add>, %66, %cst_38 [0] : vector<8x512xf32> to vector<512xf32>
      %68 = vector.shape_cast %67 : vector<512xf32> to vector<1x512xf32>
      %cst_39 = arith.constant 2.500000e-01 : f32
      %69 = vector.broadcast %cst_39 : f32 to vector<1x512xf32>
      %70 = arith.mulf %68, %69 : vector<1x512xf32>
      %71 = vector.broadcast %70 : vector<1x512xf32> to vector<8x512xf32>
      %72 = arith.subf %62, %71 : vector<8x512xf32>
      %73 = arith.mulf %72, %72 : vector<8x512xf32>
      %74 = vector.broadcast %21 : vector<8x1xf32> to vector<8x512xf32>
      %75 = arith.mulf %73, %74 : vector<8x512xf32>
      %cst_40 = arith.constant dense<0.000000e+00> : vector<512xf32>
      %76 = vector.multi_reduction <add>, %75, %cst_40 [0] : vector<8x512xf32> to vector<512xf32>
      %77 = vector.shape_cast %76 : vector<512xf32> to vector<1x512xf32>
      %cst_41 = arith.constant 2.500000e-01 : f32
      %78 = vector.broadcast %cst_41 : f32 to vector<1x512xf32>
      %79 = arith.mulf %77, %78 : vector<1x512xf32>
      %cst_42 = arith.constant 9.99999974E-6 : f32
      %80 = vector.broadcast %cst_42 : f32 to vector<1x512xf32>
      %81 = arith.addf %79, %80 : vector<1x512xf32>
      %82 = math.rsqrt %81 : vector<1x512xf32>
      %83 = vector.broadcast %82 : vector<1x512xf32> to vector<8x512xf32>
      %84 = arith.mulf %72, %83 : vector<8x512xf32>
      %85 = vector.broadcast %63 : vector<1x512xf32> to vector<8x512xf32>
      %86 = arith.mulf %84, %85 : vector<8x512xf32>
      %87 = vector.broadcast %64 : vector<1x512xf32> to vector<8x512xf32>
      %88 = arith.addf %86, %87 : vector<8x512xf32>
      %cst_43 = arith.constant 0.000000e+00 : f32
      %89 = vector.broadcast %cst_43 : f32 to vector<8x512xf32>
      %90 = arith.maximumf %88, %89 : vector<8x512xf32>
      %91 = arith.truncf %90 : vector<8x512xf32> to vector<8x512xbf16>
      %c0_44 = arith.constant 0 : index
      %c0_45 = arith.constant 0 : index
      %92 = vector.load %arg10[%c0_44, %c0_45] : memref<512x1024xbf16, #tpu.memory_space<vmem>>, vector<512x1024xbf16>
      %cst_46 = arith.constant dense<0.000000e+00> : vector<8x1024xf32>
      %93 = tpu.matmul %91, %92, %cst_46 {dimension_numbers = #tpu.dot_dimension_numbers<[1], [0], [0], [1], [0, 0, 1, 1], [], []>} : vector<8x512xbf16>, vector<512x1024xbf16>, vector<8x1024xf32> -> vector<8x1024xf32>
      %c0_47 = arith.constant 0 : index
      %c0_48 = arith.constant 0 : index
      %94 = vector.load %arg11[%c0_47, %c0_48] : memref<1x1024xf32, #tpu.memory_space<vmem>>, vector<1x1024xf32>
      %c0_49 = arith.constant 0 : index
      %c0_50 = arith.constant 0 : index
      %95 = vector.load %arg12[%c0_49, %c0_50] : memref<1x1024xf32, #tpu.memory_space<vmem>>, vector<1x1024xf32>
      %96 = vector.broadcast %21 : vector<8x1xf32> to vector<8x1024xf32>
      %97 = arith.mulf %93, %96 : vector<8x1024xf32>
      %cst_51 = arith.constant dense<0.000000e+00> : vector<1024xf32>
      %98 = vector.multi_reduction <add>, %97, %cst_51 [0] : vector<8x1024xf32> to vector<1024xf32>
      %99 = vector.shape_cast %98 : vector<1024xf32> to vector<1x1024xf32>
      %cst_52 = arith.constant 2.500000e-01 : f32
      %100 = vector.broadcast %cst_52 : f32 to vector<1x1024xf32>
      %101 = arith.mulf %99, %100 : vector<1x1024xf32>
      %102 = vector.broadcast %101 : vector<1x1024xf32> to vector<8x1024xf32>
      %103 = arith.subf %93, %102 : vector<8x1024xf32>
      %104 = arith.mulf %103, %103 : vector<8x1024xf32>
      %105 = vector.broadcast %21 : vector<8x1xf32> to vector<8x1024xf32>
      %106 = arith.mulf %104, %105 : vector<8x1024xf32>
      %cst_53 = arith.constant dense<0.000000e+00> : vector<1024xf32>
      %107 = vector.multi_reduction <add>, %106, %cst_53 [0] : vector<8x1024xf32> to vector<1024xf32>
      %108 = vector.shape_cast %107 : vector<1024xf32> to vector<1x1024xf32>
      %cst_54 = arith.constant 2.500000e-01 : f32
      %109 = vector.broadcast %cst_54 : f32 to vector<1x1024xf32>
      %110 = arith.mulf %108, %109 : vector<1x1024xf32>
      %cst_55 = arith.constant 9.99999974E-6 : f32
      %111 = vector.broadcast %cst_55 : f32 to vector<1x1024xf32>
      %112 = arith.addf %110, %111 : vector<1x1024xf32>
      %113 = math.rsqrt %112 : vector<1x1024xf32>
      %114 = vector.broadcast %113 : vector<1x1024xf32> to vector<8x1024xf32>
      %115 = arith.mulf %103, %114 : vector<8x1024xf32>
      %116 = vector.broadcast %94 : vector<1x1024xf32> to vector<8x1024xf32>
      %117 = arith.mulf %115, %116 : vector<8x1024xf32>
      %118 = vector.broadcast %95 : vector<1x1024xf32> to vector<8x1024xf32>
      %119 = arith.addf %117, %118 : vector<8x1024xf32>
      %cst_56 = arith.constant 0.000000e+00 : f32
      %120 = vector.broadcast %cst_56 : f32 to vector<8x1024xf32>
      %121 = arith.maximumf %119, %120 : vector<8x1024xf32>
      %122 = arith.truncf %121 : vector<8x1024xf32> to vector<8x1024xbf16>
      %c0_57 = arith.constant 0 : index
      %c0_58 = arith.constant 0 : index
      %123 = vector.load %arg16[%c0_57, %c0_58] : memref<8x1024xbf16, #tpu.memory_space<vmem>>, vector<8x1024xbf16>
      tpu.vector_store %arg16[%c0_57, %c0_58], %122 {strides = array<i32>} : memref<8x1024xbf16, #tpu.memory_space<vmem>>, vector<8x1024xbf16>,
    } else {
    }
    %c0 = arith.constant 0 : index
    %c0_1 = arith.constant 0 : index
    %3 = vector.load %arg16[%c0, %c0_1] : memref<8x1024xbf16, #tpu.memory_space<vmem>>, vector<8x1024xbf16>
    %c0_2 = arith.constant 0 : index
    %c0_3 = arith.constant 0 : index
    %4 = vector.load %arg13[%c0_2, %c0_3] : memref<1024x128xbf16, #tpu.memory_space<vmem>>, vector<1024x128xbf16>
    %cst = arith.constant dense<0.000000e+00> : vector<8x128xf32>
    %5 = tpu.matmul %3, %4, %cst {dimension_numbers = #tpu.dot_dimension_numbers<[1], [0], [0], [1], [0, 0, 1, 1], [], []>} : vector<8x1024xbf16>, vector<1024x128xbf16>, vector<8x128xf32> -> vector<8x128xf32>
    %c0_4 = arith.constant 0 : index
    %c0_5 = arith.constant 0 : index
    %6 = vector.load %arg14[%c0_4, %c0_5] : memref<1x128xf32, #tpu.memory_space<vmem>>, vector<1x128xf32>
    %7 = vector.broadcast %6 : vector<1x128xf32> to vector<8x128xf32>
    %8 = arith.addf %5, %7 : vector<8x128xf32>
    %cst_6 = arith.constant 0.000000e+00 : f32
    %9 = vector.broadcast %cst_6 : f32 to vector<8x128xf32>
    %10 = arith.subf %9, %8 : vector<8x128xf32>
    %11 = math.exp %10 : vector<8x128xf32>
    %cst_7 = arith.constant 1.000000e+00 : f32
    %12 = vector.broadcast %cst_7 : f32 to vector<8x128xf32>
    %13 = arith.addf %12, %11 : vector<8x128xf32>
    %14 = tpu.reciprocal %13 {approx = true} : vector<8x128xf32> -> vector<8x128xf32>
    %c0_8 = arith.constant 0 : index
    %c0_9 = arith.constant 0 : index
    %15 = vector.load %arg15[%c0_8, %c0_9] : memref<8x128xf32, #tpu.memory_space<vmem>>, vector<8x128xf32>
    tpu.vector_store %arg15[%c0_8, %c0_9], %14 {strides = array<i32>} : memref<8x128xf32, #tpu.memory_space<vmem>>, vector<8x128xf32>,
    return
  }
  func.func @transform_0(%arg0: i32) -> (i32, i32) {
    %c0_i32 = arith.constant 0 : i32
    %c0_i32_0 = arith.constant 0 : i32
    %c0_i32_1 = arith.constant 0 : i32
    return %c0_i32, %c0_i32_0 : i32, i32
  }
  func.func @transform_1(%arg0: i32) -> (i32, i32) {
    %c0_i32 = arith.constant 0 : i32
    %c0_i32_0 = arith.constant 0 : i32
    %c0_i32_1 = arith.constant 0 : i32
    return %c0_i32, %c0_i32_0 : i32, i32
  }
  func.func @transform_2(%arg0: i32) -> (i32, i32) {
    %c0_i32 = arith.constant 0 : i32
    %c0_i32_0 = arith.constant 0 : i32
    %c0_i32_1 = arith.constant 0 : i32
    return %c0_i32, %c0_i32_0 : i32, i32
  }
  func.func @transform_3(%arg0: i32) -> (i32, i32) {
    %c0_i32 = arith.constant 0 : i32
    %c0_i32_0 = arith.constant 0 : i32
    %c0_i32_1 = arith.constant 0 : i32
    return %c0_i32, %c0_i32_0 : i32, i32
  }
  func.func @transform_4(%arg0: i32) -> (i32, i32) {
    %c0_i32 = arith.constant 0 : i32
    %c0_i32_0 = arith.constant 0 : i32
    %c0_i32_1 = arith.constant 0 : i32
    return %c0_i32, %c0_i32_0 : i32, i32
  }
  func.func @transform_5(%arg0: i32) -> (i32, i32) {
    %c0_i32 = arith.constant 0 : i32
    %c0_i32_0 = arith.constant 0 : i32
    %c0_i32_1 = arith.constant 0 : i32
    return %c0_i32, %c0_i32_0 : i32, i32
  }
  func.func @transform_6(%arg0: i32) -> (i32, i32) {
    %c0_i32 = arith.constant 0 : i32
    %c0_i32_0 = arith.constant 0 : i32
    %c0_i32_1 = arith.constant 0 : i32
    return %c0_i32, %c0_i32_0 : i32, i32
  }
  func.func @transform_7(%arg0: i32) -> (i32, i32) {
    %c0_i32 = arith.constant 0 : i32
    %c0_i32_0 = arith.constant 0 : i32
    %c0_i32_1 = arith.constant 0 : i32
    return %c0_i32, %c0_i32_0 : i32, i32
  }
  func.func @transform_8(%arg0: i32) -> (i32, i32) {
    %c0_i32 = arith.constant 0 : i32
    %c0_i32_0 = arith.constant 0 : i32
    %c0_i32_1 = arith.constant 0 : i32
    return %c0_i32, %c0_i32_0 : i32, i32
  }
  func.func @transform_9(%arg0: i32) -> (i32, i32) {
    %c0_i32 = arith.constant 0 : i32
    %c0_i32_0 = arith.constant 0 : i32
    %c0_i32_1 = arith.constant 0 : i32
    return %c0_i32, %c0_i32_0 : i32, i32
  }
  func.func @transform_10(%arg0: i32) -> (i32, i32) {
    %c0_i32 = arith.constant 0 : i32
    %c0_i32_0 = arith.constant 0 : i32
    %c0_i32_1 = arith.constant 0 : i32
    return %c0_i32, %c0_i32_0 : i32, i32
  }
  func.func @transform_11(%arg0: i32) -> (i32, i32) {
    %c0_i32 = arith.constant 0 : i32
    %c0_i32_0 = arith.constant 0 : i32
    %c0_i32_1 = arith.constant 0 : i32
    return %c0_i32, %c0_i32_0 : i32, i32
  }
  func.func @transform_12(%arg0: i32) -> (i32, i32) {
    %c0_i32 = arith.constant 0 : i32
    %c0_i32_0 = arith.constant 0 : i32
    return %c0_i32, %arg0 : i32, i32
  }
  func.func @transform_13(%arg0: i32) -> (i32, i32) {
    %c0_i32 = arith.constant 0 : i32
    %c0_i32_0 = arith.constant 0 : i32
    return %c0_i32, %arg0 : i32, i32
  }
  func.func @transform_14(%arg0: i32) -> (i32, i32) {
    %c0_i32 = arith.constant 0 : i32
    %c0_i32_0 = arith.constant 0 : i32
    return %c0_i32, %arg0 : i32, i32
  }
}

</mosaic_0001>

<llo_original>
// kernel: generator_forward.1
$region0: #{generator_forward.1}
  #allocation0 [shape = 'u32[]', space=smem, size = 0x4, offset = 0x4, fixed_abs, tag = 'smem constant byte address 0x4 - core index']
  #allocation1 [shape = 'u32[144,128]{1,0:T(1,128)}', space=vmem, size = 0x12000, scoped, tag = 'internal scratch']
  #allocation2 [shape = 'bf16[8,1024]{1,0:T(8,128)(2,1)}', space=vmem, size = 0x4000, scoped, tag = 'scratch operand']
  %s0 = inlined_call_operand.vmem [shape: bf16[8,128], index: 0, kind: input, shape index: {}]
  %s1 = inlined_call_operand.vmem [shape: bf16[128,128], index: 1, kind: input, shape index: {}]
  %s2 = inlined_call_operand.vmem [shape: f32[1,128], index: 2, kind: input, shape index: {}]
  %s3 = inlined_call_operand.hbm [shape: bf16[128,256], index: 3, kind: input, shape index: {}]
  %s4 = inlined_call_operand.vmem [shape: f32[1,256], index: 4, kind: input, shape index: {}]
  %s5 = inlined_call_operand.hbm [shape: f32[1,256], index: 5, kind: input, shape index: {}]
  %s6 = inlined_call_operand.hbm [shape: bf16[256,512], index: 6, kind: input, shape index: {}]
  %s7 = inlined_call_operand.vmem [shape: f32[1,512], index: 7, kind: input, shape index: {}]
  %s8 = inlined_call_operand.hbm [shape: f32[1,512], index: 8, kind: input, shape index: {}]
  %s9 = inlined_call_operand.hbm [shape: bf16[512,1024], index: 9, kind: input, shape index: {}]
  %s10 = inlined_call_operand.vmem [shape: f32[1,1024], index: 10, kind: input, shape index: {}]
  %s11 = inlined_call_operand.vmem [shape: f32[1,1024], index: 11, kind: input, shape index: {}]
  %s12 = inlined_call_operand.hbm [shape: bf16[1024,256], index: 12, kind: input, shape index: {}]
  %s13 = inlined_call_operand.hbm [shape: f32[1,256], index: 13, kind: input, shape index: {}]
  %s14 = inlined_call_operand.vmem [shape: f32[8,256], index: 14, kind: output, shape index: {}]
  %s15 = sld [smem:[#allocation0]]
  $region121: #{generator_forward.1} parent=0
    _
  %s17 = ssub.s32 1, %s15
  %s18 = scalar_select 0, %s17, %s15
  $region1: #{generator_forward.1} parent=0
    #allocation3 [shape = 'u8[65536]{0}', space=vmem, size = 0x10000, scoped, tag = 'input window, operand 3, single buffered']
    #allocation4 [shape = 's32[2]{0}', space=sflag, size = 0x8, scoped, tag = 'scoped memory for generator_forward.1']
    #allocation5 [shape = 'u8[1024]{0}', space=vmem, size = 0x400, scoped, tag = 'input window, operand 5, single buffered']
    #allocation6 [shape = 's32[1]{0}', space=sflag, size = 0x4, scoped, tag = 'scoped memory for generator_forward.1']
    #allocation7 [shape = 'u8[262144]{0}', space=vmem, size = 0x40000, scoped, tag = 'input window, operand 6, single buffered']
    #allocation8 [shape = 'u8[2048]{0}', space=vmem, size = 0x800, scoped, tag = 'input window, operand 8, single buffered']
    #allocation9 [shape = 's32[1]{0}', space=sflag, size = 0x4, scoped, tag = 'scoped memory for generator_forward.1']
    #allocation10 [shape = 'u8[1048576]{0}', space=vmem, size = 0x100000, scoped, tag = 'input window, operand 9, single buffered']
    #allocation11 [shape = 'u8[524288]{0}', space=vmem, size = 0x80000, scoped, tag = 'input window, operand 12']
    #allocation12 [shape = 's32[2]{0}', space=sflag, size = 0x8, scoped, tag = 'scoped memory for generator_forward.1']
    #allocation13 [shape = 'u8[1024]{0}', space=vmem, size = 0x400, scoped, tag = 'input window, operand 13']
    %19 = vsyncpa [#allocation4], 0
    %20 = vsyncpa [#allocation6], 0
    %21 = vsyncpa [#allocation9], 0
    %22 = vsyncpa [#allocation12], 0
    %s23 = scalar_lea.sflag [#allocation12], 1
    %24 = vsyncpa %s23, 0
    loop: start=0, step=1, limit=4
    $region2: #{generator_forward.1} parent=1 // loop_pre_header
      _
    $region3: #{generator_forward.1} parent=1 // loop_header
      %s26 = sphi 0, %s30
      %p27 = scmp.ge.s32.totalorder %s26, 4
      %s34 = sphi 0, %s34
      %s36 = sphi 0, %s34
      %s37 = sphi 0, %s36
      %s51 = sphi 0, %s37
      %s55 = sphi 0, %s55
      %s57 = sphi 0, %s55
      %s58 = sphi 0, %s57
      %s72 = sphi 0, %s58
      %s76 = sphi 0, %s76
      %s78 = sphi 0, %s76
      %s79 = sphi 0, %s78
      %s93 = sphi 0, %s79
      %s97 = sphi 0, %s97
      %s99 = sphi 0, %s97
      %s100 = sphi 0, %s99
      %s114 = sphi 0, %s100
      %s118 = sphi 0, %s118
      %s120 = sphi 0, %s118
      %s121 = sphi 0, %s120
      %s135 = sphi 0, %s121
      %s139 = sphi 0, %s139
      %s141 = sphi 0, %s139
      %s142 = sphi 0, %s141
      %s156 = sphi 0, %s142
      %s160 = sphi 0, %s160
      %s162 = sphi 0, %s160
      %s163 = sphi 0, %s162
      %s177 = sphi 0, %s163
      %s181 = sphi 0, %s181
      %s183 = sphi 0, %s181
      %s184 = sphi 0, %s183
      %s198 = sphi 0, %s184
      %s202 = sphi 0, %s202
      %s204 = sphi 0, %s202
      %s205 = sphi 0, %s204
      %s219 = sphi 0, %s205
      %s223 = sphi 0, %s223
      %s225 = sphi 0, %s223
      %s226 = sphi 0, %s225
      %s240 = sphi 0, %s226
      %s244 = sphi 0, %s244
      %s246 = sphi 0, %s244
      %s247 = sphi 0, %s246
      %s261 = sphi 0, %s247
      %s265 = sphi 0, %s265
      %s267 = sphi 0, %s265
      %s268 = sphi 0, %s267
      %s282 = sphi 0, %s268
      %s288 = sphi 0, %s290
      %s291 = sphi 0, %s288
      %s292 = sphi 0, %s291
      %s308 = sphi 0, %s292
      %s314 = sphi 0, %s316
      %s317 = sphi 0, %s314
      %s318 = sphi 0, %s317
      %s334 = sphi 0, %s318
      %s340 = sphi 0, %s342
      %s343 = sphi 0, %s340
      %s344 = sphi 0, %s343
      %s360 = sphi 0, %s344
    $region4: #{generator_forward.1} parent=1 // loop_header_branch
      %29 = sbr.rel (%p27) target = $region8
    $region5: #{generator_forward.1} parent=1 // loop_body
      %s31 = ssub.s32 %s26, 1
      %s32 = ssub.s32 %s26, 2
      %s33 = sadd.s32 %s26, 1
      %s35 = sadd.s32 %s34, 1
      %p38 = scmp.eq.s32.totalorder %s26, 1
      %p39 = scmp.ne.s32.totalorder %s34, %s36
      %p40 = scmp.eq.s32.totalorder %s26, 0
      %p41 = por %p39, %p40
      %p42 = scmp.ne.s32.totalorder %s34, %s36
      %p43 = scmp.eq.s32.totalorder %s31, 1
      %p44 = por %p42, %p43
      %p45 = scmp.ne.s32.totalorder %s36, %s37
      %p46 = scmp.eq.s32.totalorder %s31, 0
      %p47 = por %p45, %p46
      %p48 = scmp.ne.s32.totalorder %s36, %s37
      %p49 = scmp.eq.s32.totalorder %s32, 1
      %p50 = por %p48, %p49
      %p52 = scmp.ne.s32.totalorder %s37, %s51
      %p53 = scmp.eq.s32.totalorder %s32, 0
      %p54 = por %p52, %p53
      %s56 = sadd.s32 %s55, 1
      %p59 = scmp.eq.s32.totalorder %s26, 1
      %p60 = scmp.ne.s32.totalorder %s55, %s57
      %p61 = scmp.eq.s32.totalorder %s26, 0
      %p62 = por %p60, %p61
      %p63 = scmp.ne.s32.totalorder %s55, %s57
      %p64 = scmp.eq.s32.totalorder %s31, 1
      %p65 = por %p63, %p64
      %p66 = scmp.ne.s32.totalorder %s57, %s58
      %p67 = scmp.eq.s32.totalorder %s31, 0
      %p68 = por %p66, %p67
      %p69 = scmp.ne.s32.totalorder %s57, %s58
      %p70 = scmp.eq.s32.totalorder %s32, 1
      %p71 = por %p69, %p70
      %p73 = scmp.ne.s32.totalorder %s58, %s72
      %p74 = scmp.eq.s32.totalorder %s32, 0
      %p75 = por %p73, %p74
      %s77 = sadd.s32 %s76, 1
      %p80 = scmp.eq.s32.totalorder %s26, 1
      %p81 = scmp.ne.s32.totalorder %s76, %s78
      %p82 = scmp.eq.s32.totalorder %s26, 0
      %p83 = por %p81, %p82
      %p84 = scmp.ne.s32.totalorder %s76, %s78
      %p85 = scmp.eq.s32.totalorder %s31, 1
      %p86 = por %p84, %p85
      %p87 = scmp.ne.s32.totalorder %s78, %s79
      %p88 = scmp.eq.s32.totalorder %s31, 0
      %p89 = por %p87, %p88
      %p90 = scmp.ne.s32.totalorder %s78, %s79
      %p91 = scmp.eq.s32.totalorder %s32, 1
      %p92 = por %p90, %p91
      %p94 = scmp.ne.s32.totalorder %s79, %s93
      %p95 = scmp.eq.s32.totalorder %s32, 0
      %p96 = por %p94, %p95
      %s98 = sadd.s32 %s97, 1
      %p101 = scmp.eq.s32.totalorder %s26, 1
      %p102 = scmp.ne.s32.totalorder %s97, %s99
      %p103 = scmp.eq.s32.totalorder %s26, 0
      %p104 = por %p102, %p103
      %p105 = scmp.ne.s32.totalorder %s97, %s99
      %p106 = scmp.eq.s32.totalorder %s31, 1
      %p107 = por %p105, %p106
      %p108 = scmp.ne.s32.totalorder %s99, %s100
      %p109 = scmp.eq.s32.totalorder %s31, 0
      %p110 = por %p108, %p109
      %p111 = scmp.ne.s32.totalorder %s99, %s100
      %p112 = scmp.eq.s32.totalorder %s32, 1
      %p113 = por %p111, %p112
      %p115 = scmp.ne.s32.totalorder %s100, %s114
      %p116 = scmp.eq.s32.totalorder %s32, 0
      %p117 = por %p115, %p116
      %s119 = sadd.s32 %s118, 1
      %p122 = scmp.eq.s32.totalorder %s26, 1
      %p123 = scmp.ne.s32.totalorder %s118, %s120
      %p124 = scmp.eq.s32.totalorder %s26, 0
      %p125 = por %p123, %p124
      %p126 = scmp.ne.s32.totalorder %s118, %s120
      %p127 = scmp.eq.s32.totalorder %s31, 1
      %p128 = por %p126, %p127
      %p129 = scmp.ne.s32.totalorder %s120, %s121
      %p130 = scmp.eq.s32.totalorder %s31, 0
      %p131 = por %p129, %p130
      %p132 = scmp.ne.s32.totalorder %s120, %s121
      %p133 = scmp.eq.s32.totalorder %s32, 1
      %p134 = por %p132, %p133
      %p136 = scmp.ne.s32.totalorder %s121, %s135
      %p137 = scmp.eq.s32.totalorder %s32, 0
      %p138 = por %p136, %p137
      %s140 = sadd.s32 %s139, 1
      %p143 = scmp.eq.s32.totalorder %s26, 1
      %p144 = scmp.ne.s32.totalorder %s139, %s141
      %p145 = scmp.eq.s32.totalorder %s26, 0
      %p146 = por %p144, %p145
      %p147 = scmp.ne.s32.totalorder %s139, %s141
      %p148 = scmp.eq.s32.totalorder %s31, 1
      %p149 = por %p147, %p148
      %p150 = scmp.ne.s32.totalorder %s141, %s142
      %p151 = scmp.eq.s32.totalorder %s31, 0
      %p152 = por %p150, %p151
      %p153 = scmp.ne.s32.totalorder %s141, %s142
      %p154 = scmp.eq.s32.totalorder %s32, 1
      %p155 = por %p153, %p154
      %p157 = scmp.ne.s32.totalorder %s142, %s156
      %p158 = scmp.eq.s32.totalorder %s32, 0
      %p159 = por %p157, %p158
      %s161 = sadd.s32 %s160, 1
      %p164 = scmp.eq.s32.totalorder %s26, 1
      %p165 = scmp.ne.s32.totalorder %s160, %s162
      %p166 = scmp.eq.s32.totalorder %s26, 0
      %p167 = por %p165, %p166
      %p168 = scmp.ne.s32.totalorder %s160, %s162
      %p169 = scmp.eq.s32.totalorder %s31, 1
      %p170 = por %p168, %p169
      %p171 = scmp.ne.s32.totalorder %s162, %s163
      %p172 = scmp.eq.s32.totalorder %s31, 0
      %p173 = por %p171, %p172
      %p174 = scmp.ne.s32.totalorder %s162, %s163
      %p175 = scmp.eq.s32.totalorder %s32, 1
      %p176 = por %p174, %p175
      %p178 = scmp.ne.s32.totalorder %s163, %s177
      %p179 = scmp.eq.s32.totalorder %s32, 0
      %p180 = por %p178, %p179
      %s182 = sadd.s32 %s181, 1
      %p185 = scmp.eq.s32.totalorder %s26, 1
      %p186 = scmp.ne.s32.totalorder %s181, %s183
      %p187 = scmp.eq.s32.totalorder %s26, 0
      %p188 = por %p186, %p187
      %p189 = scmp.ne.s32.totalorder %s181, %s183
      %p190 = scmp.eq.s32.totalorder %s31, 1
      %p191 = por %p189, %p190
      %p192 = scmp.ne.s32.totalorder %s183, %s184
      %p193 = scmp.eq.s32.totalorder %s31, 0
      %p194 = por %p192, %p193
      %p195 = scmp.ne.s32.totalorder %s183, %s184
      %p196 = scmp.eq.s32.totalorder %s32, 1
      %p197 = por %p195, %p196
      %p199 = scmp.ne.s32.totalorder %s184, %s198
      %p200 = scmp.eq.s32.totalorder %s32, 0
      %p201 = por %p199, %p200
      %s203 = sadd.s32 %s202, 1
      %p206 = scmp.eq.s32.totalorder %s26, 1
      %p207 = scmp.ne.s32.totalorder %s202, %s204
      %p208 = scmp.eq.s32.totalorder %s26, 0
      %p209 = por %p207, %p208
      %p210 = scmp.ne.s32.totalorder %s202, %s204
      %p211 = scmp.eq.s32.totalorder %s31, 1
      %p212 = por %p210, %p211
      %p213 = scmp.ne.s32.totalorder %s204, %s205
      %p214 = scmp.eq.s32.totalorder %s31, 0
      %p215 = por %p213, %p214
      %p216 = scmp.ne.s32.totalorder %s204, %s205
      %p217 = scmp.eq.s32.totalorder %s32, 1
      %p218 = por %p216, %p217
      %p220 = scmp.ne.s32.totalorder %s205, %s219
      %p221 = scmp.eq.s32.totalorder %s32, 0
      %p222 = por %p220, %p221
      %s224 = sadd.s32 %s223, 1
      %p227 = scmp.eq.s32.totalorder %s26, 1
      %p228 = scmp.ne.s32.totalorder %s223, %s225
      %p229 = scmp.eq.s32.totalorder %s26, 0
      %p230 = por %p228, %p229
      %p231 = scmp.ne.s32.totalorder %s223, %s225
      %p232 = scmp.eq.s32.totalorder %s31, 1
      %p233 = por %p231, %p232
      %p234 = scmp.ne.s32.totalorder %s225, %s226
      %p235 = scmp.eq.s32.totalorder %s31, 0
      %p236 = por %p234, %p235
      %p237 = scmp.ne.s32.totalorder %s225, %s226
      %p238 = scmp.eq.s32.totalorder %s32, 1
      %p239 = por %p237, %p238
      %p241 = scmp.ne.s32.totalorder %s226, %s240
      %p242 = scmp.eq.s32.totalorder %s32, 0
      %p243 = por %p241, %p242
      %s245 = sadd.s32 %s244, 1
      %p248 = scmp.eq.s32.totalorder %s26, 1
      %p249 = scmp.ne.s32.totalorder %s244, %s246
      %p250 = scmp.eq.s32.totalorder %s26, 0
      %p251 = por %p249, %p250
      %p252 = scmp.ne.s32.totalorder %s244, %s246
      %p253 = scmp.eq.s32.totalorder %s31, 1
      %p254 = por %p252, %p253
      %p255 = scmp.ne.s32.totalorder %s246, %s247
      %p256 = scmp.eq.s32.totalorder %s31, 0
      %p257 = por %p255, %p256
      %p258 = scmp.ne.s32.totalorder %s246, %s247
      %p259 = scmp.eq.s32.totalorder %s32, 1
      %p260 = por %p258, %p259
      %p262 = scmp.ne.s32.totalorder %s247, %s261
      %p263 = scmp.eq.s32.totalorder %s32, 0
      %p264 = por %p262, %p263
      %s266 = sadd.s32 %s265, 1
      %p269 = scmp.eq.s32.totalorder %s26, 1
      %p270 = scmp.ne.s32.totalorder %s265, %s267
      %p271 = scmp.eq.s32.totalorder %s26, 0
      %p272 = por %p270, %p271
      %p273 = scmp.ne.s32.totalorder %s265, %s267
      %p274 = scmp.eq.s32.totalorder %s31, 1
      %p275 = por %p273, %p274
      %p276 = scmp.ne.s32.totalorder %s267, %s268
      %p277 = scmp.eq.s32.totalorder %s31, 0
      %p278 = por %p276, %p277
      %p279 = scmp.ne.s32.totalorder %s267, %s268
      %p280 = scmp.eq.s32.totalorder %s32, 1
      %p281 = por %p279, %p280
      %p283 = scmp.ne.s32.totalorder %s268, %s282
      %p284 = scmp.eq.s32.totalorder %s32, 0
      %p285 = por %p283, %p284
      %s286 = ssub.s32 %s26, %s33
      %p287 = scmp.eq.s32.totalorder %s286, 0
      %s289 = sadd.s32 %s288, 1
      %s290 = scalar_select %p287, %s288, %s289
      %p293 = pneg %p287
      %p294 = scmp.eq.s32.totalorder %s26, 1
      %p295 = por %p293, %p294
      %p296 = scmp.ne.s32.totalorder %s288, %s291
      %p297 = scmp.eq.s32.totalorder %s26, 0
      %p298 = por %p296, %p297
      %p299 = scmp.ne.s32.totalorder %s288, %s291
      %p300 = scmp.eq.s32.totalorder %s31, 1
      %p301 = por %p299, %p300
      %p302 = scmp.ne.s32.totalorder %s291, %s292
      %p303 = scmp.eq.s32.totalorder %s31, 0
      %p304 = por %p302, %p303
      %p305 = scmp.ne.s32.totalorder %s291, %s292
      %p306 = scmp.eq.s32.totalorder %s32, 1
      %p307 = por %p305, %p306
      %p309 = scmp.ne.s32.totalorder %s292, %s308
      %p310 = scmp.eq.s32.totalorder %s32, 0
      %p311 = por %p309, %p310
      %s312 = ssub.s32 %s26, %s33
      %p313 = scmp.eq.s32.totalorder %s312, 0
      %s315 = sadd.s32 %s314, 1
      %s316 = scalar_select %p313, %s314, %s315
      %p319 = pneg %p313
      %p320 = scmp.eq.s32.totalorder %s26, 1
      %p321 = por %p319, %p320
      %p322 = scmp.ne.s32.totalorder %s314, %s317
      %p323 = scmp.eq.s32.totalorder %s26, 0
      %p324 = por %p322, %p323
      %p325 = scmp.ne.s32.totalorder %s314, %s317
      %p326 = scmp.eq.s32.totalorder %s31, 1
      %p327 = por %p325, %p326
      %p328 = scmp.ne.s32.totalorder %s317, %s318
      %p329 = scmp.eq.s32.totalorder %s31, 0
      %p330 = por %p328, %p329
      %p331 = scmp.ne.s32.totalorder %s317, %s318
      %p332 = scmp.eq.s32.totalorder %s32, 1
      %p333 = por %p331, %p332
      %p335 = scmp.ne.s32.totalorder %s318, %s334
      %p336 = scmp.eq.s32.totalorder %s32, 0
      %p337 = por %p335, %p336
      %s338 = ssub.s32 %s26, %s33
      %p339 = scmp.eq.s32.totalorder %s338, 0
      %s341 = sadd.s32 %s340, 1
      %s342 = scalar_select %p339, %s340, %s341
      %p345 = pneg %p339
      %p346 = scmp.eq.s32.totalorder %s26, 1
      %p347 = por %p345, %p346
      %p348 = scmp.ne.s32.totalorder %s340, %s343
      %p349 = scmp.eq.s32.totalorder %s26, 0
      %p350 = por %p348, %p349
      %p351 = scmp.ne.s32.totalorder %s340, %s343
      %p352 = scmp.eq.s32.totalorder %s31, 1
      %p353 = por %p351, %p352
      %p354 = scmp.ne.s32.totalorder %s343, %s344
      %p355 = scmp.eq.s32.totalorder %s31, 0
      %p356 = por %p354, %p355
      %p357 = scmp.ne.s32.totalorder %s343, %s344
      %p358 = scmp.eq.s32.totalorder %s32, 1
      %p359 = por %p357, %p358
      %p361 = scmp.ne.s32.totalorder %s344, %s360
      %p362 = scmp.eq.s32.totalorder %s32, 0
      %p363 = por %p361, %p362
      %p364 = scmp.le.s32.totalorder 1, %s26
      %p365 = scmp.lt.s32.totalorder %s26, 3
      %p366 = pnand %p364, %p365
      %p367 = pneg %p366
      // Predicated region
      $region9: #{generator_forward.1} parent=5 // pred_check
        _
      $region10: #{generator_forward.1} parent=5 // pred_check_branch
        %369 = sbr.rel (%p366) target = $region12
      $region11: #{generator_forward.1} parent=5 // pred_region
        %s370 = ssub.s32 %s26, 1
        // Predicated region
        $region13: #{generator_forward.1} parent=11 // pred_check
          %p371 = pneg %p47
        $region14: #{generator_forward.1} parent=11 // pred_check_branch
          %373 = sbr.rel (%p371) target = $region16
        $region15: #{generator_forward.1} parent=11 // pred_region
          _
        $region16: #{generator_forward.1} parent=11 // pred_fallthru
          _
        // Predicated region
        $region17: #{generator_forward.1} parent=11 // pred_check
          %p374 = pneg %p68
        $region18: #{generator_forward.1} parent=11 // pred_check_branch
          %376 = sbr.rel (%p374) target = $region20
        $region19: #{generator_forward.1} parent=11 // pred_region
          _
        $region20: #{generator_forward.1} parent=11 // pred_fallthru
          _
        // Predicated region
        $region21: #{generator_forward.1} parent=11 // pred_check
          %p377 = pneg %p89
        $region22: #{generator_forward.1} parent=11 // pred_check_branch
          %379 = sbr.rel (%p377) target = $region24
        $region23: #{generator_forward.1} parent=11 // pred_region
          _
        $region24: #{generator_forward.1} parent=11 // pred_fallthru
          _
        // Predicated region
        $region25: #{generator_forward.1} parent=11 // pred_check
          %p380 = pneg %p110
        $region26: #{generator_forward.1} parent=11 // pred_check_branch
          %382 = sbr.rel (%p380) target = $region28
        $region27: #{generator_forward.1} parent=11 // pred_region
          %s384 = ssub.s32 2048, 2048
          %385 = vsyncadd [#allocation4], %s384
          %s386 = sshll.u32 [#allocation3], 4
          %s387 = int_to_ptr.vmem [resolvable:$true] %s386
          %392 = dma.hbm_to_vmem [thread:$0]  %s3, 2048, %s387, [#allocation4], 128, 128, 8
        $region28: #{generator_forward.1} parent=11 // pred_fallthru
          _
        // Predicated region
        $region29: #{generator_forward.1} parent=11 // pred_check
          %p393 = pneg %p131
        $region30: #{generator_forward.1} parent=11 // pred_check_branch
          %395 = sbr.rel (%p393) target = $region32
        $region31: #{generator_forward.1} parent=11 // pred_region
          _
        $region32: #{generator_forward.1} parent=11 // pred_fallthru
          _
        // Predicated region
        $region33: #{generator_forward.1} parent=11 // pred_check
          %p396 = pneg %p152
        $region34: #{generator_forward.1} parent=11 // pred_check_branch
          %398 = sbr.rel (%p396) target = $region36
        $region35: #{generator_forward.1} parent=11 // pred_region
          %s400 = ssub.s32 32, 32
          %401 = vsyncadd [#allocation6], %s400
          %s403 = sshll.u32 [#allocation5], 4
          %s404 = int_to_ptr.vmem [resolvable:$true] %s403
          %406 = dma.hbm_to_vmem [thread:$0]  %s5, 32, %s404, [#allocation6]
        $region36: #{generator_forward.1} parent=11 // pred_fallthru
          _
        // Predicated region
        $region37: #{generator_forward.1} parent=11 // pred_check
          %p407 = pneg %p173
        $region38: #{generator_forward.1} parent=11 // pred_check_branch
          %409 = sbr.rel (%p407) target = $region40
        $region39: #{generator_forward.1} parent=11 // pred_region
          %s411 = ssub.s32 8192, 8192
          %412 = vsyncadd [#allocation6], %s411
          %s413 = sshll.u32 [#allocation7], 4
          %s414 = int_to_ptr.vmem [resolvable:$true] %s413
          %419 = dma.hbm_to_vmem [thread:$0]  %s6, 8192, %s414, [#allocation6], 256, 256, 16
        $region40: #{generator_forward.1} parent=11 // pred_fallthru
          _
        // Predicated region
        $region41: #{generator_forward.1} parent=11 // pred_check
          %p420 = pneg %p194
        $region42: #{generator_forward.1} parent=11 // pred_check_branch
          %422 = sbr.rel (%p420) target = $region44
        $region43: #{generator_forward.1} parent=11 // pred_region
          _
        $region44: #{generator_forward.1} parent=11 // pred_fallthru
          _
        // Predicated region
        $region45: #{generator_forward.1} parent=11 // pred_check
          %p423 = pneg %p215
        $region46: #{generator_forward.1} parent=11 // pred_check_branch
          %425 = sbr.rel (%p423) target = $region48
        $region47: #{generator_forward.1} parent=11 // pred_region
          %s427 = ssub.s32 64, 64
          %428 = vsyncadd [#allocation9], %s427
          %s430 = sshll.u32 [#allocation8], 4
          %s431 = int_to_ptr.vmem [resolvable:$true] %s430
          %433 = dma.hbm_to_vmem [thread:$0]  %s8, 64, %s431, [#allocation9]
        $region48: #{generator_forward.1} parent=11 // pred_fallthru
          _
        // Predicated region
        $region49: #{generator_forward.1} parent=11 // pred_check
          %p434 = pneg %p236
        $region50: #{generator_forward.1} parent=11 // pred_check_branch
          %436 = sbr.rel (%p434) target = $region52
        $region51: #{generator_forward.1} parent=11 // pred_region
          %s438 = ssub.s32 32768, 32768
          %439 = vsyncadd [#allocation9], %s438
          %s440 = sshll.u32 [#allocation10], 4
          %s441 = int_to_ptr.vmem [resolvable:$true] %s440
          %446 = dma.hbm_to_vmem [thread:$0]  %s9, 32768, %s441, [#allocation9], 512, 512, 32
        $region52: #{generator_forward.1} parent=11 // pred_fallthru
          _
        // Predicated region
        $region53: #{generator_forward.1} parent=11 // pred_check
          %p447 = pneg %p257
        $region54: #{generator_forward.1} parent=11 // pred_check_branch
          %449 = sbr.rel (%p447) target = $region56
        $region55: #{generator_forward.1} parent=11 // pred_region
          _
        $region56: #{generator_forward.1} parent=11 // pred_fallthru
          _
        // Predicated region
        $region57: #{generator_forward.1} parent=11 // pred_check
          %p450 = pneg %p278
        $region58: #{generator_forward.1} parent=11 // pred_check_branch
          %452 = sbr.rel (%p450) target = $region60
        $region59: #{generator_forward.1} parent=11 // pred_region
          _
        $region60: #{generator_forward.1} parent=11 // pred_fallthru
          _
      $region12: #{generator_forward.1} parent=5 // pred_fallthru
        _
      %p453 = scmp.lt.s32.totalorder %s26, 2
      // Predicated region
      $region61: #{generator_forward.1} parent=5 // pred_check
        %p454 = pneg %p453
      $region62: #{generator_forward.1} parent=5 // pred_check_branch
        %456 = sbr.rel (%p454) target = $region64
      $region63: #{generator_forward.1} parent=5 // pred_region
        // Predicated region
        $region65: #{generator_forward.1} parent=63 // pred_check
          %p457 = pneg %p298
        $region66: #{generator_forward.1} parent=63 // pred_check_branch
          %459 = sbr.rel (%p457) target = $region68
        $region67: #{generator_forward.1} parent=63 // pred_region
          %s460 = sand.u32 %s26, 1
          %s461 = scalar_lea.sflag [#allocation12], %s460
          %s462 = sand.u32 %s288, 1
          %s463 = smul.addr %s462, 512
          %s464 = scalar_lea.vmem [#allocation11], %s463
          %s466 = ssub.s32 8192, 8192
          %467 = vsyncadd %s461, %s466
          %s468 = smul.addr %s26, 64
          %s469 = scalar_lea.hbm %s12, %s468
          %s470 = sshll.u32 %s464, 4
          %s471 = int_to_ptr.vmem [resolvable:$true] %s470
          %476 = dma.hbm_to_vmem [thread:$0]  %s469, 8192, %s471, %s461, 128, 64, 4
        $region68: #{generator_forward.1} parent=63 // pred_fallthru
          _
        // Predicated region
        $region69: #{generator_forward.1} parent=63 // pred_check
          %p477 = pneg %p324
        $region70: #{generator_forward.1} parent=63 // pred_check_branch
          %479 = sbr.rel (%p477) target = $region72
        $region71: #{generator_forward.1} parent=63 // pred_region
          %s480 = sand.u32 %s26, 1
          %s481 = scalar_lea.sflag [#allocation12], %s480
          %s482 = sand.u32 %s314, 1
          %s483 = scalar_lea.vmem [#allocation13], %s482
          %s485 = ssub.s32 16, 16
          %486 = vsyncadd %s481, %s485
          %s487 = smul.addr %s26, 16
          %s488 = scalar_lea.hbm %s13, %s487
          %s490 = sshll.u32 %s483, 4
          %s491 = int_to_ptr.vmem [resolvable:$true] %s490
          %493 = dma.hbm_to_vmem [thread:$0]  %s488, 16, %s491, %s481
        $region72: #{generator_forward.1} parent=63 // pred_fallthru
          _
      $region64: #{generator_forward.1} parent=5 // pred_fallthru
        _
      %p494 = scmp.le.s32.totalorder 1, %s26
      %p495 = scmp.lt.s32.totalorder %s26, 3
      %p496 = pnand %p494, %p495
      %p497 = pneg %p496
      // Predicated region
      $region73: #{generator_forward.1} parent=5 // pred_check
        _
      $region74: #{generator_forward.1} parent=5 // pred_check_branch
        %499 = sbr.rel (%p496) target = $region76
      $region75: #{generator_forward.1} parent=5 // pred_region
        %s500 = ssub.s32 %s26, 1
        // Predicated region
        $region77: #{generator_forward.1} parent=75 // pred_check
          %p501 = pneg %p110
        $region78: #{generator_forward.1} parent=75 // pred_check_branch
          %503 = sbr.rel (%p501) target = $region80
        $region79: #{generator_forward.1} parent=75 // pred_region
          %504 = dma.done [#allocation4], 2048
        $region80: #{generator_forward.1} parent=75 // pred_fallthru
          _
        // Predicated region
        $region81: #{generator_forward.1} parent=75 // pred_check
          %p505 = pneg %p152
        $region82: #{generator_forward.1} parent=75 // pred_check_branch
          %507 = sbr.rel (%p505) target = $region84
        $region83: #{generator_forward.1} parent=75 // pred_region
          %508 = dma.done [#allocation6], 32
        $region84: #{generator_forward.1} parent=75 // pred_fallthru
          _
        // Predicated region
        $region85: #{generator_forward.1} parent=75 // pred_check
          %p509 = pneg %p173
        $region86: #{generator_forward.1} parent=75 // pred_check_branch
          %511 = sbr.rel (%p509) target = $region88
        $region87: #{generator_forward.1} parent=75 // pred_region
          %512 = dma.done [#allocation6], 8192
        $region88: #{generator_forward.1} parent=75 // pred_fallthru
          _
        // Predicated region
        $region89: #{generator_forward.1} parent=75 // pred_check
          %p513 = pneg %p215
        $region90: #{generator_forward.1} parent=75 // pred_check_branch
          %515 = sbr.rel (%p513) target = $region92
        $region91: #{generator_forward.1} parent=75 // pred_region
          %516 = dma.done [#allocation9], 64
        $region92: #{generator_forward.1} parent=75 // pred_fallthru
          _
        // Predicated region
        $region93: #{generator_forward.1} parent=75 // pred_check
          %p517 = pneg %p236
        $region94: #{generator_forward.1} parent=75 // pred_check_branch
          %519 = sbr.rel (%p517) target = $region96
        $region95: #{generator_forward.1} parent=75 // pred_region
          %520 = dma.done [#allocation9], 32768
        $region96: #{generator_forward.1} parent=75 // pred_fallthru
          _
        %s521 = sand.u32 %s31, 1
        %s522 = scalar_lea.sflag [#allocation12], %s521
        %s523 = sand.u32 %s291, 1
        %s524 = smul.addr %s523, 512
        %s525 = scalar_lea.vmem [#allocation11], %s524
        // Predicated region
        $region97: #{generator_forward.1} parent=75 // pred_check
          %p526 = pneg %p304
        $region98: #{generator_forward.1} parent=75 // pred_check_branch
          %528 = sbr.rel (%p526) target = $region100
        $region99: #{generator_forward.1} parent=75 // pred_region
          %529 = dma.done %s522, 8192
        $region100: #{generator_forward.1} parent=75 // pred_fallthru
          _
        %s530 = sand.u32 %s31, 1
        %s531 = scalar_lea.sflag [#allocation12], %s530
        %s532 = sand.u32 %s317, 1
        %s533 = scalar_lea.vmem [#allocation13], %s532
        // Predicated region
        $region101: #{generator_forward.1} parent=75 // pred_check
          %p534 = pneg %p330
        $region102: #{generator_forward.1} parent=75 // pred_check_branch
          %536 = sbr.rel (%p534) target = $region104
        $region103: #{generator_forward.1} parent=75 // pred_region
          %537 = dma.done %s531, 16
        $region104: #{generator_forward.1} parent=75 // pred_fallthru
          _
        %p538 = pneg %p47
        %p539 = pneg %p44
        %p540 = pneg %p68
        %p541 = pneg %p65
        %p542 = pneg %p89
        %p543 = pneg %p86
        %p544 = pneg %p110
        %p545 = pneg %p107
        %p546 = pneg %p131
        %p547 = pneg %p128
        %p548 = pneg %p152
        %p549 = pneg %p149
        %p550 = pneg %p173
        %p551 = pneg %p170
        %p552 = pneg %p194
        %p553 = pneg %p191
        %p554 = pneg %p215
        %p555 = pneg %p212
        %p556 = pneg %p236
        %p557 = pneg %p233
        %p558 = pneg %p257
        %p559 = pneg %p254
        %p560 = pneg %p278
        %p561 = pneg %p275
        %s562 = sand.u32 %s31, 1
        %s563 = scalar_lea.sflag [#allocation12], %s562
        %s564 = sand.u32 %s291, 1
        %s565 = smul.addr %s564, 512
        %s566 = scalar_lea.vmem [#allocation11], %s565
        %p567 = pneg %p304
        %p568 = pneg %p301
        %s569 = sand.u32 %s31, 1
        %s570 = scalar_lea.sflag [#allocation12], %s569
        %s571 = sand.u32 %s317, 1
        %s572 = scalar_lea.vmem [#allocation13], %s571
        %p573 = pneg %p330
        %p574 = pneg %p327
        %p575 = pneg %p356
        %p576 = pneg %p353
        %p577 = scmp.lt.s32.totalorder %s31, 1
        %s578 = scalar_select %p577, %s31, 1
        %s579 = smul.addr %s578, 8
        %s580 = scalar_lea.vmem %s14, %s579
        %p581 = scmp.lt.s32.totalorder %s31, 1
        %s582 = scalar_select %p581, %s31, 1
        %s583 = smul.addr %s582, 8
        %s584 = scalar_lea.vmem %s14, %s583
        %p586 = scmp.eq.s32.totalorder %s31, 0
        // Predicated region
        $region105: #{generator_forward.1} parent=75 // pred_check
          %p587 = pneg %p586
        $region106: #{generator_forward.1} parent=75 // pred_check_branch
          %589 = sbr.rel (%p587) target = $region108
        $region107: #{generator_forward.1} parent=75 // pred_region
          %v590 = vld [vmem:[%s0] sm:$0xf]
          %v591 = vlaneseq
          %v592 = vshrl.u32 %v591, 7
          %vm593 = vcmp.lt.s32.totalorder %v592, 4
          %v594 = vsel %vm593, 1, 0
          %v595 = vcvt.s32.f32 %v594
          %v596 = vld [vmem:[%s1] sm:$0xf]
          %v597 = vld [vmem:[%s1 + $0x4] sm:$0xf]
          %v598 = vld [vmem:[%s1 + $0x8] sm:$0xf]
          %v599 = vld [vmem:[%s1 + $0xc] sm:$0xf]
          %v600 = vld [vmem:[%s1 + $0x10] sm:$0xf]
          %v601 = vld [vmem:[%s1 + $0x14] sm:$0xf]
          %v602 = vld [vmem:[%s1 + $0x18] sm:$0xf]
          %v603 = vld [vmem:[%s1 + $0x1c] sm:$0xf]
          %v604 = vld [vmem:[%s1 + $0x20] sm:$0xf]
          %v605 = vld [vmem:[%s1 + $0x24] sm:$0xf]
          %v606 = vld [vmem:[%s1 + $0x28] sm:$0xf]
          %v607 = vld [vmem:[%s1 + $0x2c] sm:$0xf]
          %v608 = vld [vmem:[%s1 + $0x30] sm:$0xf]
          %v609 = vld [vmem:[%s1 + $0x34] sm:$0xf]
          %v610 = vld [vmem:[%s1 + $0x38] sm:$0xf]
          %v611 = vld [vmem:[%s1 + $0x3c] sm:$0xf]
          %v612 = vld [vmem:[%s2] sm:$0x1]
          %v614 = vlaneseq
          %v615 = vshrl.u32 %v614, 7
          %v616 = vsub.s32 0, %v615
          %v617 = vrot.slane %v612, %v616
          %v635 = vunpack.c.l.b16 %v596
          %v636 = vunpack.c.l.b16 %v597
          %v637 = vunpack.c.l.b16 %v598
          %v638 = vunpack.c.l.b16 %v599
          %v639 = vunpack.c.l.b16 %v600
          %v640 = vunpack.c.l.b16 %v601
          %v641 = vunpack.c.l.b16 %v602
          %v642 = vunpack.c.l.b16 %v603
          %v643 = vunpack.c.l.b16 %v604
          %v644 = vunpack.c.l.b16 %v605
          %v645 = vunpack.c.l.b16 %v606
          %v646 = vunpack.c.l.b16 %v607
          %v647 = vunpack.c.l.b16 %v608
          %v648 = vunpack.c.l.b16 %v609
          %v649 = vunpack.c.l.b16 %v610
          %v650 = vunpack.c.l.b16 %v611
          %v651 = vpack.c.b16 %v636, %v635
          %v652 = vpack.c.b16 %v638, %v637
          %v653 = vpack.c.b16 %v640, %v639
          %v654 = vpack.c.b16 %v642, %v641
          %v655 = vpack.c.b16 %v644, %v643
          %v656 = vpack.c.b16 %v646, %v645
          %v657 = vpack.c.b16 %v648, %v647
          %v658 = vpack.c.b16 %v650, %v649
          %667 = vmatprep.subr.bf16.mxu0 0
          %668 = vmatpush1.bf16.msra.mxu0 %v651
          %669 = vmatprep.subr.bf16.mxu0 0
          %670 = vmatpush1.bf16.msra.mxu0 %v652
          %671 = vmatprep.subr.bf16.mxu0 0
          %672 = vmatpush1.bf16.msra.mxu0 %v653
          %673 = vmatprep.subr.bf16.mxu0 0
          %674 = vmatpush1.bf16.msra.mxu0 %v654
          %675 = vmatprep.subr.bf16.mxu0 0
          %676 = vmatpush1.bf16.msra.mxu0 %v655
          %677 = vmatprep.subr.bf16.mxu0 0
          %678 = vmatpush1.bf16.msra.mxu0 %v656
          %679 = vmatprep.subr.bf16.mxu0 0
          %680 = vmatpush1.bf16.msra.mxu0 %v657
          %681 = vmatprep.subr.bf16.mxu0 0
          %682 = vmatpush1.bf16.msra.mxu0 %v658
          %683 = vmatprep.subr.bf16.mxu0 0
          %684 = vmatpush1.bf16.msra.mxu0 0
          %685 = vmatprep.subr.bf16.mxu0 0
          %686 = vmatpush1.bf16.msra.mxu0 0
          %687 = vmatprep.subr.bf16.mxu0 0
          %688 = vmatpush1.bf16.msra.mxu0 0
          %689 = vmatprep.subr.bf16.mxu0 0
          %690 = vmatpush1.bf16.msra.mxu0 0
          %691 = vmatprep.subr.bf16.mxu0 0
          %692 = vmatpush1.bf16.msra.mxu0 0
          %693 = vmatprep.subr.bf16.mxu0 0
          %694 = vmatpush1.bf16.msra.mxu0 0
          %695 = vmatprep.subr.bf16.mxu0 0
          %696 = vmatpush1.bf16.msra.mxu0 0
          %697 = vmatprep.subr.bf16.mxu0 0
          %698 = vmatpush1.bf16.msra.mxu0 0
          %699 = vmatprep.mubr.bf16.mxu0 0
          %700 = vmatmul.mubr.bf16.gmra.mrb[0].mxu0 %v590
          %v701 = vpop.f32.mrb[0].mxu0
          %v702 = vadd.f32 %v617, %v701
          %v703 = vpop.f32.mrb[0].mxu0
          %v704 = vpop.f32.mrb[0].mxu0
          %v705 = vpop.f32.mrb[0].mxu0
          %706 = vdwg.mxu0
          %v707 = vmax.f32 %v702, 0.0
          %v708 = vpack.c.bf16 %v707, %v707
          %v709 = vld [vmem:[#allocation3] sm:$0xff]
          %v710 = vld [vmem:[#allocation3 + $0x8] sm:$0xff]
          %v711 = vld [vmem:[#allocation3 + $0x10] sm:$0xff]
          %v712 = vld [vmem:[#allocation3 + $0x18] sm:$0xff]
          %v713 = vld [vmem:[#allocation3 + $0x20] sm:$0xff]
          %v714 = vld [vmem:[#allocation3 + $0x28] sm:$0xff]
          %v715 = vld [vmem:[#allocation3 + $0x30] sm:$0xff]
          %v716 = vld [vmem:[#allocation3 + $0x38] sm:$0xff]
          %v717 = vld [vmem:[#allocation3 + $0x40] sm:$0xff]
          %v718 = vld [vmem:[#allocation3 + $0x48] sm:$0xff]
          %v719 = vld [vmem:[#allocation3 + $0x50] sm:$0xff]
          %v720 = vld [vmem:[#allocation3 + $0x58] sm:$0xff]
          %v721 = vld [vmem:[#allocation3 + $0x60] sm:$0xff]
          %v722 = vld [vmem:[#allocation3 + $0x68] sm:$0xff]
          %v723 = vld [vmem:[#allocation3 + $0x70] sm:$0xff]
          %v724 = vld [vmem:[#allocation3 + $0x78] sm:$0xff]
          %v741 = vunpack.c.l.b16 %v709
          %v742 = vunpack.c.h.b16 %v709
          %v743 = vunpack.c.l.b16 %v710
          %v744 = vunpack.c.h.b16 %v710
          %v745 = vunpack.c.l.b16 %v711
          %v746 = vunpack.c.h.b16 %v711
          %v747 = vunpack.c.l.b16 %v712
          %v748 = vunpack.c.h.b16 %v712
          %v749 = vunpack.c.l.b16 %v713
          %v750 = vunpack.c.h.b16 %v713
          %v751 = vunpack.c.l.b16 %v714
          %v752 = vunpack.c.h.b16 %v714
          %v753 = vunpack.c.l.b16 %v715
          %v754 = vunpack.c.h.b16 %v715
          %v755 = vunpack.c.l.b16 %v716
          %v756 = vunpack.c.h.b16 %v716
          %v757 = vunpack.c.l.b16 %v717
          %v758 = vunpack.c.h.b16 %v717
          %v759 = vunpack.c.l.b16 %v718
          %v760 = vunpack.c.h.b16 %v718
          %v761 = vunpack.c.l.b16 %v719
          %v762 = vunpack.c.h.b16 %v719
          %v763 = vunpack.c.l.b16 %v720
          %v764 = vunpack.c.h.b16 %v720
          %v765 = vunpack.c.l.b16 %v721
          %v766 = vunpack.c.h.b16 %v721
          %v767 = vunpack.c.l.b16 %v722
          %v768 = vunpack.c.h.b16 %v722
          %v769 = vunpack.c.l.b16 %v723
          %v770 = vunpack.c.h.b16 %v723
          %v771 = vunpack.c.l.b16 %v724
          %v772 = vunpack.c.h.b16 %v724
          %v773 = vpack.c.b16 %v743, %v741
          %v774 = vpack.c.b16 %v744, %v742
          %v775 = vpack.c.b16 %v747, %v745
          %v776 = vpack.c.b16 %v748, %v746
          %v777 = vpack.c.b16 %v751, %v749
          %v778 = vpack.c.b16 %v752, %v750
          %v779 = vpack.c.b16 %v755, %v753
          %v780 = vpack.c.b16 %v756, %v754
          %v781 = vpack.c.b16 %v759, %v757
          %v782 = vpack.c.b16 %v760, %v758
          %v783 = vpack.c.b16 %v763, %v761
          %v784 = vpack.c.b16 %v764, %v762
          %v785 = vpack.c.b16 %v767, %v765
          %v786 = vpack.c.b16 %v768, %v766
          %v787 = vpack.c.b16 %v771, %v769
          %v788 = vpack.c.b16 %v772, %v770
          %805 = vmatprep.subr.bf16.mxu0 %v774
          %806 = vmatpush1.bf16.msra.mxu0 %v773
          %807 = vmatprep.subr.bf16.mxu0 %v776
          %808 = vmatpush1.bf16.msra.mxu0 %v775
          %809 = vmatprep.subr.bf16.mxu0 %v778
          %810 = vmatpush1.bf16.msra.mxu0 %v777
          %811 = vmatprep.subr.bf16.mxu0 %v780
          %812 = vmatpush1.bf16.msra.mxu0 %v779
          %813 = vmatprep.subr.bf16.mxu0 %v782
          %814 = vmatpush1.bf16.msra.mxu0 %v781
          %815 = vmatprep.subr.bf16.mxu0 %v784
          %816 = vmatpush1.bf16.msra.mxu0 %v783
          %817 = vmatprep.subr.bf16.mxu0 %v786
          %818 = vmatpush1.bf16.msra.mxu0 %v785
          %819 = vmatprep.subr.bf16.mxu0 %v788
          %820 = vmatpush1.bf16.msra.mxu0 %v787
          %821 = vmatprep.subr.bf16.mxu0 0
          %822 = vmatpush1.bf16.msra.mxu0 0
          %823 = vmatprep.subr.bf16.mxu0 0
          %824 = vmatpush1.bf16.msra.mxu0 0
          %825 = vmatprep.subr.bf16.mxu0 0
          %826 = vmatpush1.bf16.msra.mxu0 0
          %827 = vmatprep.subr.bf16.mxu0 0
          %828 = vmatpush1.bf16.msra.mxu0 0
          %829 = vmatprep.subr.bf16.mxu0 0
          %830 = vmatpush1.bf16.msra.mxu0 0
          %831 = vmatprep.subr.bf16.mxu0 0
          %832 = vmatpush1.bf16.msra.mxu0 0
          %833 = vmatprep.subr.bf16.mxu0 0
          %834 = vmatpush1.bf16.msra.mxu0 0
          %835 = vmatprep.subr.bf16.mxu0 0
          %836 = vmatpush1.bf16.msra.mxu0 0
          %837 = vmatprep.mubr.bf16.mxu0 0
          %838 = vmatmul.mubr.bf16.gmra.mrb[0].mxu0 %v708
          %v839 = vpop.f32.mrb[0].mxu0
          %v840 = vadd.f32 0.0, %v839
          %v841 = vpop.f32.mrb[0].mxu0
          %v842 = vadd.f32 0.0, %v841
          %v843 = vpop.f32.mrb[0].mxu0
          %v844 = vpop.f32.mrb[0].mxu0
          %845 = vdwg.mxu0
          %v846 = vld [vmem:[%s4] sm:$0x3]
          %v847 = vld [vmem:[#allocation5] sm:$0x3]
          %v848 = vmul.f32 %v840, %v595
          %v849 = vmul.f32 %v842, %v595
          %v850 = vrot.slane %v848, 4
          %v851 = vadd.f32 %v848, %v850
          %v852 = vrot.slane %v851, 2
          %v853 = vadd.f32 %v851, %v852
          %v854 = vrot.slane %v853, 1
          %v855 = vadd.f32 %v853, %v854
          %v856 = vrot.slane %v849, 4
          %v857 = vadd.f32 %v849, %v856
          %v858 = vrot.slane %v857, 2
          %v859 = vadd.f32 %v857, %v858
          %v860 = vrot.slane %v859, 1
          %v861 = vadd.f32 %v859, %v860
          %v862 = vmul.f32 %v855, 0.25
          %v863 = vmul.f32 %v861, 0.25
          %v864 = vsub.f32 %v840, %v862
          %v865 = vsub.f32 %v842, %v863
          %v866 = vmul.f32 %v864, %v864
          %v867 = vmul.f32 %v865, %v865
          %v868 = vmul.f32 %v866, %v595
          %v869 = vmul.f32 %v867, %v595
          %v870 = vrot.slane %v868, 4
          %v871 = vadd.f32 %v868, %v870
          %v872 = vrot.slane %v871, 2
          %v873 = vadd.f32 %v871, %v872
          %v874 = vrot.slane %v873, 1
          %v875 = vadd.f32 %v873, %v874
          %v876 = vrot.slane %v869, 4
          %v877 = vadd.f32 %v869, %v876
          %v878 = vrot.slane %v877, 2
          %v879 = vadd.f32 %v877, %v878
          %v880 = vrot.slane %v879, 1
          %v881 = vadd.f32 %v879, %v880
          %v882 = vmul.f32 %v875, 0.25
          %v883 = vmul.f32 %v881, 0.25
          %v884 = vadd.f32 %v882, 1e-05
          %v885 = vadd.f32 %v883, 1e-05
          %v886 = vrsqrt.pop %v884
          %v887 = vrsqrt.pop %v885
          %v888 = vmul.f32 %v864, %v886
          %v889 = vmul.f32 %v865, %v887
          %v891 = vlaneseq
          %v892 = vshrl.u32 %v891, 7
          %v893 = vsub.s32 0, %v892
          %v894 = vrot.slane %v846, %v893
          %v895 = vlaneseq
          %v896 = vshrl.u32 %v895, 7
          %v897 = vsub.s32 1, %v896
          %v898 = vrot.slane %v846, %v897
          %v901 = vmul.f32 %v888, %v894
          %v902 = vmul.f32 %v889, %v898
          %v904 = vlaneseq
          %v905 = vshrl.u32 %v904, 7
          %v906 = vsub.s32 0, %v905
          %v907 = vrot.slane %v847, %v906
          %v908 = vlaneseq
          %v909 = vshrl.u32 %v908, 7
          %v910 = vsub.s32 1, %v909
          %v911 = vrot.slane %v847, %v910
          %v914 = vadd.f32 %v901, %v907
          %v915 = vadd.f32 %v902, %v911
          %v916 = vmax.f32 %v914, 0.0
          %v917 = vmax.f32 %v915, 0.0
          %v918 = vpack.c.bf16 %v916, %v916
          %v919 = vpack.c.bf16 %v917, %v917
          %v920 = vld [vmem:[#allocation7] sm:$0xff]
          %v921 = vld [vmem:[#allocation7 + $0x8] sm:$0xff]
          %v922 = vld [vmem:[#allocation7 + $0x10] sm:$0xff]
          %v923 = vld [vmem:[#allocation7 + $0x18] sm:$0xff]
          %v924 = vld [vmem:[#allocation7 + $0x20] sm:$0xff]
          %v925 = vld [vmem:[#allocation7 + $0x28] sm:$0xff]
          %v926 = vld [vmem:[#allocation7 + $0x30] sm:$0xff]
          %v927 = vld [vmem:[#allocation7 + $0x38] sm:$0xff]
          %v928 = vld [vmem:[#allocation7 + $0x40] sm:$0xff]
          %v929 = vld [vmem:[#allocation7 + $0x48] sm:$0xff]
          %v930 = vld [vmem:[#allocation7 + $0x50] sm:$0xff]
          %v931 = vld [vmem:[#allocation7 + $0x58] sm:$0xff]
          %v932 = vld [vmem:[#allocation7 + $0x60] sm:$0xff]
          %v933 = vld [vmem:[#allocation7 + $0x68] sm:$0xff]
          %v934 = vld [vmem:[#allocation7 + $0x70] sm:$0xff]
          %v935 = vld [vmem:[#allocation7 + $0x78] sm:$0xff]
          %v936 = vld [vmem:[#allocation7 + $0x80] sm:$0xff]
          %v937 = vld [vmem:[#allocation7 + $0x88] sm:$0xff]
          %v938 = vld [vmem:[#allocation7 + $0x90] sm:$0xff]
          %v939 = vld [vmem:[#allocation7 + $0x98] sm:$0xff]
          %v940 = vld [vmem:[#allocation7 + $0xa0] sm:$0xff]
          %v941 = vld [vmem:[#allocation7 + $0xa8] sm:$0xff]
          %v942 = vld [vmem:[#allocation7 + $0xb0] sm:$0xff]
          %v943 = vld [vmem:[#allocation7 + $0xb8] sm:$0xff]
          %v944 = vld [vmem:[#allocation7 + $0xc0] sm:$0xff]
          %v945 = vld [vmem:[#allocation7 + $0xc8] sm:$0xff]
          %v946 = vld [vmem:[#allocation7 + $0xd0] sm:$0xff]
          %v947 = vld [vmem:[#allocation7 + $0xd8] sm:$0xff]
          %v948 = vld [vmem:[#allocation7 + $0xe0] sm:$0xff]
          %v949 = vld [vmem:[#allocation7 + $0xe8] sm:$0xff]
          %v950 = vld [vmem:[#allocation7 + $0xf0] sm:$0xff]
          %v951 = vld [vmem:[#allocation7 + $0xf8] sm:$0xff]
          %v952 = vld [vmem:[#allocation7 + $0x100] sm:$0xff]
          %v953 = vld [vmem:[#allocation7 + $0x108] sm:$0xff]
          %v954 = vld [vmem:[#allocation7 + $0x110] sm:$0xff]
          %v955 = vld [vmem:[#allocation7 + $0x118] sm:$0xff]
          %v956 = vld [vmem:[#allocation7 + $0x120] sm:$0xff]
          %v957 = vld [vmem:[#allocation7 + $0x128] sm:$0xff]
          %v958 = vld [vmem:[#allocation7 + $0x130] sm:$0xff]
          %v959 = vld [vmem:[#allocation7 + $0x138] sm:$0xff]
          %v960 = vld [vmem:[#allocation7 + $0x140] sm:$0xff]
          %v961 = vld [vmem:[#allocation7 + $0x148] sm:$0xff]
          %v962 = vld [vmem:[#allocation7 + $0x150] sm:$0xff]
          %v963 = vld [vmem:[#allocation7 + $0x158] sm:$0xff]
          %v964 = vld [vmem:[#allocation7 + $0x160] sm:$0xff]
          %v965 = vld [vmem:[#allocation7 + $0x168] sm:$0xff]
          %v966 = vld [vmem:[#allocation7 + $0x170] sm:$0xff]
          %v967 = vld [vmem:[#allocation7 + $0x178] sm:$0xff]
          %v968 = vld [vmem:[#allocation7 + $0x180] sm:$0xff]
          %v969 = vld [vmem:[#allocation7 + $0x188] sm:$0xff]
          %v970 = vld [vmem:[#allocation7 + $0x190] sm:$0xff]
          %v971 = vld [vmem:[#allocation7 + $0x198] sm:$0xff]
          %v972 = vld [vmem:[#allocation7 + $0x1a0] sm:$0xff]
          %v973 = vld [vmem:[#allocation7 + $0x1a8] sm:$0xff]
          %v974 = vld [vmem:[#allocation7 + $0x1b0] sm:$0xff]
          %v975 = vld [vmem:[#allocation7 + $0x1b8] sm:$0xff]
          %v976 = vld [vmem:[#allocation7 + $0x1c0] sm:$0xff]
          %v977 = vld [vmem:[#allocation7 + $0x1c8] sm:$0xff]
          %v978 = vld [vmem:[#allocation7 + $0x1d0] sm:$0xff]
          %v979 = vld [vmem:[#allocation7 + $0x1d8] sm:$0xff]
          %v980 = vld [vmem:[#allocation7 + $0x1e0] sm:$0xff]
          %v981 = vld [vmem:[#allocation7 + $0x1e8] sm:$0xff]
          %v982 = vld [vmem:[#allocation7 + $0x1f0] sm:$0xff]
          %v983 = vld [vmem:[#allocation7 + $0x1f8] sm:$0xff]
          %v1048 = vunpack.c.l.b16 %v920
          %v1049 = vunpack.c.h.b16 %v920
          %v1050 = vunpack.c.l.b16 %v921
          %v1051 = vunpack.c.h.b16 %v921
          %v1052 = vunpack.c.l.b16 %v922
          %v1053 = vunpack.c.h.b16 %v922
          %v1054 = vunpack.c.l.b16 %v923
          %v1055 = vunpack.c.h.b16 %v923
          %v1056 = vunpack.c.l.b16 %v924
          %v1057 = vunpack.c.h.b16 %v924
          %v1058 = vunpack.c.l.b16 %v925
          %v1059 = vunpack.c.h.b16 %v925
          %v1060 = vunpack.c.l.b16 %v926
          %v1061 = vunpack.c.h.b16 %v926
          %v1062 = vunpack.c.l.b16 %v927
          %v1063 = vunpack.c.h.b16 %v927
          %v1064 = vunpack.c.l.b16 %v928
          %v1065 = vunpack.c.h.b16 %v928
          %v1066 = vunpack.c.l.b16 %v929
          %v1067 = vunpack.c.h.b16 %v929
          %v1068 = vunpack.c.l.b16 %v930
          %v1069 = vunpack.c.h.b16 %v930
          %v1070 = vunpack.c.l.b16 %v931
          %v1071 = vunpack.c.h.b16 %v931
          %v1072 = vunpack.c.l.b16 %v932
          %v1073 = vunpack.c.h.b16 %v932
          %v1074 = vunpack.c.l.b16 %v933
          %v1075 = vunpack.c.h.b16 %v933
          %v1076 = vunpack.c.l.b16 %v934
          %v1077 = vunpack.c.h.b16 %v934
          %v1078 = vunpack.c.l.b16 %v935
          %v1079 = vunpack.c.h.b16 %v935
          %v1080 = vunpack.c.l.b16 %v936
          %v1081 = vunpack.c.h.b16 %v936
          %v1082 = vunpack.c.l.b16 %v937
          %v1083 = vunpack.c.h.b16 %v937
          %v1084 = vunpack.c.l.b16 %v938
          %v1085 = vunpack.c.h.b16 %v938
          %v1086 = vunpack.c.l.b16 %v939
          %v1087 = vunpack.c.h.b16 %v939
          %v1088 = vunpack.c.l.b16 %v940
          %v1089 = vunpack.c.h.b16 %v940
          %v1090 = vunpack.c.l.b16 %v941
          %v1091 = vunpack.c.h.b16 %v941
          %v1092 = vunpack.c.l.b16 %v942
          %v1093 = vunpack.c.h.b16 %v942
          %v1094 = vunpack.c.l.b16 %v943
          %v1095 = vunpack.c.h.b16 %v943
          %v1096 = vunpack.c.l.b16 %v944
          %v1097 = vunpack.c.h.b16 %v944
          %v1098 = vunpack.c.l.b16 %v945
          %v1099 = vunpack.c.h.b16 %v945
          %v1100 = vunpack.c.l.b16 %v946
          %v1101 = vunpack.c.h.b16 %v946
          %v1102 = vunpack.c.l.b16 %v947
          %v1103 = vunpack.c.h.b16 %v947
          %v1104 = vunpack.c.l.b16 %v948
          %v1105 = vunpack.c.h.b16 %v948
          %v1106 = vunpack.c.l.b16 %v949
          %v1107 = vunpack.c.h.b16 %v949
          %v1108 = vunpack.c.l.b16 %v950
          %v1109 = vunpack.c.h.b16 %v950
          %v1110 = vunpack.c.l.b16 %v951
          %v1111 = vunpack.c.h.b16 %v951
          %v1112 = vunpack.c.l.b16 %v952
          %v1113 = vunpack.c.h.b16 %v952
          %v1114 = vunpack.c.l.b16 %v953
          %v1115 = vunpack.c.h.b16 %v953
          %v1116 = vunpack.c.l.b16 %v954
          %v1117 = vunpack.c.h.b16 %v954
          %v1118 = vunpack.c.l.b16 %v955
          %v1119 = vunpack.c.h.b16 %v955
          %v1120 = vunpack.c.l.b16 %v956
          %v1121 = vunpack.c.h.b16 %v956
          %v1122 = vunpack.c.l.b16 %v957
          %v1123 = vunpack.c.h.b16 %v957
          %v1124 = vunpack.c.l.b16 %v958
          %v1125 = vunpack.c.h.b16 %v958
          %v1126 = vunpack.c.l.b16 %v959
          %v1127 = vunpack.c.h.b16 %v959
          %v1128 = vunpack.c.l.b16 %v960
          %v1129 = vunpack.c.h.b16 %v960
          %v1130 = vunpack.c.l.b16 %v961
          %v1131 = vunpack.c.h.b16 %v961
          %v1132 = vunpack.c.l.b16 %v962
          %v1133 = vunpack.c.h.b16 %v962
          %v1134 = vunpack.c.l.b16 %v963
          %v1135 = vunpack.c.h.b16 %v963
          %v1136 = vunpack.c.l.b16 %v964
          %v1137 = vunpack.c.h.b16 %v964
          %v1138 = vunpack.c.l.b16 %v965
          %v1139 = vunpack.c.h.b16 %v965
          %v1140 = vunpack.c.l.b16 %v966
          %v1141 = vunpack.c.h.b16 %v966
          %v1142 = vunpack.c.l.b16 %v967
          %v1143 = vunpack.c.h.b16 %v967
          %v1144 = vunpack.c.l.b16 %v968
          %v1145 = vunpack.c.h.b16 %v968
          %v1146 = vunpack.c.l.b16 %v969
          %v1147 = vunpack.c.h.b16 %v969
          %v1148 = vunpack.c.l.b16 %v970
          %v1149 = vunpack.c.h.b16 %v970
          %v1150 = vunpack.c.l.b16 %v971
          %v1151 = vunpack.c.h.b16 %v971
          %v1152 = vunpack.c.l.b16 %v972
          %v1153 = vunpack.c.h.b16 %v972
          %v1154 = vunpack.c.l.b16 %v973
          %v1155 = vunpack.c.h.b16 %v973
          %v1156 = vunpack.c.l.b16 %v974
          %v1157 = vunpack.c.h.b16 %v974
          %v1158 = vunpack.c.l.b16 %v975
          %v1159 = vunpack.c.h.b16 %v975
          %v1160 = vunpack.c.l.b16 %v976
          %v1161 = vunpack.c.h.b16 %v976
          %v1162 = vunpack.c.l.b16 %v977
          %v1163 = vunpack.c.h.b16 %v977
          %v1164 = vunpack.c.l.b16 %v978
          %v1165 = vunpack.c.h.b16 %v978
          %v1166 = vunpack.c.l.b16 %v979
          %v1167 = vunpack.c.h.b16 %v979
          %v1168 = vunpack.c.l.b16 %v980
          %v1169 = vunpack.c.h.b16 %v980
          %v1170 = vunpack.c.l.b16 %v981
          %v1171 = vunpack.c.h.b16 %v981
          %v1172 = vunpack.c.l.b16 %v982
          %v1173 = vunpack.c.h.b16 %v982
          %v1174 = vunpack.c.l.b16 %v983
          %v1175 = vunpack.c.h.b16 %v983
          %v1176 = vpack.c.b16 %v1052, %v1048
          %v1177 = vpack.c.b16 %v1053, %v1049
          %v1178 = vpack.c.b16 %v1054, %v1050
          %v1179 = vpack.c.b16 %v1055, %v1051
          %v1180 = vpack.c.b16 %v1060, %v1056
          %v1181 = vpack.c.b16 %v1061, %v1057
          %v1182 = vpack.c.b16 %v1062, %v1058
          %v1183 = vpack.c.b16 %v1063, %v1059
          %v1184 = vpack.c.b16 %v1068, %v1064
          %v1185 = vpack.c.b16 %v1069, %v1065
          %v1186 = vpack.c.b16 %v1070, %v1066
          %v1187 = vpack.c.b16 %v1071, %v1067
          %v1188 = vpack.c.b16 %v1076, %v1072
          %v1189 = vpack.c.b16 %v1077, %v1073
          %v1190 = vpack.c.b16 %v1078, %v1074
          %v1191 = vpack.c.b16 %v1079, %v1075
          %v1192 = vpack.c.b16 %v1084, %v1080
          %v1193 = vpack.c.b16 %v1085, %v1081
          %v1194 = vpack.c.b16 %v1086, %v1082
          %v1195 = vpack.c.b16 %v1087, %v1083
          %v1196 = vpack.c.b16 %v1092, %v1088
          %v1197 = vpack.c.b16 %v1093, %v1089
          %v1198 = vpack.c.b16 %v1094, %v1090
          %v1199 = vpack.c.b16 %v1095, %v1091
          %v1200 = vpack.c.b16 %v1100, %v1096
          %v1201 = vpack.c.b16 %v1101, %v1097
          %v1202 = vpack.c.b16 %v1102, %v1098
          %v1203 = vpack.c.b16 %v1103, %v1099
          %v1204 = vpack.c.b16 %v1108, %v1104
          %v1205 = vpack.c.b16 %v1109, %v1105
          %v1206 = vpack.c.b16 %v1110, %v1106
          %v1207 = vpack.c.b16 %v1111, %v1107
          %v1208 = vpack.c.b16 %v1116, %v1112
          %v1209 = vpack.c.b16 %v1117, %v1113
          %v1210 = vpack.c.b16 %v1118, %v1114
          %v1211 = vpack.c.b16 %v1119, %v1115
          %v1212 = vpack.c.b16 %v1124, %v1120
          %v1213 = vpack.c.b16 %v1125, %v1121
          %v1214 = vpack.c.b16 %v1126, %v1122
          %v1215 = vpack.c.b16 %v1127, %v1123
          %v1216 = vpack.c.b16 %v1132, %v1128
          %v1217 = vpack.c.b16 %v1133, %v1129
          %v1218 = vpack.c.b16 %v1134, %v1130
          %v1219 = vpack.c.b16 %v1135, %v1131
          %v1220 = vpack.c.b16 %v1140, %v1136
          %v1221 = vpack.c.b16 %v1141, %v1137
          %v1222 = vpack.c.b16 %v1142, %v1138
          %v1223 = vpack.c.b16 %v1143, %v1139
          %v1224 = vpack.c.b16 %v1148, %v1144
          %v1225 = vpack.c.b16 %v1149, %v1145
          %v1226 = vpack.c.b16 %v1150, %v1146
          %v1227 = vpack.c.b16 %v1151, %v1147
          %v1228 = vpack.c.b16 %v1156, %v1152
          %v1229 = vpack.c.b16 %v1157, %v1153
          %v1230 = vpack.c.b16 %v1158, %v1154
          %v1231 = vpack.c.b16 %v1159, %v1155
          %v1232 = vpack.c.b16 %v1164, %v1160
          %v1233 = vpack.c.b16 %v1165, %v1161
          %v1234 = vpack.c.b16 %v1166, %v1162
          %v1235 = vpack.c.b16 %v1167, %v1163
          %v1236 = vpack.c.b16 %v1172, %v1168
          %v1237 = vpack.c.b16 %v1173, %v1169
          %v1238 = vpack.c.b16 %v1174, %v1170
          %v1239 = vpack.c.b16 %v1175, %v1171
          %1304 = vmatprep.subr.bf16.mxu0 %v1177
          %1305 = vmatpush1.bf16.msra.mxu0 %v1176
          %1306 = vmatprep.subr.bf16.mxu0 %v1181
          %1307 = vmatpush1.bf16.msra.mxu0 %v1180
          %1308 = vmatprep.subr.bf16.mxu0 %v1185
          %1309 = vmatpush1.bf16.msra.mxu0 %v1184
          %1310 = vmatprep.subr.bf16.mxu0 %v1189
          %1311 = vmatpush1.bf16.msra.mxu0 %v1188
          %1312 = vmatprep.subr.bf16.mxu0 %v1193
          %1313 = vmatpush1.bf16.msra.mxu0 %v1192
          %1314 = vmatprep.subr.bf16.mxu0 %v1197
          %1315 = vmatpush1.bf16.msra.mxu0 %v1196
          %1316 = vmatprep.subr.bf16.mxu0 %v1201
          %1317 = vmatpush1.bf16.msra.mxu0 %v1200
          %1318 = vmatprep.subr.bf16.mxu0 %v1205
          %1319 = vmatpush1.bf16.msra.mxu0 %v1204
          %1320 = vmatprep.subr.bf16.mxu0 %v1209
          %1321 = vmatpush1.bf16.msra.mxu0 %v1208
          %1322 = vmatprep.subr.bf16.mxu0 %v1213
          %1323 = vmatpush1.bf16.msra.mxu0 %v1212
          %1324 = vmatprep.subr.bf16.mxu0 %v1217
          %1325 = vmatpush1.bf16.msra.mxu0 %v1216
          %1326 = vmatprep.subr.bf16.mxu0 %v1221
          %1327 = vmatpush1.bf16.msra.mxu0 %v1220
          %1328 = vmatprep.subr.bf16.mxu0 %v1225
          %1329 = vmatpush1.bf16.msra.mxu0 %v1224
          %1330 = vmatprep.subr.bf16.mxu0 %v1229
          %1331 = vmatpush1.bf16.msra.mxu0 %v1228
          %1332 = vmatprep.subr.bf16.mxu0 %v1233
          %1333 = vmatpush1.bf16.msra.mxu0 %v1232
          %1334 = vmatprep.subr.bf16.mxu0 %v1237
          %1335 = vmatpush1.bf16.msra.mxu0 %v1236
          %1336 = vmatprep.mubr.bf16.mxu0 %v919
          %1337 = vmatmul.mubr.bf16.gmra.mrb[0].mxu0 %v918
          %v1338 = vpop.f32.mrb[0].mxu0
          %v1339 = vadd.f32 0.0, %v1338
          %v1340 = vpop.f32.mrb[0].mxu0
          %v1341 = vadd.f32 0.0, %v1340
          %v1342 = vpop.f32.mrb[0].mxu0
          %v1343 = vpop.f32.mrb[0].mxu0
          %1344 = vdwg.mxu0
          %1345 = vmatprep.subr.bf16.mxu0 %v1179
          %1346 = vmatpush1.bf16.msra.mxu0 %v1178
          %1347 = vmatprep.subr.bf16.mxu0 %v1183
          %1348 = vmatpush1.bf16.msra.mxu0 %v1182
          %1349 = vmatprep.subr.bf16.mxu0 %v1187
          %1350 = vmatpush1.bf16.msra.mxu0 %v1186
          %1351 = vmatprep.subr.bf16.mxu0 %v1191
          %1352 = vmatpush1.bf16.msra.mxu0 %v1190
          %1353 = vmatprep.subr.bf16.mxu0 %v1195
          %1354 = vmatpush1.bf16.msra.mxu0 %v1194
          %1355 = vmatprep.subr.bf16.mxu0 %v1199
          %1356 = vmatpush1.bf16.msra.mxu0 %v1198
          %1357 = vmatprep.subr.bf16.mxu0 %v1203
          %1358 = vmatpush1.bf16.msra.mxu0 %v1202
          %1359 = vmatprep.subr.bf16.mxu0 %v1207
          %1360 = vmatpush1.bf16.msra.mxu0 %v1206
          %1361 = vmatprep.subr.bf16.mxu0 %v1211
          %1362 = vmatpush1.bf16.msra.mxu0 %v1210
          %1363 = vmatprep.subr.bf16.mxu0 %v1215
          %1364 = vmatpush1.bf16.msra.mxu0 %v1214
          %1365 = vmatprep.subr.bf16.mxu0 %v1219
          %1366 = vmatpush1.bf16.msra.mxu0 %v1218
          %1367 = vmatprep.subr.bf16.mxu0 %v1223
          %1368 = vmatpush1.bf16.msra.mxu0 %v1222
          %1369 = vmatprep.subr.bf16.mxu0 %v1227
          %1370 = vmatpush1.bf16.msra.mxu0 %v1226
          %1371 = vmatprep.subr.bf16.mxu0 %v1231
          %1372 = vmatpush1.bf16.msra.mxu0 %v1230
          %1373 = vmatprep.subr.bf16.mxu0 %v1235
          %1374 = vmatpush1.bf16.msra.mxu0 %v1234
          %1375 = vmatprep.subr.bf16.mxu0 %v1239
          %1376 = vmatpush1.bf16.msra.mxu0 %v1238
          %1377 = vmatprep.mubr.bf16.mxu0 %v919
          %1378 = vmatmul.mubr.bf16.gmra.mrb[0].mxu0 %v918
          %v1379 = vpop.f32.mrb[0].mxu0
          %v1380 = vadd.f32 0.0, %v1379
          %v1381 = vpop.f32.mrb[0].mxu0
          %v1382 = vadd.f32 0.0, %v1381
          %v1383 = vpop.f32.mrb[0].mxu0
          %v1384 = vpop.f32.mrb[0].mxu0
          %1385 = vdwg.mxu0
          %v1386 = vld [vmem:[%s7] sm:$0xf]
          %v1387 = vld [vmem:[#allocation8] sm:$0xf]
          %v1388 = vmul.f32 %v1339, %v595
          %v1389 = vmul.f32 %v1341, %v595
          %v1390 = vmul.f32 %v1380, %v595
          %v1391 = vmul.f32 %v1382, %v595
          %v1392 = vrot.slane %v1388, 4
          %v1393 = vadd.f32 %v1388, %v1392
          %v1394 = vrot.slane %v1393, 2
          %v1395 = vadd.f32 %v1393, %v1394
          %v1396 = vrot.slane %v1395, 1
          %v1397 = vadd.f32 %v1395, %v1396
          %v1398 = vrot.slane %v1389, 4
          %v1399 = vadd.f32 %v1389, %v1398
          %v1400 = vrot.slane %v1399, 2
          %v1401 = vadd.f32 %v1399, %v1400
          %v1402 = vrot.slane %v1401, 1
          %v1403 = vadd.f32 %v1401, %v1402
          %v1404 = vrot.slane %v1390, 4
          %v1405 = vadd.f32 %v1390, %v1404
          %v1406 = vrot.slane %v1405, 2
          %v1407 = vadd.f32 %v1405, %v1406
          %v1408 = vrot.slane %v1407, 1
          %v1409 = vadd.f32 %v1407, %v1408
          %v1410 = vrot.slane %v1391, 4
          %v1411 = vadd.f32 %v1391, %v1410
          %v1412 = vrot.slane %v1411, 2
          %v1413 = vadd.f32 %v1411, %v1412
          %v1414 = vrot.slane %v1413, 1
          %v1415 = vadd.f32 %v1413, %v1414
          %v1416 = vmul.f32 %v1397, 0.25
          %v1417 = vmul.f32 %v1403, 0.25
          %v1418 = vmul.f32 %v1409, 0.25
          %v1419 = vmul.f32 %v1415, 0.25
          %v1420 = vsub.f32 %v1339, %v1416
          %v1421 = vsub.f32 %v1341, %v1417
          %v1422 = vsub.f32 %v1380, %v1418
          %v1423 = vsub.f32 %v1382, %v1419
          %v1424 = vmul.f32 %v1420, %v1420
          %v1425 = vmul.f32 %v1421, %v1421
          %v1426 = vmul.f32 %v1422, %v1422
          %v1427 = vmul.f32 %v1423, %v1423
          %v1428 = vmul.f32 %v1424, %v595
          %v1429 = vmul.f32 %v1425, %v595
          %v1430 = vmul.f32 %v1426, %v595
          %v1431 = vmul.f32 %v1427, %v595
          %v1432 = vrot.slane %v1428, 4
          %v1433 = vadd.f32 %v1428, %v1432
          %v1434 = vrot.slane %v1433, 2
          %v1435 = vadd.f32 %v1433, %v1434
          %v1436 = vrot.slane %v1435, 1
          %v1437 = vadd.f32 %v1435, %v1436
          %v1438 = vrot.slane %v1429, 4
          %v1439 = vadd.f32 %v1429, %v1438
          %v1440 = vrot.slane %v1439, 2
          %v1441 = vadd.f32 %v1439, %v1440
          %v1442 = vrot.slane %v1441, 1
          %v1443 = vadd.f32 %v1441, %v1442
          %v1444 = vrot.slane %v1430, 4
          %v1445 = vadd.f32 %v1430, %v1444
          %v1446 = vrot.slane %v1445, 2
          %v1447 = vadd.f32 %v1445, %v1446
          %v1448 = vrot.slane %v1447, 1
          %v1449 = vadd.f32 %v1447, %v1448
          %v1450 = vrot.slane %v1431, 4
          %v1451 = vadd.f32 %v1431, %v1450
          %v1452 = vrot.slane %v1451, 2
          %v1453 = vadd.f32 %v1451, %v1452
          %v1454 = vrot.slane %v1453, 1
          %v1455 = vadd.f32 %v1453, %v1454
          %v1456 = vmul.f32 %v1437, 0.25
          %v1457 = vmul.f32 %v1443, 0.25
          %v1458 = vmul.f32 %v1449, 0.25
          %v1459 = vmul.f32 %v1455, 0.25
          %v1460 = vadd.f32 %v1456, 1e-05
          %v1461 = vadd.f32 %v1457, 1e-05
          %v1462 = vadd.f32 %v1458, 1e-05
          %v1463 = vadd.f32 %v1459, 1e-05
          %v1464 = vrsqrt.pop %v1460
          %v1465 = vrsqrt.pop %v1461
          %v1466 = vrsqrt.pop %v1462
          %v1467 = vrsqrt.pop %v1463
          %v1468 = vmul.f32 %v1420, %v1464
          %v1469 = vmul.f32 %v1421, %v1465
          %v1470 = vmul.f32 %v1422, %v1466
          %v1471 = vmul.f32 %v1423, %v1467
          %v1473 = vlaneseq
          %v1474 = vshrl.u32 %v1473, 7
          %v1475 = vsub.s32 0, %v1474
          %v1476 = vrot.slane %v1386, %v1475
          %v1477 = vlaneseq
          %v1478 = vshrl.u32 %v1477, 7
          %v1479 = vsub.s32 1, %v1478
          %v1480 = vrot.slane %v1386, %v1479
          %v1481 = vlaneseq
          %v1482 = vshrl.u32 %v1481, 7
          %v1483 = vsub.s32 2, %v1482
          %v1484 = vrot.slane %v1386, %v1483
          %v1485 = vlaneseq
          %v1486 = vshrl.u32 %v1485, 7
          %v1487 = vsub.s32 3, %v1486
          %v1488 = vrot.slane %v1386, %v1487
          %v1493 = vmul.f32 %v1468, %v1476
          %v1494 = vmul.f32 %v1469, %v1480
          %v1495 = vmul.f32 %v1470, %v1484
          %v1496 = vmul.f32 %v1471, %v1488
          %v1498 = vlaneseq
          %v1499 = vshrl.u32 %v1498, 7
          %v1500 = vsub.s32 0, %v1499
          %v1501 = vrot.slane %v1387, %v1500
          %v1502 = vlaneseq
          %v1503 = vshrl.u32 %v1502, 7
          %v1504 = vsub.s32 1, %v1503
          %v1505 = vrot.slane %v1387, %v1504
          %v1506 = vlaneseq
          %v1507 = vshrl.u32 %v1506, 7
          %v1508 = vsub.s32 2, %v1507
          %v1509 = vrot.slane %v1387, %v1508
          %v1510 = vlaneseq
          %v1511 = vshrl.u32 %v1510, 7
          %v1512 = vsub.s32 3, %v1511
          %v1513 = vrot.slane %v1387, %v1512
          %v1518 = vadd.f32 %v1493, %v1501
          %v1519 = vadd.f32 %v1494, %v1505
          %v1520 = vadd.f32 %v1495, %v1509
          %v1521 = vadd.f32 %v1496, %v1513
          %v1522 = vmax.f32 %v1518, 0.0
          %v1523 = vmax.f32 %v1519, 0.0
          %v1524 = vmax.f32 %v1520, 0.0
          %v1525 = vmax.f32 %v1521, 0.0
          %v1526 = vpack.c.bf16 %v1522, %v1522
          %v1527 = vpack.c.bf16 %v1523, %v1523
          %v1528 = vpack.c.bf16 %v1524, %v1524
          %v1529 = vpack.c.bf16 %v1525, %v1525
          %v1530 = vld [vmem:[#allocation10] sm:$0xff]
          %v1531 = vld [vmem:[#allocation10 + $0x8] sm:$0xff]
          %v1532 = vld [vmem:[#allocation10 + $0x10] sm:$0xff]
          %v1533 = vld [vmem:[#allocation10 + $0x18] sm:$0xff]
          %v1534 = vld [vmem:[#allocation10 + $0x20] sm:$0xff]
          %v1535 = vld [vmem:[#allocation10 + $0x28] sm:$0xff]
          %v1536 = vld [vmem:[#allocation10 + $0x30] sm:$0xff]
          %v1537 = vld [vmem:[#allocation10 + $0x38] sm:$0xff]
          %v1538 = vld [vmem:[#allocation10 + $0x40] sm:$0xff]
          %v1539 = vld [vmem:[#allocation10 + $0x48] sm:$0xff]
          %v1540 = vld [vmem:[#allocation10 + $0x50] sm:$0xff]
          %v1541 = vld [vmem:[#allocation10 + $0x58] sm:$0xff]
          %v1542 = vld [vmem:[#allocation10 + $0x60] sm:$0xff]
          %v1543 = vld [vmem:[#allocation10 + $0x68] sm:$0xff]
          %v1544 = vld [vmem:[#allocation10 + $0x70] sm:$0xff]
          %v1545 = vld [vmem:[#allocation10 + $0x78] sm:$0xff]
          %v1546 = vld [vmem:[#allocation10 + $0x80] sm:$0xff]
          %v1547 = vld [vmem:[#allocation10 + $0x88] sm:$0xff]
          %v1548 = vld [vmem:[#allocation10 + $0x90] sm:$0xff]
          %v1549 = vld [vmem:[#allocation10 + $0x98] sm:$0xff]
          %v1550 = vld [vmem:[#allocation10 + $0xa0] sm:$0xff]
          %v1551 = vld [vmem:[#allocation10 + $0xa8] sm:$0xff]
          %v1552 = vld [vmem:[#allocation10 + $0xb0] sm:$0xff]
          %v1553 = vld [vmem:[#allocation10 + $0xb8] sm:$0xff]
          %v1554 = vld [vmem:[#allocation10 + $0xc0] sm:$0xff]
          %v1555 = vld [vmem:[#allocation10 + $0xc8] sm:$0xff]
          %v1556 = vld [vmem:[#allocation10 + $0xd0] sm:$0xff]
          %v1557 = vld [vmem:[#allocation10 + $0xd8] sm:$0xff]
          %v1558 = vld [vmem:[#allocation10 + $0xe0] sm:$0xff]
          %v1559 = vld [vmem:[#allocation10 + $0xe8] sm:$0xff]
          %v1560 = vld [vmem:[#allocation10 + $0xf0] sm:$0xff]
          %v1561 = vld [vmem:[#allocation10 + $0xf8] sm:$0xff]
          %v1562 = vld [vmem:[#allocation10 + $0x100] sm:$0xff]
          %v1563 = vld [vmem:[#allocation10 + $0x108] sm:$0xff]
          %v1564 = vld [vmem:[#allocation10 + $0x110] sm:$0xff]
          %v1565 = vld [vmem:[#allocation10 + $0x118] sm:$0xff]
          %v1566 = vld [vmem:[#allocation10 + $0x120] sm:$0xff]
          %v1567 = vld [vmem:[#allocation10 + $0x128] sm:$0xff]
          %v1568 = vld [vmem:[#allocation10 + $0x130] sm:$0xff]
          %v1569 = vld [vmem:[#allocation10 + $0x138] sm:$0xff]
          %v1570 = vld [vmem:[#allocation10 + $0x140] sm:$0xff]
          %v1571 = vld [vmem:[#allocation10 + $0x148] sm:$0xff]
          %v1572 = vld [vmem:[#allocation10 + $0x150] sm:$0xff]
          %v1573 = vld [vmem:[#allocation10 + $0x158] sm:$0xff]
          %v1574 = vld [vmem:[#allocation10 + $0x160] sm:$0xff]
          %v1575 = vld [vmem:[#allocation10 + $0x168] sm:$0xff]
          %v1576 = vld [vmem:[#allocation10 + $0x170] sm:$0xff]
          %v1577 = vld [vmem:[#allocation10 + $0x178] sm:$0xff]
          %v1578 = vld [vmem:[#allocation10 + $0x180] sm:$0xff]
          %v1579 = vld [vmem:[#allocation10 + $0x188] sm:$0xff]
          %v1580 = vld [vmem:[#allocation10 + $0x190] sm:$0xff]
          %v1581 = vld [vmem:[#allocation10 + $0x198] sm:$0xff]
          %v1582 = vld [vmem:[#allocation10 + $0x1a0] sm:$0xff]
          %v1583 = vld [vmem:[#allocation10 + $0x1a8] sm:$0xff]
          %v1584 = vld [vmem:[#allocation10 + $0x1b0] sm:$0xff]
          %v1585 = vld [vmem:[#allocation10 + $0x1b8] sm:$0xff]
          %v1586 = vld [vmem:[#allocation10 + $0x1c0] sm:$0xff]
          %v1587 = vld [vmem:[#allocation10 + $0x1c8] sm:$0xff]
          %v1588 = vld [vmem:[#allocation10 + $0x1d0] sm:$0xff]
          %v1589 = vld [vmem:[#allocation10 + $0x1d8] sm:$0xff]
          %v1590 = vld [vmem:[#allocation10 + $0x1e0] sm:$0xff]
          %v1591 = vld [vmem:[#allocation10 + $0x1e8] sm:$0xff]
          %v1592 = vld [vmem:[#allocation10 + $0x1f0] sm:$0xff]
          %v1593 = vld [vmem:[#allocation10 + $0x1f8] sm:$0xff]
          %v1594 = vld [vmem:[#allocation10 + $0x200] sm:$0xff]
          %v1595 = vld [vmem:[#allocation10 + $0x208] sm:$0xff]
          %v1596 = vld [vmem:[#allocation10 + $0x210] sm:$0xff]
          %v1597 = vld [vmem:[#allocation10 + $0x218] sm:$0xff]
          %v1598 = vld [vmem:[#allocation10 + $0x220] sm:$0xff]
          %v1599 = vld [vmem:[#allocation10 + $0x228] sm:$0xff]
          %v1600 = vld [vmem:[#allocation10 + $0x230] sm:$0xff]
          %v1601 = vld [vmem:[#allocation10 + $0x238] sm:$0xff]
          %v1602 = vld [vmem:[#allocation10 + $0x240] sm:$0xff]
          %v1603 = vld [vmem:[#allocation10 + $0x248] sm:$0xff]
          %v1604 = vld [vmem:[#allocation10 + $0x250] sm:$0xff]
          %v1605 = vld [vmem:[#allocation10 + $0x258] sm:$0xff]
          %v1606 = vld [vmem:[#allocation10 + $0x260] sm:$0xff]
          %v1607 = vld [vmem:[#allocation10 + $0x268] sm:$0xff]
          %v1608 = vld [vmem:[#allocation10 + $0x270] sm:$0xff]
          %v1609 = vld [vmem:[#allocation10 + $0x278] sm:$0xff]
          %v1610 = vld [vmem:[#allocation10 + $0x280] sm:$0xff]
          %v1611 = vld [vmem:[#allocation10 + $0x288] sm:$0xff]
          %v1612 = vld [vmem:[#allocation10 + $0x290] sm:$0xff]
          %v1613 = vld [vmem:[#allocation10 + $0x298] sm:$0xff]
          %v1614 = vld [vmem:[#allocation10 + $0x2a0] sm:$0xff]
          %v1615 = vld [vmem:[#allocation10 + $0x2a8] sm:$0xff]
          %v1616 = vld [vmem:[#allocation10 + $0x2b0] sm:$0xff]
          %v1617 = vld [vmem:[#allocation10 + $0x2b8] sm:$0xff]
          %v1618 = vld [vmem:[#allocation10 + $0x2c0] sm:$0xff]
          %v1619 = vld [vmem:[#allocation10 + $0x2c8] sm:$0xff]
          %v1620 = vld [vmem:[#allocation10 + $0x2d0] sm:$0xff]
          %v1621 = vld [vmem:[#allocation10 + $0x2d8] sm:$0xff]
          %v1622 = vld [vmem:[#allocation10 + $0x2e0] sm:$0xff]
          %v1623 = vld [vmem:[#allocation10 + $0x2e8] sm:$0xff]
          %v1624 = vld [vmem:[#allocation10 + $0x2f0] sm:$0xff]
          %v1625 = vld [vmem:[#allocation10 + $0x2f8] sm:$0xff]
          %v1626 = vld [vmem:[#allocation10 + $0x300] sm:$0xff]
          %v1627 = vld [vmem:[#allocation10 + $0x308] sm:$0xff]
          %v1628 = vld [vmem:[#allocation10 + $0x310] sm:$0xff]
          %v1629 = vld [vmem:[#allocation10 + $0x318] sm:$0xff]
          %v1630 = vld [vmem:[#allocation10 + $0x320] sm:$0xff]
          %v1631 = vld [vmem:[#allocation10 + $0x328] sm:$0xff]
          %v1632 = vld [vmem:[#allocation10 + $0x330] sm:$0xff]
          %v1633 = vld [vmem:[#allocation10 + $0x338] sm:$0xff]
          %v1634 = vld [vmem:[#allocation10 + $0x340] sm:$0xff]
          %v1635 = vld [vmem:[#allocation10 + $0x348] sm:$0xff]
          %v1636 = vld [vmem:[#allocation10 + $0x350] sm:$0xff]
          %v1637 = vld [vmem:[#allocation10 + $0x358] sm:$0xff]
          %v1638 = vld [vmem:[#allocation10 + $0x360] sm:$0xff]
          %v1639 = vld [vmem:[#allocation10 + $0x368] sm:$0xff]
          %v1640 = vld [vmem:[#allocation10 + $0x370] sm:$0xff]
          %v1641 = vld [vmem:[#allocation10 + $0x378] sm:$0xff]
          %v1642 = vld [vmem:[#allocation10 + $0x380] sm:$0xff]
          %v1643 = vld [vmem:[#allocation10 + $0x388] sm:$0xff]
          %v1644 = vld [vmem:[#allocation10 + $0x390] sm:$0xff]
          %v1645 = vld [vmem:[#allocation10 + $0x398] sm:$0xff]
          %v1646 = vld [vmem:[#allocation10 + $0x3a0] sm:$0xff]
          %v1647 = vld [vmem:[#allocation10 + $0x3a8] sm:$0xff]
          %v1648 = vld [vmem:[#allocation10 + $0x3b0] sm:$0xff]
          %v1649 = vld [vmem:[#allocation10 + $0x3b8] sm:$0xff]
          %v1650 = vld [vmem:[#allocation10 + $0x3c0] sm:$0xff]
          %v1651 = vld [vmem:[#allocation10 + $0x3c8] sm:$0xff]
          %v1652 = vld [vmem:[#allocation10 + $0x3d0] sm:$0xff]
          %v1653 = vld [vmem:[#allocation10 + $0x3d8] sm:$0xff]
          %v1654 = vld [vmem:[#allocation10 + $0x3e0] sm:$0xff]
          %v1655 = vld [vmem:[#allocation10 + $0x3e8] sm:$0xff]
          %v1656 = vld [vmem:[#allocation10 + $0x3f0] sm:$0xff]
          %v1657 = vld [vmem:[#allocation10 + $0x3f8] sm:$0xff]
          %v1658 = vld [vmem:[#allocation10 + $0x400] sm:$0xff]
          %v1659 = vld [vmem:[#allocation10 + $0x408] sm:$0xff]
          %v1660 = vld [vmem:[#allocation10 + $0x410] sm:$0xff]
          %v1661 = vld [vmem:[#allocation10 + $0x418] sm:$0xff]
          %v1662 = vld [vmem:[#allocation10 + $0x420] sm:$0xff]
          %v1663 = vld [vmem:[#allocation10 + $0x428] sm:$0xff]
          %v1664 = vld [vmem:[#allocation10 + $0x430] sm:$0xff]
          %v1665 = vld [vmem:[#allocation10 + $0x438] sm:$0xff]
          %v1666 = vld [vmem:[#allocation10 + $0x440] sm:$0xff]
          %v1667 = vld [vmem:[#allocation10 + $0x448] sm:$0xff]
          %v1668 = vld [vmem:[#allocation10 + $0x450] sm:$0xff]
          %v1669 = vld [vmem:[#allocation10 + $0x458] sm:$0xff]
          %v1670 = vld [vmem:[#allocation10 + $0x460] sm:$0xff]
          %v1671 = vld [vmem:[#allocation10 + $0x468] sm:$0xff]
          %v1672 = vld [vmem:[#allocation10 + $0x470] sm:$0xff]
          %v1673 = vld [vmem:[#allocation10 + $0x478] sm:$0xff]
          %v1674 = vld [vmem:[#allocation10 + $0x480] sm:$0xff]
          %v1675 = vld [vmem:[#allocation10 + $0x488] sm:$0xff]
          %v1676 = vld [vmem:[#allocation10 + $0x490] sm:$0xff]
          %v1677 = vld [vmem:[#allocation10 + $0x498] sm:$0xff]
          %v1678 = vld [vmem:[#allocation10 + $0x4a0] sm:$0xff]
          %v1679 = vld [vmem:[#allocation10 + $0x4a8] sm:$0xff]
          %v1680 = vld [vmem:[#allocation10 + $0x4b0] sm:$0xff]
          %v1681 = vld [vmem:[#allocation10 + $0x4b8] sm:$0xff]
          %v1682 = vld [vmem:[#allocation10 + $0x4c0] sm:$0xff]
          %v1683 = vld [vmem:[#allocation10 + $0x4c8] sm:$0xff]
          %v1684 = vld [vmem:[#allocation10 + $0x4d0] sm:$0xff]
          %v1685 = vld [vmem:[#allocation10 + $0x4d8] sm:$0xff]
          %v1686 = vld [vmem:[#allocation10 + $0x4e0] sm:$0xff]
          %v1687 = vld [vmem:[#allocation10 + $0x4e8] sm:$0xff]
          %v1688 = vld [vmem:[#allocation10 + $0x4f0] sm:$0xff]
          %v1689 = vld [vmem:[#allocation10 + $0x4f8] sm:$0xff]
          %v1690 = vld [vmem:[#allocation10 + $0x500] sm:$0xff]
          %v1691 = vld [vmem:[#allocation10 + $0x508] sm:$0xff]
          %v1692 = vld [vmem:[#allocation10 + $0x510] sm:$0xff]
          %v1693 = vld [vmem:[#allocation10 + $0x518] sm:$0xff]
          %v1694 = vld [vmem:[#allocation10 + $0x520] sm:$0xff]
          %v1695 = vld [vmem:[#allocation10 + $0x528] sm:$0xff]
          %v1696 = vld [vmem:[#allocation10 + $0x530] sm:$0xff]
          %v1697 = vld [vmem:[#allocation10 + $0x538] sm:$0xff]
          %v1698 = vld [vmem:[#allocation10 + $0x540] sm:$0xff]
          %v1699 = vld [vmem:[#allocation10 + $0x548] sm:$0xff]
          %v1700 = vld [vmem:[#allocation10 + $0x550] sm:$0xff]
          %v1701 = vld [vmem:[#allocation10 + $0x558] sm:$0xff]
          %v1702 = vld [vmem:[#allocation10 + $0x560] sm:$0xff]
          %v1703 = vld [vmem:[#allocation10 + $0x568] sm:$0xff]
          %v1704 = vld [vmem:[#allocation10 + $0x570] sm:$0xff]
          %v1705 = vld [vmem:[#allocation10 + $0x578] sm:$0xff]
          %v1706 = vld [vmem:[#allocation10 + $0x580] sm:$0xff]
          %v1707 = vld [vmem:[#allocation10 + $0x588] sm:$0xff]
          %v1708 = vld [vmem:[#allocation10 + $0x590] sm:$0xff]
          %v1709 = vld [vmem:[#allocation10 + $0x598] sm:$0xff]
          %v1710 = vld [vmem:[#allocation10 + $0x5a0] sm:$0xff]
          %v1711 = vld [vmem:[#allocation10 + $0x5a8] sm:$0xff]
          %v1712 = vld [vmem:[#allocation10 + $0x5b0] sm:$0xff]
          %v1713 = vld [vmem:[#allocation10 + $0x5b8] sm:$0xff]
          %v1714 = vld [vmem:[#allocation10 + $0x5c0] sm:$0xff]
          %v1715 = vld [vmem:[#allocation10 + $0x5c8] sm:$0xff]
          %v1716 = vld [vmem:[#allocation10 + $0x5d0] sm:$0xff]
          %v1717 = vld [vmem:[#allocation10 + $0x5d8] sm:$0xff]
          %v1718 = vld [vmem:[#allocation10 + $0x5e0] sm:$0xff]
          %v1719 = vld [vmem:[#allocation10 + $0x5e8] sm:$0xff]
          %v1720 = vld [vmem:[#allocation10 + $0x5f0] sm:$0xff]
          %v1721 = vld [vmem:[#allocation10 + $0x5f8] sm:$0xff]
          %v1722 = vld [vmem:[#allocation10 + $0x600] sm:$0xff]
          %v1723 = vld [vmem:[#allocation10 + $0x608] sm:$0xff]
          %v1724 = vld [vmem:[#allocation10 + $0x610] sm:$0xff]
          %v1725 = vld [vmem:[#allocation10 + $0x618] sm:$0xff]
          %v1726 = vld [vmem:[#allocation10 + $0x620] sm:$0xff]
          %v1727 = vld [vmem:[#allocation10 + $0x628] sm:$0xff]
          %v1728 = vld [vmem:[#allocation10 + $0x630] sm:$0xff]
          %v1729 = vld [vmem:[#allocation10 + $0x638] sm:$0xff]
          %v1730 = vld [vmem:[#allocation10 + $0x640] sm:$0xff]
          %v1731 = vld [vmem:[#allocation10 + $0x648] sm:$0xff]
          %v1732 = vld [vmem:[#allocation10 + $0x650] sm:$0xff]
          %v1733 = vld [vmem:[#allocation10 + $0x658] sm:$0xff]
          %v1734 = vld [vmem:[#allocation10 + $0x660] sm:$0xff]
          %v1735 = vld [vmem:[#allocation10 + $0x668] sm:$0xff]
          %v1736 = vld [vmem:[#allocation10 + $0x670] sm:$0xff]
          %v1737 = vld [vmem:[#allocation10 + $0x678] sm:$0xff]
          %v1738 = vld [vmem:[#allocation10 + $0x680] sm:$0xff]
          %v1739 = vld [vmem:[#allocation10 + $0x688] sm:$0xff]
          %v1740 = vld [vmem:[#allocation10 + $0x690] sm:$0xff]
          %v1741 = vld [vmem:[#allocation10 + $0x698] sm:$0xff]
          %v1742 = vld [vmem:[#allocation10 + $0x6a0] sm:$0xff]
          %v1743 = vld [vmem:[#allocation10 + $0x6a8] sm:$0xff]
          %v1744 = vld [vmem:[#allocation10 + $0x6b0] sm:$0xff]
          %v1745 = vld [vmem:[#allocation10 + $0x6b8] sm:$0xff]
          %v1746 = vld [vmem:[#allocation10 + $0x6c0] sm:$0xff]
          %v1747 = vld [vmem:[#allocation10 + $0x6c8] sm:$0xff]
          %v1748 = vld [vmem:[#allocation10 + $0x6d0] sm:$0xff]
          %v1749 = vld [vmem:[#allocation10 + $0x6d8] sm:$0xff]
          %v1750 = vld [vmem:[#allocation10 + $0x6e0] sm:$0xff]
          %v1751 = vld [vmem:[#allocation10 + $0x6e8] sm:$0xff]
          %v1752 = vld [vmem:[#allocation10 + $0x6f0] sm:$0xff]
          %v1753 = vld [vmem:[#allocation10 + $0x6f8] sm:$0xff]
          %v1754 = vld [vmem:[#allocation10 + $0x700] sm:$0xff]
          %v1755 = vld [vmem:[#allocation10 + $0x708] sm:$0xff]
          %v1756 = vld [vmem:[#allocation10 + $0x710] sm:$0xff]
          %v1757 = vld [vmem:[#allocation10 + $0x718] sm:$0xff]
          %v1758 = vld [vmem:[#allocation10 + $0x720] sm:$0xff]
          %v1759 = vld [vmem:[#allocation10 + $0x728] sm:$0xff]
          %v1760 = vld [vmem:[#allocation10 + $0x730] sm:$0xff]
          %v1761 = vld [vmem:[#allocation10 + $0x738] sm:$0xff]
          %v1762 = vld [vmem:[#allocation10 + $0x740] sm:$0xff]
          %v1763 = vld [vmem:[#allocation10 + $0x748] sm:$0xff]
          %v1764 = vld [vmem:[#allocation10 + $0x750] sm:$0xff]
          %v1765 = vld [vmem:[#allocation10 + $0x758] sm:$0xff]
          %v1766 = vld [vmem:[#allocation10 + $0x760] sm:$0xff]
          %v1767 = vld [vmem:[#allocation10 + $0x768] sm:$0xff]
          %v1768 = vld [vmem:[#allocation10 + $0x770] sm:$0xff]
          %v1769 = vld [vmem:[#allocation10 + $0x778] sm:$0xff]
          %v1770 = vld [vmem:[#allocation10 + $0x780] sm:$0xff]
          %v1771 = vld [vmem:[#allocation10 + $0x788] sm:$0xff]
          %v1772 = vld [vmem:[#allocation10 + $0x790] sm:$0xff]
          %v1773 = vld [vmem:[#allocation10 + $0x798] sm:$0xff]
          %v1774 = vld [vmem:[#allocation10 + $0x7a0] sm:$0xff]
          %v1775 = vld [vmem:[#allocation10 + $0x7a8] sm:$0xff]
          %v1776 = vld [vmem:[#allocation10 + $0x7b0] sm:$0xff]
          %v1777 = vld [vmem:[#allocation10 + $0x7b8] sm:$0xff]
          %v1778 = vld [vmem:[#allocation10 + $0x7c0] sm:$0xff]
          %v1779 = vld [vmem:[#allocation10 + $0x7c8] sm:$0xff]
          %v1780 = vld [vmem:[#allocation10 + $0x7d0] sm:$0xff]
          %v1781 = vld [vmem:[#allocation10 + $0x7d8] sm:$0xff]
          %v1782 = vld [vmem:[#allocation10 + $0x7e0] sm:$0xff]
          %v1783 = vld [vmem:[#allocation10 + $0x7e8] sm:$0xff]
          %v1784 = vld [vmem:[#allocation10 + $0x7f0] sm:$0xff]
          %v1785 = vld [vmem:[#allocation10 + $0x7f8] sm:$0xff]
          %v2042 = vunpack.c.l.b16 %v1530
          %v2043 = vunpack.c.h.b16 %v1530
          %v2044 = vunpack.c.l.b16 %v1531
          %v2045 = vunpack.c.h.b16 %v1531
          %v2046 = vunpack.c.l.b16 %v1532
          %v2047 = vunpack.c.h.b16 %v1532
          %v2048 = vunpack.c.l.b16 %v1533
          %v2049 = vunpack.c.h.b16 %v1533
          %v2050 = vunpack.c.l.b16 %v1534
          %v2051 = vunpack.c.h.b16 %v1534
          %v2052 = vunpack.c.l.b16 %v1535
          %v2053 = vunpack.c.h.b16 %v1535
          %v2054 = vunpack.c.l.b16 %v1536
          %v2055 = vunpack.c.h.b16 %v1536
          %v2056 = vunpack.c.l.b16 %v1537
          %v2057 = vunpack.c.h.b16 %v1537
          %v2058 = vunpack.c.l.b16 %v1538
          %v2059 = vunpack.c.h.b16 %v1538
          %v2060 = vunpack.c.l.b16 %v1539
          %v2061 = vunpack.c.h.b16 %v1539
          %v2062 = vunpack.c.l.b16 %v1540
          %v2063 = vunpack.c.h.b16 %v1540
          %v2064 = vunpack.c.l.b16 %v1541
          %v2065 = vunpack.c.h.b16 %v1541
          %v2066 = vunpack.c.l.b16 %v1542
          %v2067 = vunpack.c.h.b16 %v1542
          %v2068 = vunpack.c.l.b16 %v1543
          %v2069 = vunpack.c.h.b16 %v1543
          %v2070 = vunpack.c.l.b16 %v1544
          %v2071 = vunpack.c.h.b16 %v1544
          %v2072 = vunpack.c.l.b16 %v1545
          %v2073 = vunpack.c.h.b16 %v1545
          %v2074 = vunpack.c.l.b16 %v1546
          %v2075 = vunpack.c.h.b16 %v1546
          %v2076 = vunpack.c.l.b16 %v1547
          %v2077 = vunpack.c.h.b16 %v1547
          %v2078 = vunpack.c.l.b16 %v1548
          %v2079 = vunpack.c.h.b16 %v1548
          %v2080 = vunpack.c.l.b16 %v1549
          %v2081 = vunpack.c.h.b16 %v1549
          %v2082 = vunpack.c.l.b16 %v1550
          %v2083 = vunpack.c.h.b16 %v1550
          %v2084 = vunpack.c.l.b16 %v1551
          %v2085 = vunpack.c.h.b16 %v1551
          %v2086 = vunpack.c.l.b16 %v1552
          %v2087 = vunpack.c.h.b16 %v1552
          %v2088 = vunpack.c.l.b16 %v1553
          %v2089 = vunpack.c.h.b16 %v1553
          %v2090 = vunpack.c.l.b16 %v1554
          %v2091 = vunpack.c.h.b16 %v1554
          %v2092 = vunpack.c.l.b16 %v1555
          %v2093 = vunpack.c.h.b16 %v1555
          %v2094 = vunpack.c.l.b16 %v1556
          %v2095 = vunpack.c.h.b16 %v1556
          %v2096 = vunpack.c.l.b16 %v1557
          %v2097 = vunpack.c.h.b16 %v1557
          %v2098 = vunpack.c.l.b16 %v1558
          %v2099 = vunpack.c.h.b16 %v1558
          %v2100 = vunpack.c.l.b16 %v1559
          %v2101 = vunpack.c.h.b16 %v1559
          %v2102 = vunpack.c.l.b16 %v1560
          %v2103 = vunpack.c.h.b16 %v1560
          %v2104 = vunpack.c.l.b16 %v1561
          %v2105 = vunpack.c.h.b16 %v1561
          %v2106 = vunpack.c.l.b16 %v1562
          %v2107 = vunpack.c.h.b16 %v1562
          %v2108 = vunpack.c.l.b16 %v1563
          %v2109 = vunpack.c.h.b16 %v1563
          %v2110 = vunpack.c.l.b16 %v1564
          %v2111 = vunpack.c.h.b16 %v1564
          %v2112 = vunpack.c.l.b16 %v1565
          %v2113 = vunpack.c.h.b16 %v1565
          %v2114 = vunpack.c.l.b16 %v1566
          %v2115 = vunpack.c.h.b16 %v1566
          %v2116 = vunpack.c.l.b16 %v1567
          %v2117 = vunpack.c.h.b16 %v1567
          %v2118 = vunpack.c.l.b16 %v1568
          %v2119 = vunpack.c.h.b16 %v1568
          %v2120 = vunpack.c.l.b16 %v1569
          %v2121 = vunpack.c.h.b16 %v1569
          %v2122 = vunpack.c.l.b16 %v1570
          %v2123 = vunpack.c.h.b16 %v1570
          %v2124 = vunpack.c.l.b16 %v1571
          %v2125 = vunpack.c.h.b16 %v1571
          %v2126 = vunpack.c.l.b16 %v1572
          %v2127 = vunpack.c.h.b16 %v1572
          %v2128 = vunpack.c.l.b16 %v1573
          %v2129 = vunpack.c.h.b16 %v1573
          %v2130 = vunpack.c.l.b16 %v1574
          %v2131 = vunpack.c.h.b16 %v1574
          %v2132 = vunpack.c.l.b16 %v1575
          %v2133 = vunpack.c.h.b16 %v1575
          %v2134 = vunpack.c.l.b16 %v1576
          %v2135 = vunpack.c.h.b16 %v1576
          %v2136 = vunpack.c.l.b16 %v1577
          %v2137 = vunpack.c.h.b16 %v1577
          %v2138 = vunpack.c.l.b16 %v1578
          %v2139 = vunpack.c.h.b16 %v1578
          %v2140 = vunpack.c.l.b16 %v1579
          %v2141 = vunpack.c.h.b16 %v1579
          %v2142 = vunpack.c.l.b16 %v1580
          %v2143 = vunpack.c.h.b16 %v1580
          %v2144 = vunpack.c.l.b16 %v1581
          %v2145 = vunpack.c.h.b16 %v1581
          %v2146 = vunpack.c.l.b16 %v1582
          %v2147 = vunpack.c.h.b16 %v1582
          %v2148 = vunpack.c.l.b16 %v1583
          %v2149 = vunpack.c.h.b16 %v1583
          %v2150 = vunpack.c.l.b16 %v1584
          %v2151 = vunpack.c.h.b16 %v1584
          %v2152 = vunpack.c.l.b16 %v1585
          %v2153 = vunpack.c.h.b16 %v1585
          %v2154 = vunpack.c.l.b16 %v1586
          %v2155 = vunpack.c.h.b16 %v1586
          %v2156 = vunpack.c.l.b16 %v1587
          %v2157 = vunpack.c.h.b16 %v1587
          %v2158 = vunpack.c.l.b16 %v1588
          %v2159 = vunpack.c.h.b16 %v1588
          %v2160 = vunpack.c.l.b16 %v1589
          %v2161 = vunpack.c.h.b16 %v1589
          %v2162 = vunpack.c.l.b16 %v1590
          %v2163 = vunpack.c.h.b16 %v1590
          %v2164 = vunpack.c.l.b16 %v1591
          %v2165 = vunpack.c.h.b16 %v1591
          %v2166 = vunpack.c.l.b16 %v1592
          %v2167 = vunpack.c.h.b16 %v1592
          %v2168 = vunpack.c.l.b16 %v1593
          %v2169 = vunpack.c.h.b16 %v1593
          %v2170 = vunpack.c.l.b16 %v1594
          %v2171 = vunpack.c.h.b16 %v1594
          %v2172 = vunpack.c.l.b16 %v1595
          %v2173 = vunpack.c.h.b16 %v1595
          %v2174 = vunpack.c.l.b16 %v1596
          %v2175 = vunpack.c.h.b16 %v1596
          %v2176 = vunpack.c.l.b16 %v1597
          %v2177 = vunpack.c.h.b16 %v1597
          %v2178 = vunpack.c.l.b16 %v1598
          %v2179 = vunpack.c.h.b16 %v1598
          %v2180 = vunpack.c.l.b16 %v1599
          %v2181 = vunpack.c.h.b16 %v1599
          %v2182 = vunpack.c.l.b16 %v1600
          %v2183 = vunpack.c.h.b16 %v1600
          %v2184 = vunpack.c.l.b16 %v1601
          %v2185 = vunpack.c.h.b16 %v1601
          %v2186 = vunpack.c.l.b16 %v1602
          %v2187 = vunpack.c.h.b16 %v1602
          %v2188 = vunpack.c.l.b16 %v1603
          %v2189 = vunpack.c.h.b16 %v1603
          %v2190 = vunpack.c.l.b16 %v1604
          %v2191 = vunpack.c.h.b16 %v1604
          %v2192 = vunpack.c.l.b16 %v1605
          %v2193 = vunpack.c.h.b16 %v1605
          %v2194 = vunpack.c.l.b16 %v1606
          %v2195 = vunpack.c.h.b16 %v1606
          %v2196 = vunpack.c.l.b16 %v1607
          %v2197 = vunpack.c.h.b16 %v1607
          %v2198 = vunpack.c.l.b16 %v1608
          %v2199 = vunpack.c.h.b16 %v1608
          %v2200 = vunpack.c.l.b16 %v1609
          %v2201 = vunpack.c.h.b16 %v1609
          %v2202 = vunpack.c.l.b16 %v1610
          %v2203 = vunpack.c.h.b16 %v1610
          %v2204 = vunpack.c.l.b16 %v1611
          %v2205 = vunpack.c.h.b16 %v1611
          %v2206 = vunpack.c.l.b16 %v1612
          %v2207 = vunpack.c.h.b16 %v1612
          %v2208 = vunpack.c.l.b16 %v1613
          %v2209 = vunpack.c.h.b16 %v1613
          %v2210 = vunpack.c.l.b16 %v1614
          %v2211 = vunpack.c.h.b16 %v1614
          %v2212 = vunpack.c.l.b16 %v1615
          %v2213 = vunpack.c.h.b16 %v1615
          %v2214 = vunpack.c.l.b16 %v1616
          %v2215 = vunpack.c.h.b16 %v1616
          %v2216 = vunpack.c.l.b16 %v1617
          %v2217 = vunpack.c.h.b16 %v1617
          %v2218 = vunpack.c.l.b16 %v1618
          %v2219 = vunpack.c.h.b16 %v1618
          %v2220 = vunpack.c.l.b16 %v1619
          %v2221 = vunpack.c.h.b16 %v1619
          %v2222 = vunpack.c.l.b16 %v1620
          %v2223 = vunpack.c.h.b16 %v1620
          %v2224 = vunpack.c.l.b16 %v1621
          %v2225 = vunpack.c.h.b16 %v1621
          %v2226 = vunpack.c.l.b16 %v1622
          %v2227 = vunpack.c.h.b16 %v1622
          %v2228 = vunpack.c.l.b16 %v1623
          %v2229 = vunpack.c.h.b16 %v1623
          %v2230 = vunpack.c.l.b16 %v1624
          %v2231 = vunpack.c.h.b16 %v1624
          %v2232 = vunpack.c.l.b16 %v1625
          %v2233 = vunpack.c.h.b16 %v1625
          %v2234 = vunpack.c.l.b16 %v1626
          %v2235 = vunpack.c.h.b16 %v1626
          %v2236 = vunpack.c.l.b16 %v1627
          %v2237 = vunpack.c.h.b16 %v1627
          %v2238 = vunpack.c.l.b16 %v1628
          %v2239 = vunpack.c.h.b16 %v1628
          %v2240 = vunpack.c.l.b16 %v1629
          %v2241 = vunpack.c.h.b16 %v1629
          %v2242 = vunpack.c.l.b16 %v1630
          %v2243 = vunpack.c.h.b16 %v1630
          %v2244 = vunpack.c.l.b16 %v1631
          %v2245 = vunpack.c.h.b16 %v1631
          %v2246 = vunpack.c.l.b16 %v1632
          %v2247 = vunpack.c.h.b16 %v1632
          %v2248 = vunpack.c.l.b16 %v1633
          %v2249 = vunpack.c.h.b16 %v1633
          %v2250 = vunpack.c.l.b16 %v1634
          %v2251 = vunpack.c.h.b16 %v1634
          %v2252 = vunpack.c.l.b16 %v1635
          %v2253 = vunpack.c.h.b16 %v1635
          %v2254 = vunpack.c.l.b16 %v1636
          %v2255 = vunpack.c.h.b16 %v1636
          %v2256 = vunpack.c.l.b16 %v1637
          %v2257 = vunpack.c.h.b16 %v1637
          %v2258 = vunpack.c.l.b16 %v1638
          %v2259 = vunpack.c.h.b16 %v1638
          %v2260 = vunpack.c.l.b16 %v1639
          %v2261 = vunpack.c.h.b16 %v1639
          %v2262 = vunpack.c.l.b16 %v1640
          %v2263 = vunpack.c.h.b16 %v1640
          %v2264 = vunpack.c.l.b16 %v1641
          %v2265 = vunpack.c.h.b16 %v1641
          %v2266 = vunpack.c.l.b16 %v1642
          %v2267 = vunpack.c.h.b16 %v1642
          %v2268 = vunpack.c.l.b16 %v1643
          %v2269 = vunpack.c.h.b16 %v1643
          %v2270 = vunpack.c.l.b16 %v1644
          %v2271 = vunpack.c.h.b16 %v1644
          %v2272 = vunpack.c.l.b16 %v1645
          %v2273 = vunpack.c.h.b16 %v1645
          %v2274 = vunpack.c.l.b16 %v1646
          %v2275 = vunpack.c.h.b16 %v1646
          %v2276 = vunpack.c.l.b16 %v1647
          %v2277 = vunpack.c.h.b16 %v1647
          %v2278 = vunpack.c.l.b16 %v1648
          %v2279 = vunpack.c.h.b16 %v1648
          %v2280 = vunpack.c.l.b16 %v1649
          %v2281 = vunpack.c.h.b16 %v1649
          %v2282 = vunpack.c.l.b16 %v1650
          %v2283 = vunpack.c.h.b16 %v1650
          %v2284 = vunpack.c.l.b16 %v1651
          %v2285 = vunpack.c.h.b16 %v1651
          %v2286 = vunpack.c.l.b16 %v1652
          %v2287 = vunpack.c.h.b16 %v1652
          %v2288 = vunpack.c.l.b16 %v1653
          %v2289 = vunpack.c.h.b16 %v1653
          %v2290 = vunpack.c.l.b16 %v1654
          %v2291 = vunpack.c.h.b16 %v1654
          %v2292 = vunpack.c.l.b16 %v1655
          %v2293 = vunpack.c.h.b16 %v1655
          %v2294 = vunpack.c.l.b16 %v1656
          %v2295 = vunpack.c.h.b16 %v1656
          %v2296 = vunpack.c.l.b16 %v1657
          %v2297 = vunpack.c.h.b16 %v1657
          %v2298 = vunpack.c.l.b16 %v1658
          %v2299 = vunpack.c.h.b16 %v1658
          %v2300 = vunpack.c.l.b16 %v1659
          %v2301 = vunpack.c.h.b16 %v1659
          %v2302 = vunpack.c.l.b16 %v1660
          %v2303 = vunpack.c.h.b16 %v1660
          %v2304 = vunpack.c.l.b16 %v1661
          %v2305 = vunpack.c.h.b16 %v1661
          %v2306 = vunpack.c.l.b16 %v1662
          %v2307 = vunpack.c.h.b16 %v1662
          %v2308 = vunpack.c.l.b16 %v1663
          %v2309 = vunpack.c.h.b16 %v1663
          %v2310 = vunpack.c.l.b16 %v1664
          %v2311 = vunpack.c.h.b16 %v1664
          %v2312 = vunpack.c.l.b16 %v1665
          %v2313 = vunpack.c.h.b16 %v1665
          %v2314 = vunpack.c.l.b16 %v1666
          %v2315 = vunpack.c.h.b16 %v1666
          %v2316 = vunpack.c.l.b16 %v1667
          %v2317 = vunpack.c.h.b16 %v1667
          %v2318 = vunpack.c.l.b16 %v1668
          %v2319 = vunpack.c.h.b16 %v1668
          %v2320 = vunpack.c.l.b16 %v1669
          %v2321 = vunpack.c.h.b16 %v1669
          %v2322 = vunpack.c.l.b16 %v1670
          %v2323 = vunpack.c.h.b16 %v1670
          %v2324 = vunpack.c.l.b16 %v1671
          %v2325 = vunpack.c.h.b16 %v1671
          %v2326 = vunpack.c.l.b16 %v1672
          %v2327 = vunpack.c.h.b16 %v1672
          %v2328 = vunpack.c.l.b16 %v1673
          %v2329 = vunpack.c.h.b16 %v1673
          %v2330 = vunpack.c.l.b16 %v1674
          %v2331 = vunpack.c.h.b16 %v1674
          %v2332 = vunpack.c.l.b16 %v1675
          %v2333 = vunpack.c.h.b16 %v1675
          %v2334 = vunpack.c.l.b16 %v1676
          %v2335 = vunpack.c.h.b16 %v1676
          %v2336 = vunpack.c.l.b16 %v1677
          %v2337 = vunpack.c.h.b16 %v1677
          %v2338 = vunpack.c.l.b16 %v1678
          %v2339 = vunpack.c.h.b16 %v1678
          %v2340 = vunpack.c.l.b16 %v1679
          %v2341 = vunpack.c.h.b16 %v1679
          %v2342 = vunpack.c.l.b16 %v1680
          %v2343 = vunpack.c.h.b16 %v1680
          %v2344 = vunpack.c.l.b16 %v1681
          %v2345 = vunpack.c.h.b16 %v1681
          %v2346 = vunpack.c.l.b16 %v1682
          %v2347 = vunpack.c.h.b16 %v1682
          %v2348 = vunpack.c.l.b16 %v1683
          %v2349 = vunpack.c.h.b16 %v1683
          %v2350 = vunpack.c.l.b16 %v1684
          %v2351 = vunpack.c.h.b16 %v1684
          %v2352 = vunpack.c.l.b16 %v1685
          %v2353 = vunpack.c.h.b16 %v1685
          %v2354 = vunpack.c.l.b16 %v1686
          %v2355 = vunpack.c.h.b16 %v1686
          %v2356 = vunpack.c.l.b16 %v1687
          %v2357 = vunpack.c.h.b16 %v1687
          %v2358 = vunpack.c.l.b16 %v1688
          %v2359 = vunpack.c.h.b16 %v1688
          %v2360 = vunpack.c.l.b16 %v1689
          %v2361 = vunpack.c.h.b16 %v1689
          %v2362 = vunpack.c.l.b16 %v1690
          %v2363 = vunpack.c.h.b16 %v1690
          %v2364 = vunpack.c.l.b16 %v1691
          %v2365 = vunpack.c.h.b16 %v1691
          %v2366 = vunpack.c.l.b16 %v1692
          %v2367 = vunpack.c.h.b16 %v1692
          %v2368 = vunpack.c.l.b16 %v1693
          %v2369 = vunpack.c.h.b16 %v1693
          %v2370 = vunpack.c.l.b16 %v1694
          %v2371 = vunpack.c.h.b16 %v1694
          %v2372 = vunpack.c.l.b16 %v1695
          %v2373 = vunpack.c.h.b16 %v1695
          %v2374 = vunpack.c.l.b16 %v1696
          %v2375 = vunpack.c.h.b16 %v1696
          %v2376 = vunpack.c.l.b16 %v1697
          %v2377 = vunpack.c.h.b16 %v1697
          %v2378 = vunpack.c.l.b16 %v1698
          %v2379 = vunpack.c.h.b16 %v1698
          %v2380 = vunpack.c.l.b16 %v1699
          %v2381 = vunpack.c.h.b16 %v1699
          %v2382 = vunpack.c.l.b16 %v1700
          %v2383 = vunpack.c.h.b16 %v1700
          %v2384 = vunpack.c.l.b16 %v1701
          %v2385 = vunpack.c.h.b16 %v1701
          %v2386 = vunpack.c.l.b16 %v1702
          %v2387 = vunpack.c.h.b16 %v1702
          %v2388 = vunpack.c.l.b16 %v1703
          %v2389 = vunpack.c.h.b16 %v1703
          %v2390 = vunpack.c.l.b16 %v1704
          %v2391 = vunpack.c.h.b16 %v1704
          %v2392 = vunpack.c.l.b16 %v1705
          %v2393 = vunpack.c.h.b16 %v1705
          %v2394 = vunpack.c.l.b16 %v1706
          %v2395 = vunpack.c.h.b16 %v1706
          %v2396 = vunpack.c.l.b16 %v1707
          %v2397 = vunpack.c.h.b16 %v1707
          %v2398 = vunpack.c.l.b16 %v1708
          %v2399 = vunpack.c.h.b16 %v1708
          %v2400 = vunpack.c.l.b16 %v1709
          %v2401 = vunpack.c.h.b16 %v1709
          %v2402 = vunpack.c.l.b16 %v1710
          %v2403 = vunpack.c.h.b16 %v1710
          %v2404 = vunpack.c.l.b16 %v1711
          %v2405 = vunpack.c.h.b16 %v1711
          %v2406 = vunpack.c.l.b16 %v1712
          %v2407 = vunpack.c.h.b16 %v1712
          %v2408 = vunpack.c.l.b16 %v1713
          %v2409 = vunpack.c.h.b16 %v1713
          %v2410 = vunpack.c.l.b16 %v1714
          %v2411 = vunpack.c.h.b16 %v1714
          %v2412 = vunpack.c.l.b16 %v1715
          %v2413 = vunpack.c.h.b16 %v1715
          %v2414 = vunpack.c.l.b16 %v1716
          %v2415 = vunpack.c.h.b16 %v1716
          %v2416 = vunpack.c.l.b16 %v1717
          %v2417 = vunpack.c.h.b16 %v1717
          %v2418 = vunpack.c.l.b16 %v1718
          %v2419 = vunpack.c.h.b16 %v1718
          %v2420 = vunpack.c.l.b16 %v1719
          %v2421 = vunpack.c.h.b16 %v1719
          %v2422 = vunpack.c.l.b16 %v1720
          %v2423 = vunpack.c.h.b16 %v1720
          %v2424 = vunpack.c.l.b16 %v1721
          %v2425 = vunpack.c.h.b16 %v1721
          %v2426 = vunpack.c.l.b16 %v1722
          %v2427 = vunpack.c.h.b16 %v1722
          %v2428 = vunpack.c.l.b16 %v1723
          %v2429 = vunpack.c.h.b16 %v1723
          %v2430 = vunpack.c.l.b16 %v1724
          %v2431 = vunpack.c.h.b16 %v1724
          %v2432 = vunpack.c.l.b16 %v1725
          %v2433 = vunpack.c.h.b16 %v1725
          %v2434 = vunpack.c.l.b16 %v1726
          %v2435 = vunpack.c.h.b16 %v1726
          %v2436 = vunpack.c.l.b16 %v1727
          %v2437 = vunpack.c.h.b16 %v1727
          %v2438 = vunpack.c.l.b16 %v1728
          %v2439 = vunpack.c.h.b16 %v1728
          %v2440 = vunpack.c.l.b16 %v1729
          %v2441 = vunpack.c.h.b16 %v1729
          %v2442 = vunpack.c.l.b16 %v1730
          %v2443 = vunpack.c.h.b16 %v1730
          %v2444 = vunpack.c.l.b16 %v1731
          %v2445 = vunpack.c.h.b16 %v1731
          %v2446 = vunpack.c.l.b16 %v1732
          %v2447 = vunpack.c.h.b16 %v1732
          %v2448 = vunpack.c.l.b16 %v1733
          %v2449 = vunpack.c.h.b16 %v1733
          %v2450 = vunpack.c.l.b16 %v1734
          %v2451 = vunpack.c.h.b16 %v1734
          %v2452 = vunpack.c.l.b16 %v1735
          %v2453 = vunpack.c.h.b16 %v1735
          %v2454 = vunpack.c.l.b16 %v1736
          %v2455 = vunpack.c.h.b16 %v1736
          %v2456 = vunpack.c.l.b16 %v1737
          %v2457 = vunpack.c.h.b16 %v1737
          %v2458 = vunpack.c.l.b16 %v1738
          %v2459 = vunpack.c.h.b16 %v1738
          %v2460 = vunpack.c.l.b16 %v1739
          %v2461 = vunpack.c.h.b16 %v1739
          %v2462 = vunpack.c.l.b16 %v1740
          %v2463 = vunpack.c.h.b16 %v1740
          %v2464 = vunpack.c.l.b16 %v1741
          %v2465 = vunpack.c.h.b16 %v1741
          %v2466 = vunpack.c.l.b16 %v1742
          %v2467 = vunpack.c.h.b16 %v1742
          %v2468 = vunpack.c.l.b16 %v1743
          %v2469 = vunpack.c.h.b16 %v1743
          %v2470 = vunpack.c.l.b16 %v1744
          %v2471 = vunpack.c.h.b16 %v1744
          %v2472 = vunpack.c.l.b16 %v1745
          %v2473 = vunpack.c.h.b16 %v1745
          %v2474 = vunpack.c.l.b16 %v1746
          %v2475 = vunpack.c.h.b16 %v1746
          %v2476 = vunpack.c.l.b16 %v1747
          %v2477 = vunpack.c.h.b16 %v1747
          %v2478 = vunpack.c.l.b16 %v1748
          %v2479 = vunpack.c.h.b16 %v1748
          %v2480 = vunpack.c.l.b16 %v1749
          %v2481 = vunpack.c.h.b16 %v1749
          %v2482 = vunpack.c.l.b16 %v1750
          %v2483 = vunpack.c.h.b16 %v1750
          %v2484 = vunpack.c.l.b16 %v1751
          %v2485 = vunpack.c.h.b16 %v1751
          %v2486 = vunpack.c.l.b16 %v1752
          %v2487 = vunpack.c.h.b16 %v1752
          %v2488 = vunpack.c.l.b16 %v1753
          %v2489 = vunpack.c.h.b16 %v1753
          %v2490 = vunpack.c.l.b16 %v1754
          %v2491 = vunpack.c.h.b16 %v1754
          %v2492 = vunpack.c.l.b16 %v1755
          %v2493 = vunpack.c.h.b16 %v1755
          %v2494 = vunpack.c.l.b16 %v1756
          %v2495 = vunpack.c.h.b16 %v1756
          %v2496 = vunpack.c.l.b16 %v1757
          %v2497 = vunpack.c.h.b16 %v1757
          %v2498 = vunpack.c.l.b16 %v1758
          %v2499 = vunpack.c.h.b16 %v1758
          %v2500 = vunpack.c.l.b16 %v1759
          %v2501 = vunpack.c.h.b16 %v1759
          %v2502 = vunpack.c.l.b16 %v1760
          %v2503 = vunpack.c.h.b16 %v1760
          %v2504 = vunpack.c.l.b16 %v1761
          %v2505 = vunpack.c.h.b16 %v1761
          %v2506 = vunpack.c.l.b16 %v1762
          %v2507 = vunpack.c.h.b16 %v1762
          %v2508 = vunpack.c.l.b16 %v1763
          %v2509 = vunpack.c.h.b16 %v1763
          %v2510 = vunpack.c.l.b16 %v1764
          %v2511 = vunpack.c.h.b16 %v1764
          %v2512 = vunpack.c.l.b16 %v1765
          %v2513 = vunpack.c.h.b16 %v1765
          %v2514 = vunpack.c.l.b16 %v1766
          %v2515 = vunpack.c.h.b16 %v1766
          %v2516 = vunpack.c.l.b16 %v1767
          %v2517 = vunpack.c.h.b16 %v1767
          %v2518 = vunpack.c.l.b16 %v1768
          %v2519 = vunpack.c.h.b16 %v1768
          %v2520 = vunpack.c.l.b16 %v1769
          %v2521 = vunpack.c.h.b16 %v1769
          %v2522 = vunpack.c.l.b16 %v1770
          %v2523 = vunpack.c.h.b16 %v1770
          %v2524 = vunpack.c.l.b16 %v1771
          %v2525 = vunpack.c.h.b16 %v1771
          %v2526 = vunpack.c.l.b16 %v1772
          %v2527 = vunpack.c.h.b16 %v1772
          %v2528 = vunpack.c.l.b16 %v1773
          %v2529 = vunpack.c.h.b16 %v1773
          %v2530 = vunpack.c.l.b16 %v1774
          %v2531 = vunpack.c.h.b16 %v1774
          %v2532 = vunpack.c.l.b16 %v1775
          %v2533 = vunpack.c.h.b16 %v1775
          %v2534 = vunpack.c.l.b16 %v1776
          %v2535 = vunpack.c.h.b16 %v1776
          %v2536 = vunpack.c.l.b16 %v1777
          %v2537 = vunpack.c.h.b16 %v1777
          %v2538 = vunpack.c.l.b16 %v1778
          %v2539 = vunpack.c.h.b16 %v1778
          %v2540 = vunpack.c.l.b16 %v1779
          %v2541 = vunpack.c.h.b16 %v1779
          %v2542 = vunpack.c.l.b16 %v1780
          %v2543 = vunpack.c.h.b16 %v1780
          %v2544 = vunpack.c.l.b16 %v1781
          %v2545 = vunpack.c.h.b16 %v1781
          %v2546 = vunpack.c.l.b16 %v1782
          %v2547 = vunpack.c.h.b16 %v1782
          %v2548 = vunpack.c.l.b16 %v1783
          %v2549 = vunpack.c.h.b16 %v1783
          %v2550 = vunpack.c.l.b16 %v1784
          %v2551 = vunpack.c.h.b16 %v1784
          %v2552 = vunpack.c.l.b16 %v1785
          %v2553 = vunpack.c.h.b16 %v1785
          %v2554 = vpack.c.b16 %v2050, %v2042
          %v2555 = vpack.c.b16 %v2051, %v2043
          %v2556 = vpack.c.b16 %v2052, %v2044
          %v2557 = vpack.c.b16 %v2053, %v2045
          %v2558 = vpack.c.b16 %v2054, %v2046
          %v2559 = vpack.c.b16 %v2055, %v2047
          %v2560 = vpack.c.b16 %v2056, %v2048
          %v2561 = vpack.c.b16 %v2057, %v2049
          %v2562 = vpack.c.b16 %v2066, %v2058
          %v2563 = vpack.c.b16 %v2067, %v2059
          %v2564 = vpack.c.b16 %v2068, %v2060
          %v2565 = vpack.c.b16 %v2069, %v2061
          %v2566 = vpack.c.b16 %v2070, %v2062
          %v2567 = vpack.c.b16 %v2071, %v2063
          %v2568 = vpack.c.b16 %v2072, %v2064
          %v2569 = vpack.c.b16 %v2073, %v2065
          %v2570 = vpack.c.b16 %v2082, %v2074
          %v2571 = vpack.c.b16 %v2083, %v2075
          %v2572 = vpack.c.b16 %v2084, %v2076
          %v2573 = vpack.c.b16 %v2085, %v2077
          %v2574 = vpack.c.b16 %v2086, %v2078
          %v2575 = vpack.c.b16 %v2087, %v2079
          %v2576 = vpack.c.b16 %v2088, %v2080
          %v2577 = vpack.c.b16 %v2089, %v2081
          %v2578 = vpack.c.b16 %v2098, %v2090
          %v2579 = vpack.c.b16 %v2099, %v2091
          %v2580 = vpack.c.b16 %v2100, %v2092
          %v2581 = vpack.c.b16 %v2101, %v2093
          %v2582 = vpack.c.b16 %v2102, %v2094
          %v2583 = vpack.c.b16 %v2103, %v2095
          %v2584 = vpack.c.b16 %v2104, %v2096
          %v2585 = vpack.c.b16 %v2105, %v2097
          %v2586 = vpack.c.b16 %v2114, %v2106
          %v2587 = vpack.c.b16 %v2115, %v2107
          %v2588 = vpack.c.b16 %v2116, %v2108
          %v2589 = vpack.c.b16 %v2117, %v2109
          %v2590 = vpack.c.b16 %v2118, %v2110
          %v2591 = vpack.c.b16 %v2119, %v2111
          %v2592 = vpack.c.b16 %v2120, %v2112
          %v2593 = vpack.c.b16 %v2121, %v2113
          %v2594 = vpack.c.b16 %v2130, %v2122
          %v2595 = vpack.c.b16 %v2131, %v2123
          %v2596 = vpack.c.b16 %v2132, %v2124
          %v2597 = vpack.c.b16 %v2133, %v2125
          %v2598 = vpack.c.b16 %v2134, %v2126
          %v2599 = vpack.c.b16 %v2135, %v2127
          %v2600 = vpack.c.b16 %v2136, %v2128
          %v2601 = vpack.c.b16 %v2137, %v2129
          %v2602 = vpack.c.b16 %v2146, %v2138
          %v2603 = vpack.c.b16 %v2147, %v2139
          %v2604 = vpack.c.b16 %v2148, %v2140
          %v2605 = vpack.c.b16 %v2149, %v2141
          %v2606 = vpack.c.b16 %v2150, %v2142
          %v2607 = vpack.c.b16 %v2151, %v2143
          %v2608 = vpack.c.b16 %v2152, %v2144
          %v2609 = vpack.c.b16 %v2153, %v2145
          %v2610 = vpack.c.b16 %v2162, %v2154
          %v2611 = vpack.c.b16 %v2163, %v2155
          %v2612 = vpack.c.b16 %v2164, %v2156
          %v2613 = vpack.c.b16 %v2165, %v2157
          %v2614 = vpack.c.b16 %v2166, %v2158
          %v2615 = vpack.c.b16 %v2167, %v2159
          %v2616 = vpack.c.b16 %v2168, %v2160
          %v2617 = vpack.c.b16 %v2169, %v2161
          %v2618 = vpack.c.b16 %v2178, %v2170
          %v2619 = vpack.c.b16 %v2179, %v2171
          %v2620 = vpack.c.b16 %v2180, %v2172
          %v2621 = vpack.c.b16 %v2181, %v2173
          %v2622 = vpack.c.b16 %v2182, %v2174
          %v2623 = vpack.c.b16 %v2183, %v2175
          %v2624 = vpack.c.b16 %v2184, %v2176
          %v2625 = vpack.c.b16 %v2185, %v2177
          %v2626 = vpack.c.b16 %v2194, %v2186
          %v2627 = vpack.c.b16 %v2195, %v2187
          %v2628 = vpack.c.b16 %v2196, %v2188
          %v2629 = vpack.c.b16 %v2197, %v2189
          %v2630 = vpack.c.b16 %v2198, %v2190
          %v2631 = vpack.c.b16 %v2199, %v2191
          %v2632 = vpack.c.b16 %v2200, %v2192
          %v2633 = vpack.c.b16 %v2201, %v2193
          %v2634 = vpack.c.b16 %v2210, %v2202
          %v2635 = vpack.c.b16 %v2211, %v2203
          %v2636 = vpack.c.b16 %v2212, %v2204
          %v2637 = vpack.c.b16 %v2213, %v2205
          %v2638 = vpack.c.b16 %v2214, %v2206
          %v2639 = vpack.c.b16 %v2215, %v2207
          %v2640 = vpack.c.b16 %v2216, %v2208
          %v2641 = vpack.c.b16 %v2217, %v2209
          %v2642 = vpack.c.b16 %v2226, %v2218
          %v2643 = vpack.c.b16 %v2227, %v2219
          %v2644 = vpack.c.b16 %v2228, %v2220
          %v2645 = vpack.c.b16 %v2229, %v2221
          %v2646 = vpack.c.b16 %v2230, %v2222
          %v2647 = vpack.c.b16 %v2231, %v2223
          %v2648 = vpack.c.b16 %v2232, %v2224
          %v2649 = vpack.c.b16 %v2233, %v2225
          %v2650 = vpack.c.b16 %v2242, %v2234
          %v2651 = vpack.c.b16 %v2243, %v2235
          %v2652 = vpack.c.b16 %v2244, %v2236
          %v2653 = vpack.c.b16 %v2245, %v2237
          %v2654 = vpack.c.b16 %v2246, %v2238
          %v2655 = vpack.c.b16 %v2247, %v2239
          %v2656 = vpack.c.b16 %v2248, %v2240
          %v2657 = vpack.c.b16 %v2249, %v2241
          %v2658 = vpack.c.b16 %v2258, %v2250
          %v2659 = vpack.c.b16 %v2259, %v2251
          %v2660 = vpack.c.b16 %v2260, %v2252
          %v2661 = vpack.c.b16 %v2261, %v2253
          %v2662 = vpack.c.b16 %v2262, %v2254
          %v2663 = vpack.c.b16 %v2263, %v2255
          %v2664 = vpack.c.b16 %v2264, %v2256
          %v2665 = vpack.c.b16 %v2265, %v2257
          %v2666 = vpack.c.b16 %v2274, %v2266
          %v2667 = vpack.c.b16 %v2275, %v2267
          %v2668 = vpack.c.b16 %v2276, %v2268
          %v2669 = vpack.c.b16 %v2277, %v2269
          %v2670 = vpack.c.b16 %v2278, %v2270
          %v2671 = vpack.c.b16 %v2279, %v2271
          %v2672 = vpack.c.b16 %v2280, %v2272
          %v2673 = vpack.c.b16 %v2281, %v2273
          %v2674 = vpack.c.b16 %v2290, %v2282
          %v2675 = vpack.c.b16 %v2291, %v2283
          %v2676 = vpack.c.b16 %v2292, %v2284
          %v2677 = vpack.c.b16 %v2293, %v2285
          %v2678 = vpack.c.b16 %v2294, %v2286
          %v2679 = vpack.c.b16 %v2295, %v2287
          %v2680 = vpack.c.b16 %v2296, %v2288
          %v2681 = vpack.c.b16 %v2297, %v2289
          %v2682 = vpack.c.b16 %v2306, %v2298
          %v2683 = vpack.c.b16 %v2307, %v2299
          %v2684 = vpack.c.b16 %v2308, %v2300
          %v2685 = vpack.c.b16 %v2309, %v2301
          %v2686 = vpack.c.b16 %v2310, %v2302
          %v2687 = vpack.c.b16 %v2311, %v2303
          %v2688 = vpack.c.b16 %v2312, %v2304
          %v2689 = vpack.c.b16 %v2313, %v2305
          %v2690 = vpack.c.b16 %v2322, %v2314
          %v2691 = vpack.c.b16 %v2323, %v2315
          %v2692 = vpack.c.b16 %v2324, %v2316
          %v2693 = vpack.c.b16 %v2325, %v2317
          %v2694 = vpack.c.b16 %v2326, %v2318
          %v2695 = vpack.c.b16 %v2327, %v2319
          %v2696 = vpack.c.b16 %v2328, %v2320
          %v2697 = vpack.c.b16 %v2329, %v2321
          %v2698 = vpack.c.b16 %v2338, %v2330
          %v2699 = vpack.c.b16 %v2339, %v2331
          %v2700 = vpack.c.b16 %v2340, %v2332
          %v2701 = vpack.c.b16 %v2341, %v2333
          %v2702 = vpack.c.b16 %v2342, %v2334
          %v2703 = vpack.c.b16 %v2343, %v2335
          %v2704 = vpack.c.b16 %v2344, %v2336
          %v2705 = vpack.c.b16 %v2345, %v2337
          %v2706 = vpack.c.b16 %v2354, %v2346
          %v2707 = vpack.c.b16 %v2355, %v2347
          %v2708 = vpack.c.b16 %v2356, %v2348
          %v2709 = vpack.c.b16 %v2357, %v2349
          %v2710 = vpack.c.b16 %v2358, %v2350
          %v2711 = vpack.c.b16 %v2359, %v2351
          %v2712 = vpack.c.b16 %v2360, %v2352
          %v2713 = vpack.c.b16 %v2361, %v2353
          %v2714 = vpack.c.b16 %v2370, %v2362
          %v2715 = vpack.c.b16 %v2371, %v2363
          %v2716 = vpack.c.b16 %v2372, %v2364
          %v2717 = vpack.c.b16 %v2373, %v2365
          %v2718 = vpack.c.b16 %v2374, %v2366
          %v2719 = vpack.c.b16 %v2375, %v2367
          %v2720 = vpack.c.b16 %v2376, %v2368
          %v2721 = vpack.c.b16 %v2377, %v2369
          %v2722 = vpack.c.b16 %v2386, %v2378
          %v2723 = vpack.c.b16 %v2387, %v2379
          %v2724 = vpack.c.b16 %v2388, %v2380
          %v2725 = vpack.c.b16 %v2389, %v2381
          %v2726 = vpack.c.b16 %v2390, %v2382
          %v2727 = vpack.c.b16 %v2391, %v2383
          %v2728 = vpack.c.b16 %v2392, %v2384
          %v2729 = vpack.c.b16 %v2393, %v2385
          %v2730 = vpack.c.b16 %v2402, %v2394
          %v2731 = vpack.c.b16 %v2403, %v2395
          %v2732 = vpack.c.b16 %v2404, %v2396
          %v2733 = vpack.c.b16 %v2405, %v2397
          %v2734 = vpack.c.b16 %v2406, %v2398
          %v2735 = vpack.c.b16 %v2407, %v2399
          %v2736 = vpack.c.b16 %v2408, %v2400
          %v2737 = vpack.c.b16 %v2409, %v2401
          %v2738 = vpack.c.b16 %v2418, %v2410
          %v2739 = vpack.c.b16 %v2419, %v2411
          %v2740 = vpack.c.b16 %v2420, %v2412
          %v2741 = vpack.c.b16 %v2421, %v2413
          %v2742 = vpack.c.b16 %v2422, %v2414
          %v2743 = vpack.c.b16 %v2423, %v2415
          %v2744 = vpack.c.b16 %v2424, %v2416
          %v2745 = vpack.c.b16 %v2425, %v2417
          %v2746 = vpack.c.b16 %v2434, %v2426
          %v2747 = vpack.c.b16 %v2435, %v2427
          %v2748 = vpack.c.b16 %v2436, %v2428
          %v2749 = vpack.c.b16 %v2437, %v2429
          %v2750 = vpack.c.b16 %v2438, %v2430
          %v2751 = vpack.c.b16 %v2439, %v2431
          %v2752 = vpack.c.b16 %v2440, %v2432
          %v2753 = vpack.c.b16 %v2441, %v2433
          %v2754 = vpack.c.b16 %v2450, %v2442
          %v2755 = vpack.c.b16 %v2451, %v2443
          %v2756 = vpack.c.b16 %v2452, %v2444
          %v2757 = vpack.c.b16 %v2453, %v2445
          %v2758 = vpack.c.b16 %v2454, %v2446
          %v2759 = vpack.c.b16 %v2455, %v2447
          %v2760 = vpack.c.b16 %v2456, %v2448
          %v2761 = vpack.c.b16 %v2457, %v2449
          %v2762 = vpack.c.b16 %v2466, %v2458
          %v2763 = vpack.c.b16 %v2467, %v2459
          %v2764 = vpack.c.b16 %v2468, %v2460
          %v2765 = vpack.c.b16 %v2469, %v2461
          %v2766 = vpack.c.b16 %v2470, %v2462
          %v2767 = vpack.c.b16 %v2471, %v2463
          %v2768 = vpack.c.b16 %v2472, %v2464
          %v2769 = vpack.c.b16 %v2473, %v2465
          %v2770 = vpack.c.b16 %v2482, %v2474
          %v2771 = vpack.c.b16 %v2483, %v2475
          %v2772 = vpack.c.b16 %v2484, %v2476
          %v2773 = vpack.c.b16 %v2485, %v2477
          %v2774 = vpack.c.b16 %v2486, %v2478
          %v2775 = vpack.c.b16 %v2487, %v2479
          %v2776 = vpack.c.b16 %v2488, %v2480
          %v2777 = vpack.c.b16 %v2489, %v2481
          %v2778 = vpack.c.b16 %v2498, %v2490
          %v2779 = vpack.c.b16 %v2499, %v2491
          %v2780 = vpack.c.b16 %v2500, %v2492
          %v2781 = vpack.c.b16 %v2501, %v2493
          %v2782 = vpack.c.b16 %v2502, %v2494
          %v2783 = vpack.c.b16 %v2503, %v2495
          %v2784 = vpack.c.b16 %v2504, %v2496
          %v2785 = vpack.c.b16 %v2505, %v2497
          %v2786 = vpack.c.b16 %v2514, %v2506
          %v2787 = vpack.c.b16 %v2515, %v2507
          %v2788 = vpack.c.b16 %v2516, %v2508
          %v2789 = vpack.c.b16 %v2517, %v2509
          %v2790 = vpack.c.b16 %v2518, %v2510
          %v2791 = vpack.c.b16 %v2519, %v2511
          %v2792 = vpack.c.b16 %v2520, %v2512
          %v2793 = vpack.c.b16 %v2521, %v2513
          %v2794 = vpack.c.b16 %v2530, %v2522
          %v2795 = vpack.c.b16 %v2531, %v2523
          %v2796 = vpack.c.b16 %v2532, %v2524
          %v2797 = vpack.c.b16 %v2533, %v2525
          %v2798 = vpack.c.b16 %v2534, %v2526
          %v2799 = vpack.c.b16 %v2535, %v2527
          %v2800 = vpack.c.b16 %v2536, %v2528
          %v2801 = vpack.c.b16 %v2537, %v2529
          %v2802 = vpack.c.b16 %v2546, %v2538
          %v2803 = vpack.c.b16 %v2547, %v2539
          %v2804 = vpack.c.b16 %v2548, %v2540
          %v2805 = vpack.c.b16 %v2549, %v2541
          %v2806 = vpack.c.b16 %v2550, %v2542
          %v2807 = vpack.c.b16 %v2551, %v2543
          %v2808 = vpack.c.b16 %v2552, %v2544
          %v2809 = vpack.c.b16 %v2553, %v2545
          %3066 = vmatprep.subr.bf16.mxu0 %v2555
          %3067 = vmatpush1.bf16.msra.mxu0 %v2554
          %3068 = vmatprep.subr.bf16.mxu0 %v2563
          %3069 = vmatpush1.bf16.msra.mxu0 %v2562
          %3070 = vmatprep.subr.bf16.mxu0 %v2571
          %3071 = vmatpush1.bf16.msra.mxu0 %v2570
          %3072 = vmatprep.subr.bf16.mxu0 %v2579
          %3073 = vmatpush1.bf16.msra.mxu0 %v2578
          %3074 = vmatprep.subr.bf16.mxu0 %v2587
          %3075 = vmatpush1.bf16.msra.mxu0 %v2586
          %3076 = vmatprep.subr.bf16.mxu0 %v2595
          %3077 = vmatpush1.bf16.msra.mxu0 %v2594
          %3078 = vmatprep.subr.bf16.mxu0 %v2603
          %3079 = vmatpush1.bf16.msra.mxu0 %v2602
          %3080 = vmatprep.subr.bf16.mxu0 %v2611
          %3081 = vmatpush1.bf16.msra.mxu0 %v2610
          %3082 = vmatprep.subr.bf16.mxu0 %v2619
          %3083 = vmatpush1.bf16.msra.mxu0 %v2618
          %3084 = vmatprep.subr.bf16.mxu0 %v2627
          %3085 = vmatpush1.bf16.msra.mxu0 %v2626
          %3086 = vmatprep.subr.bf16.mxu0 %v2635
          %3087 = vmatpush1.bf16.msra.mxu0 %v2634
          %3088 = vmatprep.subr.bf16.mxu0 %v2643
          %3089 = vmatpush1.bf16.msra.mxu0 %v2642
          %3090 = vmatprep.subr.bf16.mxu0 %v2651
          %3091 = vmatpush1.bf16.msra.mxu0 %v2650
          %3092 = vmatprep.subr.bf16.mxu0 %v2659
          %3093 = vmatpush1.bf16.msra.mxu0 %v2658
          %3094 = vmatprep.subr.bf16.mxu0 %v2667
          %3095 = vmatpush1.bf16.msra.mxu0 %v2666
          %3096 = vmatprep.subr.bf16.mxu0 %v2675
          %3097 = vmatpush1.bf16.msra.mxu0 %v2674
          %3098 = vmatprep.mubr.bf16.mxu0 %v1527
          %3099 = vmatmul.mubr.bf16.gmra.mrb[0].mxu0 %v1526
          %v3100 = vpop.f32.mrb[0].mxu0
          %v3101 = vadd.f32 0.0, %v3100
          %v3102 = vpop.f32.mrb[0].mxu0
          %v3103 = vadd.f32 0.0, %v3102
          %v3104 = vpop.f32.mrb[0].mxu0
          %v3105 = vpop.f32.mrb[0].mxu0
          %3106 = vdwg.mxu0
          %3107 = vmatprep.subr.bf16.mxu0 %v2683
          %3108 = vmatpush1.bf16.msra.mxu0 %v2682
          %3109 = vmatprep.subr.bf16.mxu0 %v2691
          %3110 = vmatpush1.bf16.msra.mxu0 %v2690
          %3111 = vmatprep.subr.bf16.mxu0 %v2699
          %3112 = vmatpush1.bf16.msra.mxu0 %v2698
          %3113 = vmatprep.subr.bf16.mxu0 %v2707
          %3114 = vmatpush1.bf16.msra.mxu0 %v2706
          %3115 = vmatprep.subr.bf16.mxu0 %v2715
          %3116 = vmatpush1.bf16.msra.mxu0 %v2714
          %3117 = vmatprep.subr.bf16.mxu0 %v2723
          %3118 = vmatpush1.bf16.msra.mxu0 %v2722
          %3119 = vmatprep.subr.bf16.mxu0 %v2731
          %3120 = vmatpush1.bf16.msra.mxu0 %v2730
          %3121 = vmatprep.subr.bf16.mxu0 %v2739
          %3122 = vmatpush1.bf16.msra.mxu0 %v2738
          %3123 = vmatprep.subr.bf16.mxu0 %v2747
          %3124 = vmatpush1.bf16.msra.mxu0 %v2746
          %3125 = vmatprep.subr.bf16.mxu0 %v2755
          %3126 = vmatpush1.bf16.msra.mxu0 %v2754
          %3127 = vmatprep.subr.bf16.mxu0 %v2763
          %3128 = vmatpush1.bf16.msra.mxu0 %v2762
          %3129 = vmatprep.subr.bf16.mxu0 %v2771
          %3130 = vmatpush1.bf16.msra.mxu0 %v2770
          %3131 = vmatprep.subr.bf16.mxu0 %v2779
          %3132 = vmatpush1.bf16.msra.mxu0 %v2778
          %3133 = vmatprep.subr.bf16.mxu0 %v2787
          %3134 = vmatpush1.bf16.msra.mxu0 %v2786
          %3135 = vmatprep.subr.bf16.mxu0 %v2795
          %3136 = vmatpush1.bf16.msra.mxu0 %v2794
          %3137 = vmatprep.subr.bf16.mxu0 %v2803
          %3138 = vmatpush1.bf16.msra.mxu0 %v2802
          %3139 = vmatprep.mubr.bf16.mxu0 %v1529
          %3140 = vmatmul.mubr.bf16.gmra.mrb[0].mxu0 %v1528
          %v3141 = vpop.f32.mrb[0].mxu0
          %v3142 = vadd.f32 %v3101, %v3141
          %v3143 = vpop.f32.mrb[0].mxu0
          %v3144 = vadd.f32 %v3103, %v3143
          %v3145 = vpop.f32.mrb[0].mxu0
          %v3146 = vpop.f32.mrb[0].mxu0
          %3147 = vdwg.mxu0
          %3148 = vmatprep.subr.bf16.mxu0 %v2557
          %3149 = vmatpush1.bf16.msra.mxu0 %v2556
          %3150 = vmatprep.subr.bf16.mxu0 %v2565
          %3151 = vmatpush1.bf16.msra.mxu0 %v2564
          %3152 = vmatprep.subr.bf16.mxu0 %v2573
          %3153 = vmatpush1.bf16.msra.mxu0 %v2572
          %3154 = vmatprep.subr.bf16.mxu0 %v2581
          %3155 = vmatpush1.bf16.msra.mxu0 %v2580
          %3156 = vmatprep.subr.bf16.mxu0 %v2589
          %3157 = vmatpush1.bf16.msra.mxu0 %v2588
          %3158 = vmatprep.subr.bf16.mxu0 %v2597
          %3159 = vmatpush1.bf16.msra.mxu0 %v2596
          %3160 = vmatprep.subr.bf16.mxu0 %v2605
          %3161 = vmatpush1.bf16.msra.mxu0 %v2604
          %3162 = vmatprep.subr.bf16.mxu0 %v2613
          %3163 = vmatpush1.bf16.msra.mxu0 %v2612
          %3164 = vmatprep.subr.bf16.mxu0 %v2621
          %3165 = vmatpush1.bf16.msra.mxu0 %v2620
          %3166 = vmatprep.subr.bf16.mxu0 %v2629
          %3167 = vmatpush1.bf16.msra.mxu0 %v2628
          %3168 = vmatprep.subr.bf16.mxu0 %v2637
          %3169 = vmatpush1.bf16.msra.mxu0 %v2636
          %3170 = vmatprep.subr.bf16.mxu0 %v2645
          %3171 = vmatpush1.bf16.msra.mxu0 %v2644
          %3172 = vmatprep.subr.bf16.mxu0 %v2653
          %3173 = vmatpush1.bf16.msra.mxu0 %v2652
          %3174 = vmatprep.subr.bf16.mxu0 %v2661
          %3175 = vmatpush1.bf16.msra.mxu0 %v2660
          %3176 = vmatprep.subr.bf16.mxu0 %v2669
          %3177 = vmatpush1.bf16.msra.mxu0 %v2668
          %3178 = vmatprep.subr.bf16.mxu0 %v2677
          %3179 = vmatpush1.bf16.msra.mxu0 %v2676
          %3180 = vmatprep.mubr.bf16.mxu0 %v1527
          %3181 = vmatmul.mubr.bf16.gmra.mrb[0].mxu0 %v1526
          %v3182 = vpop.f32.mrb[0].mxu0
          %v3183 = vadd.f32 0.0, %v3182
          %v3184 = vpop.f32.mrb[0].mxu0
          %v3185 = vadd.f32 0.0, %v3184
          %v3186 = vpop.f32.mrb[0].mxu0
          %v3187 = vpop.f32.mrb[0].mxu0
          %3188 = vdwg.mxu0
          %3189 = vmatprep.subr.bf16.mxu0 %v2685
          %3190 = vmatpush1.bf16.msra.mxu0 %v2684
          %3191 = vmatprep.subr.bf16.mxu0 %v2693
          %3192 = vmatpush1.bf16.msra.mxu0 %v2692
          %3193 = vmatprep.subr.bf16.mxu0 %v2701
          %3194 = vmatpush1.bf16.msra.mxu0 %v2700
          %3195 = vmatprep.subr.bf16.mxu0 %v2709
          %3196 = vmatpush1.bf16.msra.mxu0 %v2708
          %3197 = vmatprep.subr.bf16.mxu0 %v2717
          %3198 = vmatpush1.bf16.msra.mxu0 %v2716
          %3199 = vmatprep.subr.bf16.mxu0 %v2725
          %3200 = vmatpush1.bf16.msra.mxu0 %v2724
          %3201 = vmatprep.subr.bf16.mxu0 %v2733
          %3202 = vmatpush1.bf16.msra.mxu0 %v2732
          %3203 = vmatprep.subr.bf16.mxu0 %v2741
          %3204 = vmatpush1.bf16.msra.mxu0 %v2740
          %3205 = vmatprep.subr.bf16.mxu0 %v2749
          %3206 = vmatpush1.bf16.msra.mxu0 %v2748
          %3207 = vmatprep.subr.bf16.mxu0 %v2757
          %3208 = vmatpush1.bf16.msra.mxu0 %v2756
          %3209 = vmatprep.subr.bf16.mxu0 %v2765
          %3210 = vmatpush1.bf16.msra.mxu0 %v2764
          %3211 = vmatprep.subr.bf16.mxu0 %v2773
          %3212 = vmatpush1.bf16.msra.mxu0 %v2772
          %3213 = vmatprep.subr.bf16.mxu0 %v2781
          %3214 = vmatpush1.bf16.msra.mxu0 %v2780
          %3215 = vmatprep.subr.bf16.mxu0 %v2789
          %3216 = vmatpush1.bf16.msra.mxu0 %v2788
          %3217 = vmatprep.subr.bf16.mxu0 %v2797
          %3218 = vmatpush1.bf16.msra.mxu0 %v2796
          %3219 = vmatprep.subr.bf16.mxu0 %v2805
          %3220 = vmatpush1.bf16.msra.mxu0 %v2804
          %3221 = vmatprep.mubr.bf16.mxu0 %v1529
          %3222 = vmatmul.mubr.bf16.gmra.mrb[0].mxu0 %v1528
          %v3223 = vpop.f32.mrb[0].mxu0
          %v3224 = vadd.f32 %v3183, %v3223
          %v3225 = vpop.f32.mrb[0].mxu0
          %v3226 = vadd.f32 %v3185, %v3225
          %v3227 = vpop.f32.mrb[0].mxu0
          %v3228 = vpop.f32.mrb[0].mxu0
          %3229 = vdwg.mxu0
          %3230 = vmatprep.subr.bf16.mxu0 %v2559
          %3231 = vmatpush1.bf16.msra.mxu0 %v2558
          %3232 = vmatprep.subr.bf16.mxu0 %v2567
          %3233 = vmatpush1.bf16.msra.mxu0 %v2566
          %3234 = vmatprep.subr.bf16.mxu0 %v2575
          %3235 = vmatpush1.bf16.msra.mxu0 %v2574
          %3236 = vmatprep.subr.bf16.mxu0 %v2583
          %3237 = vmatpush1.bf16.msra.mxu0 %v2582
          %3238 = vmatprep.subr.bf16.mxu0 %v2591
          %3239 = vmatpush1.bf16.msra.mxu0 %v2590
          %3240 = vmatprep.subr.bf16.mxu0 %v2599
          %3241 = vmatpush1.bf16.msra.mxu0 %v2598
          %3242 = vmatprep.subr.bf16.mxu0 %v2607
          %3243 = vmatpush1.bf16.msra.mxu0 %v2606
          %3244 = vmatprep.subr.bf16.mxu0 %v2615
          %3245 = vmatpush1.bf16.msra.mxu0 %v2614
          %3246 = vmatprep.subr.bf16.mxu0 %v2623
          %3247 = vmatpush1.bf16.msra.mxu0 %v2622
          %3248 = vmatprep.subr.bf16.mxu0 %v2631
          %3249 = vmatpush1.bf16.msra.mxu0 %v2630
          %3250 = vmatprep.subr.bf16.mxu0 %v2639
          %3251 = vmatpush1.bf16.msra.mxu0 %v2638
          %3252 = vmatprep.subr.bf16.mxu0 %v2647
          %3253 = vmatpush1.bf16.msra.mxu0 %v2646
          %3254 = vmatprep.subr.bf16.mxu0 %v2655
          %3255 = vmatpush1.bf16.msra.mxu0 %v2654
          %3256 = vmatprep.subr.bf16.mxu0 %v2663
          %3257 = vmatpush1.bf16.msra.mxu0 %v2662
          %3258 = vmatprep.subr.bf16.mxu0 %v2671
          %3259 = vmatpush1.bf16.msra.mxu0 %v2670
          %3260 = vmatprep.subr.bf16.mxu0 %v2679
          %3261 = vmatpush1.bf16.msra.mxu0 %v2678
          %3262 = vmatprep.mubr.bf16.mxu0 %v1527
          %3263 = vmatmul.mubr.bf16.gmra.mrb[0].mxu0 %v1526
          %v3264 = vpop.f32.mrb[0].mxu0
          %v3265 = vadd.f32 0.0, %v3264
          %v3266 = vpop.f32.mrb[0].mxu0
          %v3267 = vadd.f32 0.0, %v3266
          %v3268 = vpop.f32.mrb[0].mxu0
          %v3269 = vpop.f32.mrb[0].mxu0
          %3270 = vdwg.mxu0
          %3271 = vmatprep.subr.bf16.mxu0 %v2687
          %3272 = vmatpush1.bf16.msra.mxu0 %v2686
          %3273 = vmatprep.subr.bf16.mxu0 %v2695
          %3274 = vmatpush1.bf16.msra.mxu0 %v2694
          %3275 = vmatprep.subr.bf16.mxu0 %v2703
          %3276 = vmatpush1.bf16.msra.mxu0 %v2702
          %3277 = vmatprep.subr.bf16.mxu0 %v2711
          %3278 = vmatpush1.bf16.msra.mxu0 %v2710
          %3279 = vmatprep.subr.bf16.mxu0 %v2719
          %3280 = vmatpush1.bf16.msra.mxu0 %v2718
          %3281 = vmatprep.subr.bf16.mxu0 %v2727
          %3282 = vmatpush1.bf16.msra.mxu0 %v2726
          %3283 = vmatprep.subr.bf16.mxu0 %v2735
          %3284 = vmatpush1.bf16.msra.mxu0 %v2734
          %3285 = vmatprep.subr.bf16.mxu0 %v2743
          %3286 = vmatpush1.bf16.msra.mxu0 %v2742
          %3287 = vmatprep.subr.bf16.mxu0 %v2751
          %3288 = vmatpush1.bf16.msra.mxu0 %v2750
          %3289 = vmatprep.subr.bf16.mxu0 %v2759
          %3290 = vmatpush1.bf16.msra.mxu0 %v2758
          %3291 = vmatprep.subr.bf16.mxu0 %v2767
          %3292 = vmatpush1.bf16.msra.mxu0 %v2766
          %3293 = vmatprep.subr.bf16.mxu0 %v2775
          %3294 = vmatpush1.bf16.msra.mxu0 %v2774
          %3295 = vmatprep.subr.bf16.mxu0 %v2783
          %3296 = vmatpush1.bf16.msra.mxu0 %v2782
          %3297 = vmatprep.subr.bf16.mxu0 %v2791
          %3298 = vmatpush1.bf16.msra.mxu0 %v2790
          %3299 = vmatprep.subr.bf16.mxu0 %v2799
          %3300 = vmatpush1.bf16.msra.mxu0 %v2798
          %3301 = vmatprep.subr.bf16.mxu0 %v2807
          %3302 = vmatpush1.bf16.msra.mxu0 %v2806
          %3303 = vmatprep.mubr.bf16.mxu0 %v1529
          %3304 = vmatmul.mubr.bf16.gmra.mrb[0].mxu0 %v1528
          %v3305 = vpop.f32.mrb[0].mxu0
          %v3306 = vadd.f32 %v3265, %v3305
          %v3307 = vpop.f32.mrb[0].mxu0
          %v3308 = vadd.f32 %v3267, %v3307
          %v3309 = vpop.f32.mrb[0].mxu0
          %v3310 = vpop.f32.mrb[0].mxu0
          %3311 = vdwg.mxu0
          %3312 = vmatprep.subr.bf16.mxu0 %v2561
          %3313 = vmatpush1.bf16.msra.mxu0 %v2560
          %3314 = vmatprep.subr.bf16.mxu0 %v2569
          %3315 = vmatpush1.bf16.msra.mxu0 %v2568
          %3316 = vmatprep.subr.bf16.mxu0 %v2577
          %3317 = vmatpush1.bf16.msra.mxu0 %v2576
          %3318 = vmatprep.subr.bf16.mxu0 %v2585
          %3319 = vmatpush1.bf16.msra.mxu0 %v2584
          %3320 = vmatprep.subr.bf16.mxu0 %v2593
          %3321 = vmatpush1.bf16.msra.mxu0 %v2592
          %3322 = vmatprep.subr.bf16.mxu0 %v2601
          %3323 = vmatpush1.bf16.msra.mxu0 %v2600
          %3324 = vmatprep.subr.bf16.mxu0 %v2609
          %3325 = vmatpush1.bf16.msra.mxu0 %v2608
          %3326 = vmatprep.subr.bf16.mxu0 %v2617
          %3327 = vmatpush1.bf16.msra.mxu0 %v2616
          %3328 = vmatprep.subr.bf16.mxu0 %v2625
          %3329 = vmatpush1.bf16.msra.mxu0 %v2624
          %3330 = vmatprep.subr.bf16.mxu0 %v2633
          %3331 = vmatpush1.bf16.msra.mxu0 %v2632
          %3332 = vmatprep.subr.bf16.mxu0 %v2641
          %3333 = vmatpush1.bf16.msra.mxu0 %v2640
          %3334 = vmatprep.subr.bf16.mxu0 %v2649
          %3335 = vmatpush1.bf16.msra.mxu0 %v2648
          %3336 = vmatprep.subr.bf16.mxu0 %v2657
          %3337 = vmatpush1.bf16.msra.mxu0 %v2656
          %3338 = vmatprep.subr.bf16.mxu0 %v2665
          %3339 = vmatpush1.bf16.msra.mxu0 %v2664
          %3340 = vmatprep.subr.bf16.mxu0 %v2673
          %3341 = vmatpush1.bf16.msra.mxu0 %v2672
          %3342 = vmatprep.subr.bf16.mxu0 %v2681
          %3343 = vmatpush1.bf16.msra.mxu0 %v2680
          %3344 = vmatprep.mubr.bf16.mxu0 %v1527
          %3345 = vmatmul.mubr.bf16.gmra.mrb[0].mxu0 %v1526
          %v3346 = vpop.f32.mrb[0].mxu0
          %v3347 = vadd.f32 0.0, %v3346
          %v3348 = vpop.f32.mrb[0].mxu0
          %v3349 = vadd.f32 0.0, %v3348
          %v3350 = vpop.f32.mrb[0].mxu0
          %v3351 = vpop.f32.mrb[0].mxu0
          %3352 = vdwg.mxu0
          %3353 = vmatprep.subr.bf16.mxu0 %v2689
          %3354 = vmatpush1.bf16.msra.mxu0 %v2688
          %3355 = vmatprep.subr.bf16.mxu0 %v2697
          %3356 = vmatpush1.bf16.msra.mxu0 %v2696
          %3357 = vmatprep.subr.bf16.mxu0 %v2705
          %3358 = vmatpush1.bf16.msra.mxu0 %v2704
          %3359 = vmatprep.subr.bf16.mxu0 %v2713
          %3360 = vmatpush1.bf16.msra.mxu0 %v2712
          %3361 = vmatprep.subr.bf16.mxu0 %v2721
          %3362 = vmatpush1.bf16.msra.mxu0 %v2720
          %3363 = vmatprep.subr.bf16.mxu0 %v2729
          %3364 = vmatpush1.bf16.msra.mxu0 %v2728
          %3365 = vmatprep.subr.bf16.mxu0 %v2737
          %3366 = vmatpush1.bf16.msra.mxu0 %v2736
          %3367 = vmatprep.subr.bf16.mxu0 %v2745
          %3368 = vmatpush1.bf16.msra.mxu0 %v2744
          %3369 = vmatprep.subr.bf16.mxu0 %v2753
          %3370 = vmatpush1.bf16.msra.mxu0 %v2752
          %3371 = vmatprep.subr.bf16.mxu0 %v2761
          %3372 = vmatpush1.bf16.msra.mxu0 %v2760
          %3373 = vmatprep.subr.bf16.mxu0 %v2769
          %3374 = vmatpush1.bf16.msra.mxu0 %v2768
          %3375 = vmatprep.subr.bf16.mxu0 %v2777
          %3376 = vmatpush1.bf16.msra.mxu0 %v2776
          %3377 = vmatprep.subr.bf16.mxu0 %v2785
          %3378 = vmatpush1.bf16.msra.mxu0 %v2784
          %3379 = vmatprep.subr.bf16.mxu0 %v2793
          %3380 = vmatpush1.bf16.msra.mxu0 %v2792
          %3381 = vmatprep.subr.bf16.mxu0 %v2801
          %3382 = vmatpush1.bf16.msra.mxu0 %v2800
          %3383 = vmatprep.subr.bf16.mxu0 %v2809
          %3384 = vmatpush1.bf16.msra.mxu0 %v2808
          %3385 = vmatprep.mubr.bf16.mxu0 %v1529
          %3386 = vmatmul.mubr.bf16.gmra.mrb[0].mxu0 %v1528
          %v3387 = vpop.f32.mrb[0].mxu0
          %v3388 = vadd.f32 %v3347, %v3387
          %v3389 = vpop.f32.mrb[0].mxu0
          %v3390 = vadd.f32 %v3349, %v3389
          %v3391 = vpop.f32.mrb[0].mxu0
          %v3392 = vpop.f32.mrb[0].mxu0
          %3393 = vdwg.mxu0
          %v3394 = vld [vmem:[%s10] sm:$0xff]
          %v3395 = vld [vmem:[%s11] sm:$0xff]
          %v3396 = vmul.f32 %v3142, %v595
          %v3397 = vmul.f32 %v3144, %v595
          %v3398 = vmul.f32 %v3224, %v595
          %v3399 = vmul.f32 %v3226, %v595
          %v3400 = vmul.f32 %v3306, %v595
          %v3401 = vmul.f32 %v3308, %v595
          %v3402 = vmul.f32 %v3388, %v595
          %v3403 = vmul.f32 %v3390, %v595
          %v3404 = vrot.slane %v3396, 4
          %v3405 = vadd.f32 %v3396, %v3404
          %v3406 = vrot.slane %v3405, 2
          %v3407 = vadd.f32 %v3405, %v3406
          %v3408 = vrot.slane %v3407, 1
          %v3409 = vadd.f32 %v3407, %v3408
          %v3410 = vrot.slane %v3397, 4
          %v3411 = vadd.f32 %v3397, %v3410
          %v3412 = vrot.slane %v3411, 2
          %v3413 = vadd.f32 %v3411, %v3412
          %v3414 = vrot.slane %v3413, 1
          %v3415 = vadd.f32 %v3413, %v3414
          %v3416 = vrot.slane %v3398, 4
          %v3417 = vadd.f32 %v3398, %v3416
          %v3418 = vrot.slane %v3417, 2
          %v3419 = vadd.f32 %v3417, %v3418
          %v3420 = vrot.slane %v3419, 1
          %v3421 = vadd.f32 %v3419, %v3420
          %v3422 = vrot.slane %v3399, 4
          %v3423 = vadd.f32 %v3399, %v3422
          %v3424 = vrot.slane %v3423, 2
          %v3425 = vadd.f32 %v3423, %v3424
          %v3426 = vrot.slane %v3425, 1
          %v3427 = vadd.f32 %v3425, %v3426
          %v3428 = vrot.slane %v3400, 4
          %v3429 = vadd.f32 %v3400, %v3428
          %v3430 = vrot.slane %v3429, 2
          %v3431 = vadd.f32 %v3429, %v3430
          %v3432 = vrot.slane %v3431, 1
          %v3433 = vadd.f32 %v3431, %v3432
          %v3434 = vrot.slane %v3401, 4
          %v3435 = vadd.f32 %v3401, %v3434
          %v3436 = vrot.slane %v3435, 2
          %v3437 = vadd.f32 %v3435, %v3436
          %v3438 = vrot.slane %v3437, 1
          %v3439 = vadd.f32 %v3437, %v3438
          %v3440 = vrot.slane %v3402, 4
          %v3441 = vadd.f32 %v3402, %v3440
          %v3442 = vrot.slane %v3441, 2
          %v3443 = vadd.f32 %v3441, %v3442
          %v3444 = vrot.slane %v3443, 1
          %v3445 = vadd.f32 %v3443, %v3444
          %v3446 = vrot.slane %v3403, 4
          %v3447 = vadd.f32 %v3403, %v3446
          %v3448 = vrot.slane %v3447, 2
          %v3449 = vadd.f32 %v3447, %v3448
          %v3450 = vrot.slane %v3449, 1
          %v3451 = vadd.f32 %v3449, %v3450
          %v3452 = vmul.f32 %v3409, 0.25
          %v3453 = vmul.f32 %v3415, 0.25
          %v3454 = vmul.f32 %v3421, 0.25
          %v3455 = vmul.f32 %v3427, 0.25
          %v3456 = vmul.f32 %v3433, 0.25
          %v3457 = vmul.f32 %v3439, 0.25
          %v3458 = vmul.f32 %v3445, 0.25
          %v3459 = vmul.f32 %v3451, 0.25
          %v3460 = vsub.f32 %v3142, %v3452
          %v3461 = vsub.f32 %v3144, %v3453
          %v3462 = vsub.f32 %v3224, %v3454
          %v3463 = vsub.f32 %v3226, %v3455
          %v3464 = vsub.f32 %v3306, %v3456
          %v3465 = vsub.f32 %v3308, %v3457
          %v3466 = vsub.f32 %v3388, %v3458
          %v3467 = vsub.f32 %v3390, %v3459
          %v3468 = vmul.f32 %v3460, %v3460
          %v3469 = vmul.f32 %v3461, %v3461
          %v3470 = vmul.f32 %v3462, %v3462
          %v3471 = vmul.f32 %v3463, %v3463
          %v3472 = vmul.f32 %v3464, %v3464
          %v3473 = vmul.f32 %v3465, %v3465
          %v3474 = vmul.f32 %v3466, %v3466
          %v3475 = vmul.f32 %v3467, %v3467
          %v3476 = vmul.f32 %v3468, %v595
          %v3477 = vmul.f32 %v3469, %v595
          %v3478 = vmul.f32 %v3470, %v595
          %v3479 = vmul.f32 %v3471, %v595
          %v3480 = vmul.f32 %v3472, %v595
          %v3481 = vmul.f32 %v3473, %v595
          %v3482 = vmul.f32 %v3474, %v595
          %v3483 = vmul.f32 %v3475, %v595
          %v3484 = vrot.slane %v3476, 4
          %v3485 = vadd.f32 %v3476, %v3484
          %v3486 = vrot.slane %v3485, 2
          %v3487 = vadd.f32 %v3485, %v3486
          %v3488 = vrot.slane %v3487, 1
          %v3489 = vadd.f32 %v3487, %v3488
          %v3490 = vrot.slane %v3477, 4
          %v3491 = vadd.f32 %v3477, %v3490
          %v3492 = vrot.slane %v3491, 2
          %v3493 = vadd.f32 %v3491, %v3492
          %v3494 = vrot.slane %v3493, 1
          %v3495 = vadd.f32 %v3493, %v3494
          %v3496 = vrot.slane %v3478, 4
          %v3497 = vadd.f32 %v3478, %v3496
          %v3498 = vrot.slane %v3497, 2
          %v3499 = vadd.f32 %v3497, %v3498
          %v3500 = vrot.slane %v3499, 1
          %v3501 = vadd.f32 %v3499, %v3500
          %v3502 = vrot.slane %v3479, 4
          %v3503 = vadd.f32 %v3479, %v3502
          %v3504 = vrot.slane %v3503, 2
          %v3505 = vadd.f32 %v3503, %v3504
          %v3506 = vrot.slane %v3505, 1
          %v3507 = vadd.f32 %v3505, %v3506
          %v3508 = vrot.slane %v3480, 4
          %v3509 = vadd.f32 %v3480, %v3508
          %v3510 = vrot.slane %v3509, 2
          %v3511 = vadd.f32 %v3509, %v3510
          %v3512 = vrot.slane %v3511, 1
          %v3513 = vadd.f32 %v3511, %v3512
          %v3514 = vrot.slane %v3481, 4
          %v3515 = vadd.f32 %v3481, %v3514
          %v3516 = vrot.slane %v3515, 2
          %v3517 = vadd.f32 %v3515, %v3516
          %v3518 = vrot.slane %v3517, 1
          %v3519 = vadd.f32 %v3517, %v3518
          %v3520 = vrot.slane %v3482, 4
          %v3521 = vadd.f32 %v3482, %v3520
          %v3522 = vrot.slane %v3521, 2
          %v3523 = vadd.f32 %v3521, %v3522
          %v3524 = vrot.slane %v3523, 1
          %v3525 = vadd.f32 %v3523, %v3524
          %v3526 = vrot.slane %v3483, 4
          %v3527 = vadd.f32 %v3483, %v3526
          %v3528 = vrot.slane %v3527, 2
          %v3529 = vadd.f32 %v3527, %v3528
          %v3530 = vrot.slane %v3529, 1
          %v3531 = vadd.f32 %v3529, %v3530
          %v3532 = vmul.f32 %v3489, 0.25
          %v3533 = vmul.f32 %v3495, 0.25
          %v3534 = vmul.f32 %v3501, 0.25
          %v3535 = vmul.f32 %v3507, 0.25
          %v3536 = vmul.f32 %v3513, 0.25
          %v3537 = vmul.f32 %v3519, 0.25
          %v3538 = vmul.f32 %v3525, 0.25
          %v3539 = vmul.f32 %v3531, 0.25
          %v3540 = vadd.f32 %v3532, 1e-05
          %v3541 = vadd.f32 %v3533, 1e-05
          %v3542 = vadd.f32 %v3534, 1e-05
          %v3543 = vadd.f32 %v3535, 1e-05
          %v3544 = vadd.f32 %v3536, 1e-05
          %v3545 = vadd.f32 %v3537, 1e-05
          %v3546 = vadd.f32 %v3538, 1e-05
          %v3547 = vadd.f32 %v3539, 1e-05
          %v3548 = vrsqrt.pop %v3540
          %v3549 = vrsqrt.pop %v3541
          %v3550 = vrsqrt.pop %v3542
          %v3551 = vrsqrt.pop %v3543
          %v3552 = vrsqrt.pop %v3544
          %v3553 = vrsqrt.pop %v3545
          %v3554 = vrsqrt.pop %v3546
          %v3555 = vrsqrt.pop %v3547
          %v3556 = vmul.f32 %v3460, %v3548
          %v3557 = vmul.f32 %v3461, %v3549
          %v3558 = vmul.f32 %v3462, %v3550
          %v3559 = vmul.f32 %v3463, %v3551
          %v3560 = vmul.f32 %v3464, %v3552
          %v3561 = vmul.f32 %v3465, %v3553
          %v3562 = vmul.f32 %v3466, %v3554
          %v3563 = vmul.f32 %v3467, %v3555
          %v3565 = vlaneseq
          %v3566 = vshrl.u32 %v3565, 7
          %v3567 = vsub.s32 0, %v3566
          %v3568 = vrot.slane %v3394, %v3567
          %v3569 = vlaneseq
          %v3570 = vshrl.u32 %v3569, 7
          %v3571 = vsub.s32 1, %v3570
          %v3572 = vrot.slane %v3394, %v3571
          %v3573 = vlaneseq
          %v3574 = vshrl.u32 %v3573, 7
          %v3575 = vsub.s32 2, %v3574
          %v3576 = vrot.slane %v3394, %v3575
          %v3577 = vlaneseq
          %v3578 = vshrl.u32 %v3577, 7
          %v3579 = vsub.s32 3, %v3578
          %v3580 = vrot.slane %v3394, %v3579
          %v3581 = vlaneseq
          %v3582 = vshrl.u32 %v3581, 7
          %v3583 = vsub.s32 4, %v3582
          %v3584 = vrot.slane %v3394, %v3583
          %v3585 = vlaneseq
          %v3586 = vshrl.u32 %v3585, 7
          %v3587 = vsub.s32 5, %v3586
          %v3588 = vrot.slane %v3394, %v3587
          %v3589 = vlaneseq
          %v3590 = vshrl.u32 %v3589, 7
          %v3591 = vsub.s32 6, %v3590
          %v3592 = vrot.slane %v3394, %v3591
          %v3593 = vlaneseq
          %v3594 = vshrl.u32 %v3593, 7
          %v3595 = vsub.s32 7, %v3594
          %v3596 = vrot.slane %v3394, %v3595
          %v3605 = vmul.f32 %v3556, %v3568
          %v3606 = vmul.f32 %v3557, %v3572
          %v3607 = vmul.f32 %v3558, %v3576
          %v3608 = vmul.f32 %v3559, %v3580
          %v3609 = vmul.f32 %v3560, %v3584
          %v3610 = vmul.f32 %v3561, %v3588
          %v3611 = vmul.f32 %v3562, %v3592
          %v3612 = vmul.f32 %v3563, %v3596
          %v3614 = vlaneseq
          %v3615 = vshrl.u32 %v3614, 7
          %v3616 = vsub.s32 0, %v3615
          %v3617 = vrot.slane %v3395, %v3616
          %v3618 = vlaneseq
          %v3619 = vshrl.u32 %v3618, 7
          %v3620 = vsub.s32 1, %v3619
          %v3621 = vrot.slane %v3395, %v3620
          %v3622 = vlaneseq
          %v3623 = vshrl.u32 %v3622, 7
          %v3624 = vsub.s32 2, %v3623
          %v3625 = vrot.slane %v3395, %v3624
          %v3626 = vlaneseq
          %v3627 = vshrl.u32 %v3626, 7
          %v3628 = vsub.s32 3, %v3627
          %v3629 = vrot.slane %v3395, %v3628
          %v3630 = vlaneseq
          %v3631 = vshrl.u32 %v3630, 7
          %v3632 = vsub.s32 4, %v3631
          %v3633 = vrot.slane %v3395, %v3632
          %v3634 = vlaneseq
          %v3635 = vshrl.u32 %v3634, 7
          %v3636 = vsub.s32 5, %v3635
          %v3637 = vrot.slane %v3395, %v3636
          %v3638 = vlaneseq
          %v3639 = vshrl.u32 %v3638, 7
          %v3640 = vsub.s32 6, %v3639
          %v3641 = vrot.slane %v3395, %v3640
          %v3642 = vlaneseq
          %v3643 = vshrl.u32 %v3642, 7
          %v3644 = vsub.s32 7, %v3643
          %v3645 = vrot.slane %v3395, %v3644
          %v3654 = vadd.f32 %v3605, %v3617
          %v3655 = vadd.f32 %v3606, %v3621
          %v3656 = vadd.f32 %v3607, %v3625
          %v3657 = vadd.f32 %v3608, %v3629
          %v3658 = vadd.f32 %v3609, %v3633
          %v3659 = vadd.f32 %v3610, %v3637
          %v3660 = vadd.f32 %v3611, %v3641
          %v3661 = vadd.f32 %v3612, %v3645
          %v3662 = vmax.f32 %v3654, 0.0
          %v3663 = vmax.f32 %v3655, 0.0
          %v3664 = vmax.f32 %v3656, 0.0
          %v3665 = vmax.f32 %v3657, 0.0
          %v3666 = vmax.f32 %v3658, 0.0
          %v3667 = vmax.f32 %v3659, 0.0
          %v3668 = vmax.f32 %v3660, 0.0
          %v3669 = vmax.f32 %v3661, 0.0
          %v3670 = vpack.c.bf16 %v3662, %v3662
          %v3671 = vpack.c.bf16 %v3663, %v3663
          %v3672 = vpack.c.bf16 %v3664, %v3664
          %v3673 = vpack.c.bf16 %v3665, %v3665
          %v3674 = vpack.c.bf16 %v3666, %v3666
          %v3675 = vpack.c.bf16 %v3667, %v3667
          %v3676 = vpack.c.bf16 %v3668, %v3668
          %v3677 = vpack.c.bf16 %v3669, %v3669
          %v3686 = vunpack.c.l.b16 %v3670
          %v3687 = vunpack.c.l.b16 %v3671
          %v3688 = vunpack.c.l.b16 %v3672
          %v3689 = vunpack.c.l.b16 %v3673
          %v3690 = vunpack.c.l.b16 %v3674
          %v3691 = vunpack.c.l.b16 %v3675
          %v3692 = vunpack.c.l.b16 %v3676
          %v3693 = vunpack.c.l.b16 %v3677
          %v3694 = vpack.c.b16 %v3687, %v3686
          %v3695 = vpack.c.b16 %v3689, %v3688
          %v3696 = vpack.c.b16 %v3691, %v3690
          %v3697 = vpack.c.b16 %v3693, %v3692
          %3702 = vst [vmem:[#allocation2] sm:$0xff] %v3694
          %3703 = vst [vmem:[#allocation2 + $0x8] sm:$0xff] %v3695
          %3704 = vst [vmem:[#allocation2 + $0x10] sm:$0xff] %v3696
          %3705 = vst [vmem:[#allocation2 + $0x18] sm:$0xff] %v3697
        $region108: #{generator_forward.1} parent=75 // pred_fallthru
          _
        %v3706 = vld [vmem:[#allocation2] sm:$0xff]
        %v3707 = vld [vmem:[#allocation2 + $0x8] sm:$0xff]
        %v3708 = vld [vmem:[#allocation2 + $0x10] sm:$0xff]
        %v3709 = vld [vmem:[#allocation2 + $0x18] sm:$0xff]
        %v3710 = vld [vmem:[%s525] sm:$0xf]
        %v3711 = vld [vmem:[%s525 + $0x4] sm:$0xf]
        %v3712 = vld [vmem:[%s525 + $0x8] sm:$0xf]
        %v3713 = vld [vmem:[%s525 + $0xc] sm:$0xf]
        %v3714 = vld [vmem:[%s525 + $0x10] sm:$0xf]
        %v3715 = vld [vmem:[%s525 + $0x14] sm:$0xf]
        %v3716 = vld [vmem:[%s525 + $0x18] sm:$0xf]
        %v3717 = vld [vmem:[%s525 + $0x1c] sm:$0xf]
        %v3718 = vld [vmem:[%s525 + $0x20] sm:$0xf]
        %v3719 = vld [vmem:[%s525 + $0x24] sm:$0xf]
        %v3720 = vld [vmem:[%s525 + $0x28] sm:$0xf]
        %v3721 = vld [vmem:[%s525 + $0x2c] sm:$0xf]
        %v3722 = vld [vmem:[%s525 + $0x30] sm:$0xf]
        %v3723 = vld [vmem:[%s525 + $0x34] sm:$0xf]
        %v3724 = vld [vmem:[%s525 + $0x38] sm:$0xf]
        %v3725 = vld [vmem:[%s525 + $0x3c] sm:$0xf]
        %v3726 = vld [vmem:[%s525 + $0x40] sm:$0xf]
        %v3727 = vld [vmem:[%s525 + $0x44] sm:$0xf]
        %v3728 = vld [vmem:[%s525 + $0x48] sm:$0xf]
        %v3729 = vld [vmem:[%s525 + $0x4c] sm:$0xf]
        %v3730 = vld [vmem:[%s525 + $0x50] sm:$0xf]
        %v3731 = vld [vmem:[%s525 + $0x54] sm:$0xf]
        %v3732 = vld [vmem:[%s525 + $0x58] sm:$0xf]
        %v3733 = vld [vmem:[%s525 + $0x5c] sm:$0xf]
        %v3734 = vld [vmem:[%s525 + $0x60] sm:$0xf]
        %v3735 = vld [vmem:[%s525 + $0x64] sm:$0xf]
        %v3736 = vld [vmem:[%s525 + $0x68] sm:$0xf]
        %v3737 = vld [vmem:[%s525 + $0x6c] sm:$0xf]
        %v3738 = vld [vmem:[%s525 + $0x70] sm:$0xf]
        %v3739 = vld [vmem:[%s525 + $0x74] sm:$0xf]
        %v3740 = vld [vmem:[%s525 + $0x78] sm:$0xf]
        %v3741 = vld [vmem:[%s525 + $0x7c] sm:$0xf]
        %v3742 = vld [vmem:[%s525 + $0x80] sm:$0xf]
        %v3743 = vld [vmem:[%s525 + $0x84] sm:$0xf]
        %v3744 = vld [vmem:[%s525 + $0x88] sm:$0xf]
        %v3745 = vld [vmem:[%s525 + $0x8c] sm:$0xf]
        %v3746 = vld [vmem:[%s525 + $0x90] sm:$0xf]
        %v3747 = vld [vmem:[%s525 + $0x94] sm:$0xf]
        %v3748 = vld [vmem:[%s525 + $0x98] sm:$0xf]
        %v3749 = vld [vmem:[%s525 + $0x9c] sm:$0xf]
        %v3750 = vld [vmem:[%s525 + $0xa0] sm:$0xf]
        %v3751 = vld [vmem:[%s525 + $0xa4] sm:$0xf]
        %v3752 = vld [vmem:[%s525 + $0xa8] sm:$0xf]
        %v3753 = vld [vmem:[%s525 + $0xac] sm:$0xf]
        %v3754 = vld [vmem:[%s525 + $0xb0] sm:$0xf]
        %v3755 = vld [vmem:[%s525 + $0xb4] sm:$0xf]
        %v3756 = vld [vmem:[%s525 + $0xb8] sm:$0xf]
        %v3757 = vld [vmem:[%s525 + $0xbc] sm:$0xf]
        %v3758 = vld [vmem:[%s525 + $0xc0] sm:$0xf]
        %v3759 = vld [vmem:[%s525 + $0xc4] sm:$0xf]
        %v3760 = vld [vmem:[%s525 + $0xc8] sm:$0xf]
        %v3761 = vld [vmem:[%s525 + $0xcc] sm:$0xf]
        %v3762 = vld [vmem:[%s525 + $0xd0] sm:$0xf]
        %v3763 = vld [vmem:[%s525 + $0xd4] sm:$0xf]
        %v3764 = vld [vmem:[%s525 + $0xd8] sm:$0xf]
        %v3765 = vld [vmem:[%s525 + $0xdc] sm:$0xf]
        %v3766 = vld [vmem:[%s525 + $0xe0] sm:$0xf]
        %v3767 = vld [vmem:[%s525 + $0xe4] sm:$0xf]
        %v3768 = vld [vmem:[%s525 + $0xe8] sm:$0xf]
        %v3769 = vld [vmem:[%s525 + $0xec] sm:$0xf]
        %v3770 = vld [vmem:[%s525 + $0xf0] sm:$0xf]
        %v3771 = vld [vmem:[%s525 + $0xf4] sm:$0xf]
        %v3772 = vld [vmem:[%s525 + $0xf8] sm:$0xf]
        %v3773 = vld [vmem:[%s525 + $0xfc] sm:$0xf]
        %v3774 = vld [vmem:[%s525 + $0x100] sm:$0xf]
        %v3775 = vld [vmem:[%s525 + $0x104] sm:$0xf]
        %v3776 = vld [vmem:[%s525 + $0x108] sm:$0xf]
        %v3777 = vld [vmem:[%s525 + $0x10c] sm:$0xf]
        %v3778 = vld [vmem:[%s525 + $0x110] sm:$0xf]
        %v3779 = vld [vmem:[%s525 + $0x114] sm:$0xf]
        %v3780 = vld [vmem:[%s525 + $0x118] sm:$0xf]
        %v3781 = vld [vmem:[%s525 + $0x11c] sm:$0xf]
        %v3782 = vld [vmem:[%s525 + $0x120] sm:$0xf]
        %v3783 = vld [vmem:[%s525 + $0x124] sm:$0xf]
        %v3784 = vld [vmem:[%s525 + $0x128] sm:$0xf]
        %v3785 = vld [vmem:[%s525 + $0x12c] sm:$0xf]
        %v3786 = vld [vmem:[%s525 + $0x130] sm:$0xf]
        %v3787 = vld [vmem:[%s525 + $0x134] sm:$0xf]
        %v3788 = vld [vmem:[%s525 + $0x138] sm:$0xf]
        %v3789 = vld [vmem:[%s525 + $0x13c] sm:$0xf]
        %v3790 = vld [vmem:[%s525 + $0x140] sm:$0xf]
        %v3791 = vld [vmem:[%s525 + $0x144] sm:$0xf]
        %v3792 = vld [vmem:[%s525 + $0x148] sm:$0xf]
        %v3793 = vld [vmem:[%s525 + $0x14c] sm:$0xf]
        %v3794 = vld [vmem:[%s525 + $0x150] sm:$0xf]
        %v3795 = vld [vmem:[%s525 + $0x154] sm:$0xf]
        %v3796 = vld [vmem:[%s525 + $0x158] sm:$0xf]
        %v3797 = vld [vmem:[%s525 + $0x15c] sm:$0xf]
        %v3798 = vld [vmem:[%s525 + $0x160] sm:$0xf]
        %v3799 = vld [vmem:[%s525 + $0x164] sm:$0xf]
        %v3800 = vld [vmem:[%s525 + $0x168] sm:$0xf]
        %v3801 = vld [vmem:[%s525 + $0x16c] sm:$0xf]
        %v3802 = vld [vmem:[%s525 + $0x170] sm:$0xf]
        %v3803 = vld [vmem:[%s525 + $0x174] sm:$0xf]
        %v3804 = vld [vmem:[%s525 + $0x178] sm:$0xf]
        %v3805 = vld [vmem:[%s525 + $0x17c] sm:$0xf]
        %v3806 = vld [vmem:[%s525 + $0x180] sm:$0xf]
        %v3807 = vld [vmem:[%s525 + $0x184] sm:$0xf]
        %v3808 = vld [vmem:[%s525 + $0x188] sm:$0xf]
        %v3809 = vld [vmem:[%s525 + $0x18c] sm:$0xf]
        %v3810 = vld [vmem:[%s525 + $0x190] sm:$0xf]
        %v3811 = vld [vmem:[%s525 + $0x194] sm:$0xf]
        %v3812 = vld [vmem:[%s525 + $0x198] sm:$0xf]
        %v3813 = vld [vmem:[%s525 + $0x19c] sm:$0xf]
        %v3814 = vld [vmem:[%s525 + $0x1a0] sm:$0xf]
        %v3815 = vld [vmem:[%s525 + $0x1a4] sm:$0xf]
        %v3816 = vld [vmem:[%s525 + $0x1a8] sm:$0xf]
        %v3817 = vld [vmem:[%s525 + $0x1ac] sm:$0xf]
        %v3818 = vld [vmem:[%s525 + $0x1b0] sm:$0xf]
        %v3819 = vld [vmem:[%s525 + $0x1b4] sm:$0xf]
        %v3820 = vld [vmem:[%s525 + $0x1b8] sm:$0xf]
        %v3821 = vld [vmem:[%s525 + $0x1bc] sm:$0xf]
        %v3822 = vld [vmem:[%s525 + $0x1c0] sm:$0xf]
        %v3823 = vld [vmem:[%s525 + $0x1c4] sm:$0xf]
        %v3824 = vld [vmem:[%s525 + $0x1c8] sm:$0xf]
        %v3825 = vld [vmem:[%s525 + $0x1cc] sm:$0xf]
        %v3826 = vld [vmem:[%s525 + $0x1d0] sm:$0xf]
        %v3827 = vld [vmem:[%s525 + $0x1d4] sm:$0xf]
        %v3828 = vld [vmem:[%s525 + $0x1d8] sm:$0xf]
        %v3829 = vld [vmem:[%s525 + $0x1dc] sm:$0xf]
        %v3830 = vld [vmem:[%s525 + $0x1e0] sm:$0xf]
        %v3831 = vld [vmem:[%s525 + $0x1e4] sm:$0xf]
        %v3832 = vld [vmem:[%s525 + $0x1e8] sm:$0xf]
        %v3833 = vld [vmem:[%s525 + $0x1ec] sm:$0xf]
        %v3834 = vld [vmem:[%s525 + $0x1f0] sm:$0xf]
        %v3835 = vld [vmem:[%s525 + $0x1f4] sm:$0xf]
        %v3836 = vld [vmem:[%s525 + $0x1f8] sm:$0xf]
        %v3837 = vld [vmem:[%s525 + $0x1fc] sm:$0xf]
        %v3838 = vld [vmem:[%s533] sm:$0x1]
        %v3840 = vlaneseq
        %v3841 = vshrl.u32 %v3840, 7
        %v3842 = vsub.s32 0, %v3841
        %v3843 = vrot.slane %v3838, %v3842
        %v3849 = vunpack.c.l.b16 %v3706
        %v3850 = vunpack.c.h.b16 %v3706
        %v3851 = vunpack.c.l.b16 %v3707
        %v3852 = vunpack.c.h.b16 %v3707
        %v3853 = vunpack.c.l.b16 %v3708
        %v3854 = vunpack.c.h.b16 %v3708
        %v3855 = vunpack.c.l.b16 %v3709
        %v3856 = vunpack.c.h.b16 %v3709
        %v3857 = vpack.c.b16 %v3849, %v3849
        %v3858 = vpack.c.b16 %v3850, %v3850
        %v3859 = vpack.c.b16 %v3851, %v3851
        %v3860 = vpack.c.b16 %v3852, %v3852
        %v3861 = vpack.c.b16 %v3853, %v3853
        %v3862 = vpack.c.b16 %v3854, %v3854
        %v3863 = vpack.c.b16 %v3855, %v3855
        %v3864 = vpack.c.b16 %v3856, %v3856
        %v4001 = vunpack.c.l.b16 %v3710
        %v4002 = vunpack.c.l.b16 %v3711
        %v4003 = vunpack.c.l.b16 %v3712
        %v4004 = vunpack.c.l.b16 %v3713
        %v4005 = vunpack.c.l.b16 %v3714
        %v4006 = vunpack.c.l.b16 %v3715
        %v4007 = vunpack.c.l.b16 %v3716
        %v4008 = vunpack.c.l.b16 %v3717
        %v4009 = vunpack.c.l.b16 %v3718
        %v4010 = vunpack.c.l.b16 %v3719
        %v4011 = vunpack.c.l.b16 %v3720
        %v4012 = vunpack.c.l.b16 %v3721
        %v4013 = vunpack.c.l.b16 %v3722
        %v4014 = vunpack.c.l.b16 %v3723
        %v4015 = vunpack.c.l.b16 %v3724
        %v4016 = vunpack.c.l.b16 %v3725
        %v4017 = vunpack.c.l.b16 %v3726
        %v4018 = vunpack.c.l.b16 %v3727
        %v4019 = vunpack.c.l.b16 %v3728
        %v4020 = vunpack.c.l.b16 %v3729
        %v4021 = vunpack.c.l.b16 %v3730
        %v4022 = vunpack.c.l.b16 %v3731
        %v4023 = vunpack.c.l.b16 %v3732
        %v4024 = vunpack.c.l.b16 %v3733
        %v4025 = vunpack.c.l.b16 %v3734
        %v4026 = vunpack.c.l.b16 %v3735
        %v4027 = vunpack.c.l.b16 %v3736
        %v4028 = vunpack.c.l.b16 %v3737
        %v4029 = vunpack.c.l.b16 %v3738
        %v4030 = vunpack.c.l.b16 %v3739
        %v4031 = vunpack.c.l.b16 %v3740
        %v4032 = vunpack.c.l.b16 %v3741
        %v4033 = vunpack.c.l.b16 %v3742
        %v4034 = vunpack.c.l.b16 %v3743
        %v4035 = vunpack.c.l.b16 %v3744
        %v4036 = vunpack.c.l.b16 %v3745
        %v4037 = vunpack.c.l.b16 %v3746
        %v4038 = vunpack.c.l.b16 %v3747
        %v4039 = vunpack.c.l.b16 %v3748
        %v4040 = vunpack.c.l.b16 %v3749
        %v4041 = vunpack.c.l.b16 %v3750
        %v4042 = vunpack.c.l.b16 %v3751
        %v4043 = vunpack.c.l.b16 %v3752
        %v4044 = vunpack.c.l.b16 %v3753
        %v4045 = vunpack.c.l.b16 %v3754
        %v4046 = vunpack.c.l.b16 %v3755
        %v4047 = vunpack.c.l.b16 %v3756
        %v4048 = vunpack.c.l.b16 %v3757
        %v4049 = vunpack.c.l.b16 %v3758
        %v4050 = vunpack.c.l.b16 %v3759
        %v4051 = vunpack.c.l.b16 %v3760
        %v4052 = vunpack.c.l.b16 %v3761
        %v4053 = vunpack.c.l.b16 %v3762
        %v4054 = vunpack.c.l.b16 %v3763
        %v4055 = vunpack.c.l.b16 %v3764
        %v4056 = vunpack.c.l.b16 %v3765
        %v4057 = vunpack.c.l.b16 %v3766
        %v4058 = vunpack.c.l.b16 %v3767
        %v4059 = vunpack.c.l.b16 %v3768
        %v4060 = vunpack.c.l.b16 %v3769
        %v4061 = vunpack.c.l.b16 %v3770
        %v4062 = vunpack.c.l.b16 %v3771
        %v4063 = vunpack.c.l.b16 %v3772
        %v4064 = vunpack.c.l.b16 %v3773
        %v4065 = vunpack.c.l.b16 %v3774
        %v4066 = vunpack.c.l.b16 %v3775
        %v4067 = vunpack.c.l.b16 %v3776
        %v4068 = vunpack.c.l.b16 %v3777
        %v4069 = vunpack.c.l.b16 %v3778
        %v4070 = vunpack.c.l.b16 %v3779
        %v4071 = vunpack.c.l.b16 %v3780
        %v4072 = vunpack.c.l.b16 %v3781
        %v4073 = vunpack.c.l.b16 %v3782
        %v4074 = vunpack.c.l.b16 %v3783
        %v4075 = vunpack.c.l.b16 %v3784
        %v4076 = vunpack.c.l.b16 %v3785
        %v4077 = vunpack.c.l.b16 %v3786
        %v4078 = vunpack.c.l.b16 %v3787
        %v4079 = vunpack.c.l.b16 %v3788
        %v4080 = vunpack.c.l.b16 %v3789
        %v4081 = vunpack.c.l.b16 %v3790
        %v4082 = vunpack.c.l.b16 %v3791
        %v4083 = vunpack.c.l.b16 %v3792
        %v4084 = vunpack.c.l.b16 %v3793
        %v4085 = vunpack.c.l.b16 %v3794
        %v4086 = vunpack.c.l.b16 %v3795
        %v4087 = vunpack.c.l.b16 %v3796
        %v4088 = vunpack.c.l.b16 %v3797
        %v4089 = vunpack.c.l.b16 %v3798
        %v4090 = vunpack.c.l.b16 %v3799
        %v4091 = vunpack.c.l.b16 %v3800
        %v4092 = vunpack.c.l.b16 %v3801
        %v4093 = vunpack.c.l.b16 %v3802
        %v4094 = vunpack.c.l.b16 %v3803
        %v4095 = vunpack.c.l.b16 %v3804
        %v4096 = vunpack.c.l.b16 %v3805
        %v4097 = vunpack.c.l.b16 %v3806
        %v4098 = vunpack.c.l.b16 %v3807
        %v4099 = vunpack.c.l.b16 %v3808
        %v4100 = vunpack.c.l.b16 %v3809
        %v4101 = vunpack.c.l.b16 %v3810
        %v4102 = vunpack.c.l.b16 %v3811
        %v4103 = vunpack.c.l.b16 %v3812
        %v4104 = vunpack.c.l.b16 %v3813
        %v4105 = vunpack.c.l.b16 %v3814
        %v4106 = vunpack.c.l.b16 %v3815
        %v4107 = vunpack.c.l.b16 %v3816
        %v4108 = vunpack.c.l.b16 %v3817
        %v4109 = vunpack.c.l.b16 %v3818
        %v4110 = vunpack.c.l.b16 %v3819
        %v4111 = vunpack.c.l.b16 %v3820
        %v4112 = vunpack.c.l.b16 %v3821
        %v4113 = vunpack.c.l.b16 %v3822
        %v4114 = vunpack.c.l.b16 %v3823
        %v4115 = vunpack.c.l.b16 %v3824
        %v4116 = vunpack.c.l.b16 %v3825
        %v4117 = vunpack.c.l.b16 %v3826
        %v4118 = vunpack.c.l.b16 %v3827
        %v4119 = vunpack.c.l.b16 %v3828
        %v4120 = vunpack.c.l.b16 %v3829
        %v4121 = vunpack.c.l.b16 %v3830
        %v4122 = vunpack.c.l.b16 %v3831
        %v4123 = vunpack.c.l.b16 %v3832
        %v4124 = vunpack.c.l.b16 %v3833
        %v4125 = vunpack.c.l.b16 %v3834
        %v4126 = vunpack.c.l.b16 %v3835
        %v4127 = vunpack.c.l.b16 %v3836
        %v4128 = vunpack.c.l.b16 %v3837
        %v4129 = vpack.c.b16 %v4002, %v4001
        %v4130 = vpack.c.b16 %v4004, %v4003
        %v4131 = vpack.c.b16 %v4006, %v4005
        %v4132 = vpack.c.b16 %v4008, %v4007
        %v4133 = vpack.c.b16 %v4010, %v4009
        %v4134 = vpack.c.b16 %v4012, %v4011
        %v4135 = vpack.c.b16 %v4014, %v4013
        %v4136 = vpack.c.b16 %v4016, %v4015
        %v4137 = vpack.c.b16 %v4018, %v4017
        %v4138 = vpack.c.b16 %v4020, %v4019
        %v4139 = vpack.c.b16 %v4022, %v4021
        %v4140 = vpack.c.b16 %v4024, %v4023
        %v4141 = vpack.c.b16 %v4026, %v4025
        %v4142 = vpack.c.b16 %v4028, %v4027
        %v4143 = vpack.c.b16 %v4030, %v4029
        %v4144 = vpack.c.b16 %v4032, %v4031
        %v4145 = vpack.c.b16 %v4034, %v4033
        %v4146 = vpack.c.b16 %v4036, %v4035
        %v4147 = vpack.c.b16 %v4038, %v4037
        %v4148 = vpack.c.b16 %v4040, %v4039
        %v4149 = vpack.c.b16 %v4042, %v4041
        %v4150 = vpack.c.b16 %v4044, %v4043
        %v4151 = vpack.c.b16 %v4046, %v4045
        %v4152 = vpack.c.b16 %v4048, %v4047
        %v4153 = vpack.c.b16 %v4050, %v4049
        %v4154 = vpack.c.b16 %v4052, %v4051
        %v4155 = vpack.c.b16 %v4054, %v4053
        %v4156 = vpack.c.b16 %v4056, %v4055
        %v4157 = vpack.c.b16 %v4058, %v4057
        %v4158 = vpack.c.b16 %v4060, %v4059
        %v4159 = vpack.c.b16 %v4062, %v4061
        %v4160 = vpack.c.b16 %v4064, %v4063
        %v4161 = vpack.c.b16 %v4066, %v4065
        %v4162 = vpack.c.b16 %v4068, %v4067
        %v4163 = vpack.c.b16 %v4070, %v4069
        %v4164 = vpack.c.b16 %v4072, %v4071
        %v4165 = vpack.c.b16 %v4074, %v4073
        %v4166 = vpack.c.b16 %v4076, %v4075
        %v4167 = vpack.c.b16 %v4078, %v4077
        %v4168 = vpack.c.b16 %v4080, %v4079
        %v4169 = vpack.c.b16 %v4082, %v4081
        %v4170 = vpack.c.b16 %v4084, %v4083
        %v4171 = vpack.c.b16 %v4086, %v4085
        %v4172 = vpack.c.b16 %v4088, %v4087
        %v4173 = vpack.c.b16 %v4090, %v4089
        %v4174 = vpack.c.b16 %v4092, %v4091
        %v4175 = vpack.c.b16 %v4094, %v4093
        %v4176 = vpack.c.b16 %v4096, %v4095
        %v4177 = vpack.c.b16 %v4098, %v4097
        %v4178 = vpack.c.b16 %v4100, %v4099
        %v4179 = vpack.c.b16 %v4102, %v4101
        %v4180 = vpack.c.b16 %v4104, %v4103
        %v4181 = vpack.c.b16 %v4106, %v4105
        %v4182 = vpack.c.b16 %v4108, %v4107
        %v4183 = vpack.c.b16 %v4110, %v4109
        %v4184 = vpack.c.b16 %v4112, %v4111
        %v4185 = vpack.c.b16 %v4114, %v4113
        %v4186 = vpack.c.b16 %v4116, %v4115
        %v4187 = vpack.c.b16 %v4118, %v4117
        %v4188 = vpack.c.b16 %v4120, %v4119
        %v4189 = vpack.c.b16 %v4122, %v4121
        %v4190 = vpack.c.b16 %v4124, %v4123
        %v4191 = vpack.c.b16 %v4126, %v4125
        %v4192 = vpack.c.b16 %v4128, %v4127
        %4257 = vmatprep.subr.bf16.mxu0 0
        %4258 = vmatpush1.bf16.msra.mxu0 %v4129
        %4259 = vmatprep.subr.bf16.mxu0 0
        %4260 = vmatpush1.bf16.msra.mxu0 %v4130
        %4261 = vmatprep.subr.bf16.mxu0 0
        %4262 = vmatpush1.bf16.msra.mxu0 %v4131
        %4263 = vmatprep.subr.bf16.mxu0 0
        %4264 = vmatpush1.bf16.msra.mxu0 %v4132
        %4265 = vmatprep.subr.bf16.mxu0 0
        %4266 = vmatpush1.bf16.msra.mxu0 %v4133
        %4267 = vmatprep.subr.bf16.mxu0 0
        %4268 = vmatpush1.bf16.msra.mxu0 %v4134
        %4269 = vmatprep.subr.bf16.mxu0 0
        %4270 = vmatpush1.bf16.msra.mxu0 %v4135
        %4271 = vmatprep.subr.bf16.mxu0 0
        %4272 = vmatpush1.bf16.msra.mxu0 %v4136
        %4273 = vmatprep.subr.bf16.mxu0 0
        %4274 = vmatpush1.bf16.msra.mxu0 %v4137
        %4275 = vmatprep.subr.bf16.mxu0 0
        %4276 = vmatpush1.bf16.msra.mxu0 %v4138
        %4277 = vmatprep.subr.bf16.mxu0 0
        %4278 = vmatpush1.bf16.msra.mxu0 %v4139
        %4279 = vmatprep.subr.bf16.mxu0 0
        %4280 = vmatpush1.bf16.msra.mxu0 %v4140
        %4281 = vmatprep.subr.bf16.mxu0 0
        %4282 = vmatpush1.bf16.msra.mxu0 %v4141
        %4283 = vmatprep.subr.bf16.mxu0 0
        %4284 = vmatpush1.bf16.msra.mxu0 %v4142
        %4285 = vmatprep.subr.bf16.mxu0 0
        %4286 = vmatpush1.bf16.msra.mxu0 %v4143
        %4287 = vmatprep.subr.bf16.mxu0 0
        %4288 = vmatpush1.bf16.msra.mxu0 %v4144
        %4289 = vmatprep.mubr.bf16.mxu0 %v3858
        %4290 = vmatmul.mubr.bf16.gmra.mrb[0].mxu0 %v3857
        %v4291 = vpop.f32.mrb[0].mxu0
        %v4292 = vadd.f32 %v3843, %v4291
        %v4293 = vpop.f32.mrb[0].mxu0
        %v4294 = vpop.f32.mrb[0].mxu0
        %v4295 = vpop.f32.mrb[0].mxu0
        %4296 = vdwg.mxu0
        %4297 = vmatprep.subr.bf16.mxu0 0
        %4298 = vmatpush1.bf16.msra.mxu0 %v4145
        %4299 = vmatprep.subr.bf16.mxu0 0
        %4300 = vmatpush1.bf16.msra.mxu0 %v4146
        %4301 = vmatprep.subr.bf16.mxu0 0
        %4302 = vmatpush1.bf16.msra.mxu0 %v4147
        %4303 = vmatprep.subr.bf16.mxu0 0
        %4304 = vmatpush1.bf16.msra.mxu0 %v4148
        %4305 = vmatprep.subr.bf16.mxu0 0
        %4306 = vmatpush1.bf16.msra.mxu0 %v4149
        %4307 = vmatprep.subr.bf16.mxu0 0
        %4308 = vmatpush1.bf16.msra.mxu0 %v4150
        %4309 = vmatprep.subr.bf16.mxu0 0
        %4310 = vmatpush1.bf16.msra.mxu0 %v4151
        %4311 = vmatprep.subr.bf16.mxu0 0
        %4312 = vmatpush1.bf16.msra.mxu0 %v4152
        %4313 = vmatprep.subr.bf16.mxu0 0
        %4314 = vmatpush1.bf16.msra.mxu0 %v4153
        %4315 = vmatprep.subr.bf16.mxu0 0
        %4316 = vmatpush1.bf16.msra.mxu0 %v4154
        %4317 = vmatprep.subr.bf16.mxu0 0
        %4318 = vmatpush1.bf16.msra.mxu0 %v4155
        %4319 = vmatprep.subr.bf16.mxu0 0
        %4320 = vmatpush1.bf16.msra.mxu0 %v4156
        %4321 = vmatprep.subr.bf16.mxu0 0
        %4322 = vmatpush1.bf16.msra.mxu0 %v4157
        %4323 = vmatprep.subr.bf16.mxu0 0
        %4324 = vmatpush1.bf16.msra.mxu0 %v4158
        %4325 = vmatprep.subr.bf16.mxu0 0
        %4326 = vmatpush1.bf16.msra.mxu0 %v4159
        %4327 = vmatprep.subr.bf16.mxu0 0
        %4328 = vmatpush1.bf16.msra.mxu0 %v4160
        %4329 = vmatprep.mubr.bf16.mxu0 %v3860
        %4330 = vmatmul.mubr.bf16.gmra.mrb[0].mxu0 %v3859
        %v4331 = vpop.f32.mrb[0].mxu0
        %v4332 = vadd.f32 %v4292, %v4331
        %v4333 = vpop.f32.mrb[0].mxu0
        %v4334 = vpop.f32.mrb[0].mxu0
        %v4335 = vpop.f32.mrb[0].mxu0
        %4336 = vdwg.mxu0
        %4337 = vmatprep.subr.bf16.mxu0 0
        %4338 = vmatpush1.bf16.msra.mxu0 %v4161
        %4339 = vmatprep.subr.bf16.mxu0 0
        %4340 = vmatpush1.bf16.msra.mxu0 %v4162
        %4341 = vmatprep.subr.bf16.mxu0 0
        %4342 = vmatpush1.bf16.msra.mxu0 %v4163
        %4343 = vmatprep.subr.bf16.mxu0 0
        %4344 = vmatpush1.bf16.msra.mxu0 %v4164
        %4345 = vmatprep.subr.bf16.mxu0 0
        %4346 = vmatpush1.bf16.msra.mxu0 %v4165
        %4347 = vmatprep.subr.bf16.mxu0 0
        %4348 = vmatpush1.bf16.msra.mxu0 %v4166
        %4349 = vmatprep.subr.bf16.mxu0 0
        %4350 = vmatpush1.bf16.msra.mxu0 %v4167
        %4351 = vmatprep.subr.bf16.mxu0 0
        %4352 = vmatpush1.bf16.msra.mxu0 %v4168
        %4353 = vmatprep.subr.bf16.mxu0 0
        %4354 = vmatpush1.bf16.msra.mxu0 %v4169
        %4355 = vmatprep.subr.bf16.mxu0 0
        %4356 = vmatpush1.bf16.msra.mxu0 %v4170
        %4357 = vmatprep.subr.bf16.mxu0 0
        %4358 = vmatpush1.bf16.msra.mxu0 %v4171
        %4359 = vmatprep.subr.bf16.mxu0 0
        %4360 = vmatpush1.bf16.msra.mxu0 %v4172
        %4361 = vmatprep.subr.bf16.mxu0 0
        %4362 = vmatpush1.bf16.msra.mxu0 %v4173
        %4363 = vmatprep.subr.bf16.mxu0 0
        %4364 = vmatpush1.bf16.msra.mxu0 %v4174
        %4365 = vmatprep.subr.bf16.mxu0 0
        %4366 = vmatpush1.bf16.msra.mxu0 %v4175
        %4367 = vmatprep.subr.bf16.mxu0 0
        %4368 = vmatpush1.bf16.msra.mxu0 %v4176
        %4369 = vmatprep.mubr.bf16.mxu0 %v3862
        %4370 = vmatmul.mubr.bf16.gmra.mrb[0].mxu0 %v3861
        %v4371 = vpop.f32.mrb[0].mxu0
        %v4372 = vadd.f32 %v4332, %v4371
        %v4373 = vpop.f32.mrb[0].mxu0
        %v4374 = vpop.f32.mrb[0].mxu0
        %v4375 = vpop.f32.mrb[0].mxu0
        %4376 = vdwg.mxu0
        %4377 = vmatprep.subr.bf16.mxu0 0
        %4378 = vmatpush1.bf16.msra.mxu0 %v4177
        %4379 = vmatprep.subr.bf16.mxu0 0
        %4380 = vmatpush1.bf16.msra.mxu0 %v4178
        %4381 = vmatprep.subr.bf16.mxu0 0
        %4382 = vmatpush1.bf16.msra.mxu0 %v4179
        %4383 = vmatprep.subr.bf16.mxu0 0
        %4384 = vmatpush1.bf16.msra.mxu0 %v4180
        %4385 = vmatprep.subr.bf16.mxu0 0
        %4386 = vmatpush1.bf16.msra.mxu0 %v4181
        %4387 = vmatprep.subr.bf16.mxu0 0
        %4388 = vmatpush1.bf16.msra.mxu0 %v4182
        %4389 = vmatprep.subr.bf16.mxu0 0
        %4390 = vmatpush1.bf16.msra.mxu0 %v4183
        %4391 = vmatprep.subr.bf16.mxu0 0
        %4392 = vmatpush1.bf16.msra.mxu0 %v4184
        %4393 = vmatprep.subr.bf16.mxu0 0
        %4394 = vmatpush1.bf16.msra.mxu0 %v4185
        %4395 = vmatprep.subr.bf16.mxu0 0
        %4396 = vmatpush1.bf16.msra.mxu0 %v4186
        %4397 = vmatprep.subr.bf16.mxu0 0
        %4398 = vmatpush1.bf16.msra.mxu0 %v4187
        %4399 = vmatprep.subr.bf16.mxu0 0
        %4400 = vmatpush1.bf16.msra.mxu0 %v4188
        %4401 = vmatprep.subr.bf16.mxu0 0
        %4402 = vmatpush1.bf16.msra.mxu0 %v4189
        %4403 = vmatprep.subr.bf16.mxu0 0
        %4404 = vmatpush1.bf16.msra.mxu0 %v4190
        %4405 = vmatprep.subr.bf16.mxu0 0
        %4406 = vmatpush1.bf16.msra.mxu0 %v4191
        %4407 = vmatprep.subr.bf16.mxu0 0
        %4408 = vmatpush1.bf16.msra.mxu0 %v4192
        %4409 = vmatprep.mubr.bf16.mxu0 %v3864
        %4410 = vmatmul.mubr.bf16.gmra.mrb[0].mxu0 %v3863
        %v4411 = vpop.f32.mrb[0].mxu0
        %v4412 = vadd.f32 %v4372, %v4411
        %v4413 = vpop.f32.mrb[0].mxu0
        %v4414 = vpop.f32.mrb[0].mxu0
        %v4415 = vpop.f32.mrb[0].mxu0
        %4416 = vdwg.mxu0
        %v4417 = vsub.f32 0.0, %v4412
        %v4418 = vmul.f32 %v4417, 1.442695
        %v4419 = vpow.pop %v4418
        %v4420 = vadd.f32 %v4419, 1.0
        %v4421 = vrcp.pop %v4420
        %4422 = vst [vmem:[%s584] sm:$0xff] %v4421
        %p4423 = scmp.lt.s32.totalorder %s31, 1
        %s4424 = scalar_select %p4423, %s31, 1
        %s4425 = smul.addr %s4424, 8
        %s4426 = scalar_lea.vmem %s14, %s4425
        // Predicated region
        $region109: #{generator_forward.1} parent=75 // pred_check
          %p4427 = pneg %p353
        $region110: #{generator_forward.1} parent=75 // pred_check_branch
          %4429 = sbr.rel (%p4427) target = $region112
        $region111: #{generator_forward.1} parent=75 // pred_region
          _
        $region112: #{generator_forward.1} parent=75 // pred_fallthru
          _
      $region76: #{generator_forward.1} parent=5 // pred_fallthru
        _
      %p4430 = scmp.le.s32.totalorder 2, %s26
      // Predicated region
      $region113: #{generator_forward.1} parent=5 // pred_check
        %p4431 = pneg %p4430
      $region114: #{generator_forward.1} parent=5 // pred_check_branch
        %4433 = sbr.rel (%p4431) target = $region116
      $region115: #{generator_forward.1} parent=5 // pred_region
        %s4434 = ssub.s32 %s26, 2
        // Predicated region
        $region117: #{generator_forward.1} parent=115 // pred_check
          %p4435 = pneg %p359
        $region118: #{generator_forward.1} parent=115 // pred_check_branch
          %4437 = sbr.rel (%p4435) target = $region120
        $region119: #{generator_forward.1} parent=115 // pred_region
          %p4438 = scmp.lt.s32.totalorder %s32, 1
          %s4439 = scalar_select %p4438, %s32, 1
          %s4440 = smul.addr %s4439, 8
          %s4441 = scalar_lea.vmem %s14, %s4440
        $region120: #{generator_forward.1} parent=115 // pred_fallthru
          _
      $region116: #{generator_forward.1} parent=5 // pred_fallthru
        _
    $region6: #{generator_forward.1} parent=1 // loop_footer
      %s30 = sadd.s32 1, %s26
    $region7: #{generator_forward.1} parent=1 // loop_footer_branch
      %25 = sbr.rel target = $region3
    $region8: #{generator_forward.1} parent=1 // loop_exit
      _
    %4442 = vsyncpa [#allocation4], 1
    %s4443 = scalar_lea.sflag [#allocation4], 1
    %4444 = vsyncpa %s4443, 1
    %4445 = vsyncpa [#allocation6], 1
    %4446 = vsyncpa [#allocation9], 1
    %4447 = vsyncpa [#allocation12], 1
    %s4448 = scalar_lea.sflag [#allocation12], 1
    %4449 = vsyncpa %s4448, 1

</llo_original>
